<compile_context>
chip_gen: v6e
topology: v6e:2x2x1
jax: 0.10.0
libtpu: 0.0.40
codegen_flags: <defaults>
</compile_context>

<pallas_src>
import functools

import jax
import jax.numpy as jnp
from jax.experimental import pallas as pl
from jax.experimental.pallas import tpu as pltpu


LANE = 128


def _round_up(x, m):
    return (x + m - 1) // m * m


def _vmem_capacity_bytes():
    try:
        return int(pltpu.get_tpu_info().vmem_capacity_bytes)
    except Exception:
        return 64 << 20          # conservative default (v7x); v5e/v6e have 128 MiB


def _stage_vmem_bytes(bb, H, W, Cin, Cout, in_bytes, out_bytes, res_bytes):
    """Rough per-grid-step VMEM footprint of one fused LIF+conv stage."""
    rows = bb * H * W
    Wp = _round_up(W + 2, 8)
    need = 2 * 9 * Cin * Cout * 2            # bf16 weight slab (double-buffered)
    need += 2 * rows * Cin * in_bytes        # input activation tiles
    need += 2 * rows * Cout * out_bytes      # output tiles
    need += 2 * rows * Cout * res_bytes      # residual tiles (0 if none)
    need += rows * Cin * 4                   # LIF membrane scratch (f32)
    need += bb * (H + 2) * Wp * Cin * 4      # padded-spike halo scratch (f32)
    need += rows * Cout * 4                  # f32 matmul accumulator temp
    need += rows * Cin * 6                   # per-tap load + bf16 cast temps
    return need


def _pick_bb(B, H, W, Cin, Cout, in_bytes, out_bytes, res_bytes, budget):
    """Largest batch tile that (a) divides B, (b) keeps nb >= 2 when B >= 2 so
    the 'parallel' grid axis can feed both TensorCores on v7x, and (c) fits the
    per-stage VMEM budget."""
    max_bb = max(B // 2, 1)
    best = 1
    for cand in range(1, max_bb + 1):
        if B % cand:
            continue
        if _stage_vmem_bytes(cand, H, W, Cin, Cout,
                             in_bytes, out_bytes, res_bytes) <= budget:
            best = cand
    return best


# ----------------------------------------------------------------------------
# Fused LIF (spikingjelly MultiStepLIFNode: tau=2, v_reset=0, v_th=1,
# decay_input, hard reset) -> Conv3x3(pad=1,bias) -> BN(eval) -> (+residual).
# ----------------------------------------------------------------------------
def _lif_conv_bn_kernel(*refs, tau, v_th, res_mode):
    if res_mode == "tensor":
        x_ref, w_ref, sh_ref, res_ref, o_ref, v_ref, xp_ref = refs
    else:
        x_ref, w_ref, sh_ref, o_ref, v_ref, xp_ref = refs
        res_ref = None

    t = pl.program_id(1)
    bb, H, W, Cin = v_ref.shape
    Cout = o_ref.shape[-1]
    rows = bb * H * W

    @pl.when(t == 0)
    def _():
        v_ref[...] = jnp.zeros_like(v_ref)      # LIF state reset per batch tile
        xp_ref[...] = jnp.zeros_like(xp_ref)    # zero halo once; persists over t

    # ---- LIF (f32): charge (decay_input, tau=2), fire, hard reset to 0 ----
    x = x_ref[0].astype(jnp.float32)                       # (bb, H, W, Cin)
    v = v_ref[...] + (x - v_ref[...]) * (1.0 / tau)
    spike = v >= v_th
    v_ref[...] = jnp.where(spike, 0.0, v)

    # Spikes into the interior of the sublane-padded halo scratch (no host pad).
    xp_ref[:, 1:H + 1, 1:W + 1, :] = spike.astype(jnp.float32)

    # ---- 3x3 conv: nine accumulating bf16 MXU matmuls over ref slices ----
    # (no im2col concat slab, no full materialisation of the padded tile)
    acc = None
    for dy in range(3):
        for dx in range(3):
            lhs = (xp_ref[:, dy:dy + H, dx:dx + W, :]
                   .reshape(rows, Cin).astype(jnp.bfloat16))
            k0 = (dy * 3 + dx) * Cin
            part = jnp.dot(lhs, w_ref[k0:k0 + Cin, :],
                           preferred_element_type=jnp.float32)
            acc = part if acc is None else acc + part

    out = acc + sh_ref[0]                       # conv bias + BN (scale is in W)
    out = out.reshape(bb, H, W, Cout)
    if res_mode == "tensor":
        out = out + res_ref[0].astype(jnp.float32)
    elif res_mode == "input":
        out = out + x                           # residual == kernel input
    o_ref[0] = out.astype(o_ref.dtype)


def lif_conv_bn(x, w2, shift, residual=None, residual_is_input=False,
                out_dtype=jnp.bfloat16, tau=2.0, v_th=1.0):
    """x: [T, B, H, W, Cin] (channels lane-padded); w2: [9*Cin, Cout] bf16 with
    BN scale folded in; shift: [Cout] f32."""
    T, B, H, W, Cin = x.shape
    K9Cin, Cout = w2.shape
    assert K9Cin == 9 * Cin and Cin % LANE == 0 and Cout % LANE == 0

    if residual_is_input:
        assert Cin == Cout
        res_mode = "input"
    elif residual is not None:
        res_mode = "tensor"
    else:
        res_mode = "none"

    in_bytes = jnp.dtype(x.dtype).itemsize
    out_bytes = jnp.dtype(out_dtype).itemsize
    res_bytes = (jnp.dtype(residual.dtype).itemsize
                 if res_mode == "tensor" else 0)

    cap = _vmem_capacity_bytes()
    bb = _pick_bb(B, H, W, Cin, Cout, in_bytes, out_bytes, res_bytes,
                  budget=int(0.45 * cap))
    nb = B // bb
    Wp = _round_up(W + 2, 8)

    need = _stage_vmem_bytes(bb, H, W, Cin, Cout, in_bytes, out_bytes, res_bytes)
    vmem_limit = int(min(max(int(1.5 * need), 32 << 20), int(0.9 * cap)))

    in_specs = [
        pl.BlockSpec((1, bb, H, W, Cin), lambda b, t: (t, b, 0, 0, 0)),
        pl.BlockSpec((K9Cin, Cout), lambda b, t: (0, 0)),
        pl.BlockSpec((1, Cout), lambda b, t: (0, 0)),
    ]
    args = [x, w2, shift.reshape(1, Cout)]
    if res_mode == "tensor":
        in_specs.append(
            pl.BlockSpec((1, bb, H, W, Cout), lambda b, t: (t, b, 0, 0, 0)))
        args.append(residual)

    return pl.pallas_call(
        functools.partial(_lif_conv_bn_kernel, tau=tau, v_th=v_th,
                          res_mode=res_mode),
        out_shape=jax.ShapeDtypeStruct((T, B, H, W, Cout), out_dtype),
        grid=(nb, T),                              # T innermost: carries LIF state
        in_specs=in_specs,
        out_specs=pl.BlockSpec((1, bb, H, W, Cout), lambda b, t: (t, b, 0, 0, 0)),
        scratch_shapes=[
            pltpu.VMEM((bb, H, W, Cin), jnp.float32),        # membrane potential
            pltpu.VMEM((bb, H + 2, Wp, Cin), jnp.float32),   # padded spikes (halo)
        ],
        compiler_params=pltpu.CompilerParams(
            dimension_semantics=("parallel", "arbitrary"),
            vmem_limit_bytes=vmem_limit),
    )(*args)


# ----------------------------------------------------------------------------
# MS_ConvBlock forward (Pallas)
# ----------------------------------------------------------------------------
def ms_convblock_forward(x_tbchw, folded_params):
    # x_tbchw: [T, B, C, H, W]
    T, B, C, H, W = x_tbchw.shape
    p1, p2, p3 = folded_params
    Cp = p1[0].shape[0] // 9                      # lane-padded `dim`

    # NCHW<->NHWC transposes and the one-time channel pad are plain XLA glue at
    # the block boundary; inside the block everything is channels-last, lane
    # padded and (between stages) bf16.
    x = jnp.transpose(x_tbchw, (0, 1, 3, 4, 2))               # [T, B, H, W, C]
    x = jnp.pad(x, ((0, 0),) * 4 + ((0, Cp - C),))            # lane-dense channels

    # TODO(synk): on 128 MiB parts (v5e/v6e) the three stages could be fused
    # into one pallas_call keeping h1/h2 resident in VMEM to remove the
    # remaining inter-stage HBM round trips.
    h1 = lif_conv_bn(x, *p1, residual_is_input=True)          # dim -> dim, + x
    h2 = lif_conv_bn(h1, *p2)                                 # dim -> dim*mlp
    h3 = lif_conv_bn(h2, *p3, residual=h1)                    # dim*mlp -> dim, + h1

    out = h3[..., :C].astype(x_tbchw.dtype)
    return jnp.transpose(out, (0, 1, 4, 2, 3))                # back to [T, B, C, H, W]


# ----------------------------------------------------------------------------
# Pure-JAX reference (same precision choices as the kernel: bf16 conv weights
# / inter-stage activations, f32 LIF) for the correctness sanity check.
# ----------------------------------------------------------------------------
def _ref_lif(x, tau=2.0, v_th=1.0):
    def step(v, xt):
        v = v + (xt - v) / tau
        s = (v >= v_th).astype(x.dtype)
        v = jnp.where(s > 0, 0.0, v)
        return v, s
    _, s = jax.lax.scan(step, jnp.zeros_like(x[0]), x)
    return s


def _ref_conv_bn(x_nchw, w, b, gamma, beta, mean, var, eps=1e-5):
    # Emulate the kernel's weight numerics: BN scale folded into the weights
    # and rounded to bf16; everything else stays f32.
    scale = gamma / jnp.sqrt(var + eps)
    w_eff = ((w * scale[:, None, None, None]).astype(jnp.bfloat16)
             .astype(jnp.float32) / scale[:, None, None, None])
    y = jax.lax.conv_general_dilated(
        x_nchw, w_eff, (1, 1), ((1, 1), (1, 1)),
        dimension_numbers=("NCHW", "OIHW", "NCHW"),
        precision=jax.lax.Precision.HIGHEST)
    y = y + b[None, :, None, None]
    y = (y - mean[None, :, None, None]) / jnp.sqrt(var[None, :, None, None] + eps)
    y = y * gamma[None, :, None, None] + beta[None, :, None, None]
    return y


def _ref_forward(x, raw_params):
    T, B, C, H, W = x.shape

    def conv(xs, pc):
        xf = xs.reshape(T * B, xs.shape[2], H, W)
        yf = _ref_conv_bn(xf, *pc)
        return yf.reshape(T, B, -1, H, W)

    def bf16(a):
        return a.astype(jnp.bfloat16).astype(jnp.float32)

    p1, p2, p3 = raw_params
    h = _ref_lif(x)
    h1 = bf16(conv(h, p1) + x)          # short_cut1 = x
    h = _ref_lif(h1)
    h2 = bf16(conv(h, p2))
    h = _ref_lif(h2)
    h3 = bf16(conv(h, p3) + h1)         # short_cut2 = h1
    return h3


# ----------------------------------------------------------------------------
# Parameter init / BN folding (+ lane padding of channels)
# ----------------------------------------------------------------------------
def _init_conv_bn(keys, cin, cout):
    kw, kb, kg, kbe, km, kv = keys
    w = jax.random.normal(kw, (cout, cin, 3, 3), jnp.float32) / jnp.sqrt(9.0 * cin)
    b = 0.1 * jax.random.normal(kb, (cout,), jnp.float32)
    gamma = 1.0 + 0.1 * jax.random.normal(kg, (cout,), jnp.float32)
    beta = 0.1 * jax.random.normal(kbe, (cout,), jnp.float32)
    mean = 0.1 * jax.random.normal(km, (cout,), jnp.float32)
    var = jax.random.uniform(kv, (cout,), jnp.float32, minval=0.5, maxval=1.5)
    return (w, b, gamma, beta, mean, var)


def _fold_and_pad(w, b, gamma, beta, mean, var, eps=1e-5, lane=LANE):
    """Fold BN into the conv: the scale goes into the weight columns (then the
    slab is cast to bf16), bias/mean/beta become a per-channel f32 shift.
    Channels are padded to the lane width with exact zeros."""
    cout, cin = w.shape[0], w.shape[1]
    cin_p, cout_p = _round_up(cin, lane), _round_up(cout, lane)
    scale = gamma / jnp.sqrt(var + eps)
    shift = beta + (b - mean) * scale
    # [Cout, Cin, kh, kw] -> [kh, kw, Cin, Cout], scale folded into Cout columns
    wt = jnp.transpose(w, (2, 3, 1, 0)) * scale[None, None, None, :]
    wt = jnp.pad(wt, ((0, 0), (0, 0), (0, cin_p - cin), (0, cout_p - cout)))
    w2 = wt.reshape(9 * cin_p, cout_p).astype(jnp.bfloat16)
    shift_p = jnp.pad(shift, (0, cout_p - cout)).astype(jnp.float32)
    return (w2, shift_p)


if __name__ == "__main__":
    T, B, dim, H, W = 2, 2, 4, 16, 16
    mlp_ratio = 4
    hid = dim * mlp_ratio

    key = jax.random.PRNGKey(0)
    kx, k1, k2, k3 = jax.random.split(key, 4)
    x = jax.random.normal(kx, (T, B, dim, H, W), jnp.float32)

    raw = (
        _init_conv_bn(jax.random.split(k1, 6), dim, dim),    # conv1
        _init_conv_bn(jax.random.split(k2, 6), dim, hid),    # conv2
        _init_conv_bn(jax.random.split(k3, 6), hid, dim),    # conv3
    )
    folded = tuple(_fold_and_pad(*p) for p in raw)

    out = jax.block_until_ready(ms_convblock_forward(x, folded))
    ref = jax.block_until_ready(_ref_forward(x, raw))

    assert out.shape == (T, B, dim, H, W)
    assert bool(jnp.all(jnp.isfinite(out)))
    # bf16 intermediates + binary LIF spikes near threshold: require near-total
    # elementwise agreement at bf16-level tolerance rather than strict allclose.
    close = jnp.abs(out - ref) <= (2e-2 + 2e-2 * jnp.abs(ref))
    assert float(jnp.mean(close.astype(jnp.float32))) > 0.98

    print("KERNEL_OK")
</pallas_src>

<mosaic_0001>
module attributes {stable_mosaic.version = 11 : i64} {
  func.func @_lif_conv_bn_kernel(%arg0: i32, %arg1: i32, %arg2: memref<1x1x16x16x128xf32, #tpu.memory_space<vmem>>, %arg3: memref<1152x128xbf16, #tpu.memory_space<vmem>>, %arg4: memref<1x128xf32, #tpu.memory_space<vmem>>, %arg5: memref<1x1x16x16x128xbf16, #tpu.memory_space<vmem>>, %arg6: memref<1x16x16x128xf32, #tpu.memory_space<vmem>>, %arg7: memref<1x18x24x128xf32, #tpu.memory_space<vmem>>) attributes {dimension_semantics = [#tpu.dimension_semantics<parallel>, #tpu.dimension_semantics<arbitrary>], iteration_bounds = array<i64: 2, 2>, scalar_prefetch = 0 : i64, scratch_operands = 2 : i64, tpu.core_type = #tpu.core_type<tc>, window_params = [{transform_indices = @transform_0, window_bounds = array<i64: 1, 1, 16, 16, 128>}, {pipeline_mode = #tpu.pipeline_mode<synchronous>, transform_indices = @transform_1, window_bounds = array<i64: 1152, 128>}, {pipeline_mode = #tpu.pipeline_mode<synchronous>, transform_indices = @transform_2, window_bounds = array<i64: 1, 128>}, {transform_indices = @transform_3, window_bounds = array<i64: 1, 1, 16, 16, 128>}]} {
    %c0_i32 = arith.constant 0 : i32
    %0 = arith.cmpi eq, %arg1, %c0_i32 : i32
    %1 = arith.extui %0 : i1 to i32
    %c0_i32_0 = arith.constant 0 : i32
    %2 = arith.cmpi ne, %1, %c0_i32_0 : i32
    scf.if %2 {
      %cst_83 = arith.constant 0.000000e+00 : f32
      %83 = vector.broadcast %cst_83 : f32 to vector<1x16x16x128xf32>
      %c0_84 = arith.constant 0 : index
      %c0_85 = arith.constant 0 : index
      %c0_86 = arith.constant 0 : index
      %c0_87 = arith.constant 0 : index
      %84 = vector.load %arg6[%c0_84, %c0_85, %c0_86, %c0_87] : memref<1x16x16x128xf32, #tpu.memory_space<vmem>>, vector<1x16x16x128xf32>
      tpu.vector_store %arg6[%c0_84, %c0_85, %c0_86, %c0_87], %83 {strides = array<i32>} : memref<1x16x16x128xf32, #tpu.memory_space<vmem>>, vector<1x16x16x128xf32>,
      %cst_88 = arith.constant 0.000000e+00 : f32
      %85 = vector.broadcast %cst_88 : f32 to vector<1x18x24x128xf32>
      %c0_89 = arith.constant 0 : index
      %c0_90 = arith.constant 0 : index
      %c0_91 = arith.constant 0 : index
      %c0_92 = arith.constant 0 : index
      %86 = vector.load %arg7[%c0_89, %c0_90, %c0_91, %c0_92] : memref<1x18x24x128xf32, #tpu.memory_space<vmem>>, vector<1x18x24x128xf32>
      tpu.vector_store %arg7[%c0_89, %c0_90, %c0_91, %c0_92], %85 {strides = array<i32>} : memref<1x18x24x128xf32, #tpu.memory_space<vmem>>, vector<1x18x24x128xf32>,
    } else {
    }
    %c0 = arith.constant 0 : index
    %c0_1 = arith.constant 0 : index
    %c0_2 = arith.constant 0 : index
    %c0_3 = arith.constant 0 : index
    %c0_4 = arith.constant 0 : index
    %3 = vector.load %arg2[%c0, %c0_1, %c0_2, %c0_3, %c0_4] : memref<1x1x16x16x128xf32, #tpu.memory_space<vmem>>, vector<1x1x16x16x128xf32>
    %4 = vector.shape_cast %3 : vector<1x1x16x16x128xf32> to vector<1x16x16x128xf32>
    %c0_5 = arith.constant 0 : index
    %c0_6 = arith.constant 0 : index
    %c0_7 = arith.constant 0 : index
    %c0_8 = arith.constant 0 : index
    %5 = vector.load %arg6[%c0_5, %c0_6, %c0_7, %c0_8] : memref<1x16x16x128xf32, #tpu.memory_space<vmem>>, vector<1x16x16x128xf32>
    %c0_9 = arith.constant 0 : index
    %c0_10 = arith.constant 0 : index
    %c0_11 = arith.constant 0 : index
    %c0_12 = arith.constant 0 : index
    %6 = vector.load %arg6[%c0_9, %c0_10, %c0_11, %c0_12] : memref<1x16x16x128xf32, #tpu.memory_space<vmem>>, vector<1x16x16x128xf32>
    %7 = arith.subf %4, %6 : vector<1x16x16x128xf32>
    %cst = arith.constant 5.000000e-01 : f32
    %8 = vector.broadcast %cst : f32 to vector<1x16x16x128xf32>
    %9 = arith.mulf %7, %8 : vector<1x16x16x128xf32>
    %10 = arith.addf %5, %9 : vector<1x16x16x128xf32>
    %cst_13 = arith.constant 1.000000e+00 : f32
    %11 = vector.broadcast %cst_13 : f32 to vector<1x16x16x128xf32>
    %12 = arith.cmpf oge, %10, %11 : vector<1x16x16x128xf32>
    %cst_14 = arith.constant 0.000000e+00 : f32
    %13 = vector.broadcast %cst_14 : f32 to vector<1x16x16x128xf32>
    %14 = arith.select %12, %13, %10 : vector<1x16x16x128xi1>, vector<1x16x16x128xf32>
    %c0_15 = arith.constant 0 : index
    %c0_16 = arith.constant 0 : index
    %c0_17 = arith.constant 0 : index
    %c0_18 = arith.constant 0 : index
    %15 = vector.load %arg6[%c0_15, %c0_16, %c0_17, %c0_18] : memref<1x16x16x128xf32, #tpu.memory_space<vmem>>, vector<1x16x16x128xf32>
    tpu.vector_store %arg6[%c0_15, %c0_16, %c0_17, %c0_18], %14 {strides = array<i32>} : memref<1x16x16x128xf32, #tpu.memory_space<vmem>>, vector<1x16x16x128xf32>,
    %16 = arith.extui %12 : vector<1x16x16x128xi1> to vector<1x16x16x128xi32>
    %17 = arith.sitofp %16 : vector<1x16x16x128xi32> to vector<1x16x16x128xf32>
    %c0_19 = arith.constant 0 : index
    %c1 = arith.constant 1 : index
    %c1_20 = arith.constant 1 : index
    %c0_21 = arith.constant 0 : index
    %18 = vector.load %arg7[%c0_19, %c1, %c1_20, %c0_21] : memref<1x18x24x128xf32, #tpu.memory_space<vmem>>, vector<1x16x16x128xf32>
    tpu.vector_store %arg7[%c0_19, %c1, %c1_20, %c0_21], %17 {strides = array<i32>} : memref<1x18x24x128xf32, #tpu.memory_space<vmem>>, vector<1x16x16x128xf32>,
    %c0_22 = arith.constant 0 : index
    %c0_23 = arith.constant 0 : index
    %c0_24 = arith.constant 0 : index
    %c0_25 = arith.constant 0 : index
    %19 = vector.load %arg7[%c0_22, %c0_23, %c0_24, %c0_25] : memref<1x18x24x128xf32, #tpu.memory_space<vmem>>, vector<1x16x16x128xf32>
    %20 = vector.shape_cast %19 : vector<1x16x16x128xf32> to vector<256x128xf32>
    %21 = arith.truncf %20 : vector<256x128xf32> to vector<256x128xbf16>
    %c0_26 = arith.constant 0 : index
    %c0_27 = arith.constant 0 : index
    %22 = vector.load %arg3[%c0_26, %c0_27] : memref<1152x128xbf16, #tpu.memory_space<vmem>>, vector<128x128xbf16>
    %cst_28 = arith.constant dense<0.000000e+00> : vector<256x128xf32>
    %23 = tpu.matmul %21, %22, %cst_28 {dimension_numbers = #tpu.dot_dimension_numbers<[1], [0], [0], [1], [0, 0, 1, 1], [], []>} : vector<256x128xbf16>, vector<128x128xbf16>, vector<256x128xf32> -> vector<256x128xf32>
    %c0_29 = arith.constant 0 : index
    %c0_30 = arith.constant 0 : index
    %c1_31 = arith.constant 1 : index
    %c0_32 = arith.constant 0 : index
    %24 = vector.load %arg7[%c0_29, %c0_30, %c1_31, %c0_32] : memref<1x18x24x128xf32, #tpu.memory_space<vmem>>, vector<1x16x16x128xf32>
    %25 = vector.shape_cast %24 : vector<1x16x16x128xf32> to vector<256x128xf32>
    %26 = arith.truncf %25 : vector<256x128xf32> to vector<256x128xbf16>
    %c128 = arith.constant 128 : index
    %c0_33 = arith.constant 0 : index
    %27 = vector.load %arg3[%c128, %c0_33] : memref<1152x128xbf16, #tpu.memory_space<vmem>>, vector<128x128xbf16>
    %cst_34 = arith.constant dense<0.000000e+00> : vector<256x128xf32>
    %28 = tpu.matmul %26, %27, %cst_34 {dimension_numbers = #tpu.dot_dimension_numbers<[1], [0], [0], [1], [0, 0, 1, 1], [], []>} : vector<256x128xbf16>, vector<128x128xbf16>, vector<256x128xf32> -> vector<256x128xf32>
    %29 = arith.addf %23, %28 : vector<256x128xf32>
    %c0_35 = arith.constant 0 : index
    %c0_36 = arith.constant 0 : index
    %c2 = arith.constant 2 : index
    %c0_37 = arith.constant 0 : index
    %30 = vector.load %arg7[%c0_35, %c0_36, %c2, %c0_37] : memref<1x18x24x128xf32, #tpu.memory_space<vmem>>, vector<1x16x16x128xf32>
    %31 = vector.shape_cast %30 : vector<1x16x16x128xf32> to vector<256x128xf32>
    %32 = arith.truncf %31 : vector<256x128xf32> to vector<256x128xbf16>
    %c256 = arith.constant 256 : index
    %c0_38 = arith.constant 0 : index
    %33 = vector.load %arg3[%c256, %c0_38] : memref<1152x128xbf16, #tpu.memory_space<vmem>>, vector<128x128xbf16>
    %cst_39 = arith.constant dense<0.000000e+00> : vector<256x128xf32>
    %34 = tpu.matmul %32, %33, %cst_39 {dimension_numbers = #tpu.dot_dimension_numbers<[1], [0], [0], [1], [0, 0, 1, 1], [], []>} : vector<256x128xbf16>, vector<128x128xbf16>, vector<256x128xf32> -> vector<256x128xf32>
    %35 = arith.addf %29, %34 : vector<256x128xf32>
    %c0_40 = arith.constant 0 : index
    %c1_41 = arith.constant 1 : index
    %c0_42 = arith.constant 0 : index
    %c0_43 = arith.constant 0 : index
    %36 = vector.load %arg7[%c0_40, %c1_41, %c0_42, %c0_43] : memref<1x18x24x128xf32, #tpu.memory_space<vmem>>, vector<1x16x16x128xf32>
    %37 = vector.shape_cast %36 : vector<1x16x16x128xf32> to vector<256x128xf32>
    %38 = arith.truncf %37 : vector<256x128xf32> to vector<256x128xbf16>
    %c384 = arith.constant 384 : index
    %c0_44 = arith.constant 0 : index
    %39 = vector.load %arg3[%c384, %c0_44] : memref<1152x128xbf16, #tpu.memory_space<vmem>>, vector<128x128xbf16>
    %cst_45 = arith.constant dense<0.000000e+00> : vector<256x128xf32>
    %40 = tpu.matmul %38, %39, %cst_45 {dimension_numbers = #tpu.dot_dimension_numbers<[1], [0], [0], [1], [0, 0, 1, 1], [], []>} : vector<256x128xbf16>, vector<128x128xbf16>, vector<256x128xf32> -> vector<256x128xf32>
    %41 = arith.addf %35, %40 : vector<256x128xf32>
    %c0_46 = arith.constant 0 : index
    %c1_47 = arith.constant 1 : index
    %c1_48 = arith.constant 1 : index
    %c0_49 = arith.constant 0 : index
    %42 = vector.load %arg7[%c0_46, %c1_47, %c1_48, %c0_49] : memref<1x18x24x128xf32, #tpu.memory_space<vmem>>, vector<1x16x16x128xf32>
    %43 = vector.shape_cast %42 : vector<1x16x16x128xf32> to vector<256x128xf32>
    %44 = arith.truncf %43 : vector<256x128xf32> to vector<256x128xbf16>
    %c512 = arith.constant 512 : index
    %c0_50 = arith.constant 0 : index
    %45 = vector.load %arg3[%c512, %c0_50] : memref<1152x128xbf16, #tpu.memory_space<vmem>>, vector<128x128xbf16>
    %cst_51 = arith.constant dense<0.000000e+00> : vector<256x128xf32>
    %46 = tpu.matmul %44, %45, %cst_51 {dimension_numbers = #tpu.dot_dimension_numbers<[1], [0], [0], [1], [0, 0, 1, 1], [], []>} : vector<256x128xbf16>, vector<128x128xbf16>, vector<256x128xf32> -> vector<256x128xf32>
    %47 = arith.addf %41, %46 : vector<256x128xf32>
    %c0_52 = arith.constant 0 : index
    %c1_53 = arith.constant 1 : index
    %c2_54 = arith.constant 2 : index
    %c0_55 = arith.constant 0 : index
    %48 = vector.load %arg7[%c0_52, %c1_53, %c2_54, %c0_55] : memref<1x18x24x128xf32, #tpu.memory_space<vmem>>, vector<1x16x16x128xf32>
    %49 = vector.shape_cast %48 : vector<1x16x16x128xf32> to vector<256x128xf32>
    %50 = arith.truncf %49 : vector<256x128xf32> to vector<256x128xbf16>
    %c640 = arith.constant 640 : index
    %c0_56 = arith.constant 0 : index
    %51 = vector.load %arg3[%c640, %c0_56] : memref<1152x128xbf16, #tpu.memory_space<vmem>>, vector<128x128xbf16>
    %cst_57 = arith.constant dense<0.000000e+00> : vector<256x128xf32>
    %52 = tpu.matmul %50, %51, %cst_57 {dimension_numbers = #tpu.dot_dimension_numbers<[1], [0], [0], [1], [0, 0, 1, 1], [], []>} : vector<256x128xbf16>, vector<128x128xbf16>, vector<256x128xf32> -> vector<256x128xf32>
    %53 = arith.addf %47, %52 : vector<256x128xf32>
    %c0_58 = arith.constant 0 : index
    %c2_59 = arith.constant 2 : index
    %c0_60 = arith.constant 0 : index
    %c0_61 = arith.constant 0 : index
    %54 = vector.load %arg7[%c0_58, %c2_59, %c0_60, %c0_61] : memref<1x18x24x128xf32, #tpu.memory_space<vmem>>, vector<1x16x16x128xf32>
    %55 = vector.shape_cast %54 : vector<1x16x16x128xf32> to vector<256x128xf32>
    %56 = arith.truncf %55 : vector<256x128xf32> to vector<256x128xbf16>
    %c768 = arith.constant 768 : index
    %c0_62 = arith.constant 0 : index
    %57 = vector.load %arg3[%c768, %c0_62] : memref<1152x128xbf16, #tpu.memory_space<vmem>>, vector<128x128xbf16>
    %cst_63 = arith.constant dense<0.000000e+00> : vector<256x128xf32>
    %58 = tpu.matmul %56, %57, %cst_63 {dimension_numbers = #tpu.dot_dimension_numbers<[1], [0], [0], [1], [0, 0, 1, 1], [], []>} : vector<256x128xbf16>, vector<128x128xbf16>, vector<256x128xf32> -> vector<256x128xf32>
    %59 = arith.addf %53, %58 : vector<256x128xf32>
    %c0_64 = arith.constant 0 : index
    %c2_65 = arith.constant 2 : index
    %c1_66 = arith.constant 1 : index
    %c0_67 = arith.constant 0 : index
    %60 = vector.load %arg7[%c0_64, %c2_65, %c1_66, %c0_67] : memref<1x18x24x128xf32, #tpu.memory_space<vmem>>, vector<1x16x16x128xf32>
    %61 = vector.shape_cast %60 : vector<1x16x16x128xf32> to vector<256x128xf32>
    %62 = arith.truncf %61 : vector<256x128xf32> to vector<256x128xbf16>
    %c896 = arith.constant 896 : index
    %c0_68 = arith.constant 0 : index
    %63 = vector.load %arg3[%c896, %c0_68] : memref<1152x128xbf16, #tpu.memory_space<vmem>>, vector<128x128xbf16>
    %cst_69 = arith.constant dense<0.000000e+00> : vector<256x128xf32>
    %64 = tpu.matmul %62, %63, %cst_69 {dimension_numbers = #tpu.dot_dimension_numbers<[1], [0], [0], [1], [0, 0, 1, 1], [], []>} : vector<256x128xbf16>, vector<128x128xbf16>, vector<256x128xf32> -> vector<256x128xf32>
    %65 = arith.addf %59, %64 : vector<256x128xf32>
    %c0_70 = arith.constant 0 : index
    %c2_71 = arith.constant 2 : index
    %c2_72 = arith.constant 2 : index
    %c0_73 = arith.constant 0 : index
    %66 = vector.load %arg7[%c0_70, %c2_71, %c2_72, %c0_73] : memref<1x18x24x128xf32, #tpu.memory_space<vmem>>, vector<1x16x16x128xf32>
    %67 = vector.shape_cast %66 : vector<1x16x16x128xf32> to vector<256x128xf32>
    %68 = arith.truncf %67 : vector<256x128xf32> to vector<256x128xbf16>
    %c1024 = arith.constant 1024 : index
    %c0_74 = arith.constant 0 : index
    %69 = vector.load %arg3[%c1024, %c0_74] : memref<1152x128xbf16, #tpu.memory_space<vmem>>, vector<128x128xbf16>
    %cst_75 = arith.constant dense<0.000000e+00> : vector<256x128xf32>
    %70 = tpu.matmul %68, %69, %cst_75 {dimension_numbers = #tpu.dot_dimension_numbers<[1], [0], [0], [1], [0, 0, 1, 1], [], []>} : vector<256x128xbf16>, vector<128x128xbf16>, vector<256x128xf32> -> vector<256x128xf32>
    %71 = arith.addf %65, %70 : vector<256x128xf32>
    %c0_76 = arith.constant 0 : index
    %c0_77 = arith.constant 0 : index
    %72 = vector.load %arg4[%c0_76, %c0_77] : memref<1x128xf32, #tpu.memory_space<vmem>>, vector<1x128xf32>
    %73 = vector.shape_cast %72 : vector<1x128xf32> to vector<128xf32>
    %74 = vector.shape_cast %73 : vector<128xf32> to vector<1x128xf32>
    %75 = vector.broadcast %74 : vector<1x128xf32> to vector<256x128xf32>
    %76 = arith.addf %71, %75 : vector<256x128xf32>
    %77 = vector.shape_cast %76 : vector<256x128xf32> to vector<1x16x16x128xf32>
    %78 = arith.addf %77, %4 : vector<1x16x16x128xf32>
    %79 = arith.truncf %78 : vector<1x16x16x128xf32> to vector<1x16x16x128xbf16>
    %c0_78 = arith.constant 0 : index
    %c0_79 = arith.constant 0 : index
    %c0_80 = arith.constant 0 : index
    %c0_81 = arith.constant 0 : index
    %c0_82 = arith.constant 0 : index
    %80 = vector.load %arg5[%c0_78, %c0_79, %c0_80, %c0_81, %c0_82] : memref<1x1x16x16x128xbf16, #tpu.memory_space<vmem>>, vector<1x1x16x16x128xbf16>
    %81 = vector.shape_cast %80 : vector<1x1x16x16x128xbf16> to vector<1x16x16x128xbf16>
    %82 = vector.shape_cast %79 : vector<1x16x16x128xbf16> to vector<1x1x16x16x128xbf16>
    tpu.vector_store %arg5[%c0_78, %c0_79, %c0_80, %c0_81, %c0_82], %82 {strides = array<i32>} : memref<1x1x16x16x128xbf16, #tpu.memory_space<vmem>>, vector<1x1x16x16x128xbf16>,
    return
  }
  func.func @transform_0(%arg0: i32, %arg1: i32) -> (i32, i32, i32, i32, i32) {
    %c0_i32 = arith.constant 0 : i32
    %c0_i32_0 = arith.constant 0 : i32
    %c0_i32_1 = arith.constant 0 : i32
    %c0_i32_2 = arith.constant 0 : i32
    return %arg1, %arg0, %c0_i32, %c0_i32_0, %c0_i32_1 : i32, i32, i32, i32, i32
  }
  func.func @transform_1(%arg0: i32, %arg1: i32) -> (i32, i32) {
    %c0_i32 = arith.constant 0 : i32
    %c0_i32_0 = arith.constant 0 : i32
    %c0_i32_1 = arith.constant 0 : i32
    return %c0_i32, %c0_i32_0 : i32, i32
  }
  func.func @transform_2(%arg0: i32, %arg1: i32) -> (i32, i32) {
    %c0_i32 = arith.constant 0 : i32
    %c0_i32_0 = arith.constant 0 : i32
    %c0_i32_1 = arith.constant 0 : i32
    return %c0_i32, %c0_i32_0 : i32, i32
  }
  func.func @transform_3(%arg0: i32, %arg1: i32) -> (i32, i32, i32, i32, i32) {
    %c0_i32 = arith.constant 0 : i32
    %c0_i32_0 = arith.constant 0 : i32
    %c0_i32_1 = arith.constant 0 : i32
    %c0_i32_2 = arith.constant 0 : i32
    return %arg1, %arg0, %c0_i32, %c0_i32_0, %c0_i32_1 : i32, i32, i32, i32, i32
  }
}

</mosaic_0001>

<llo_original>
// kernel: tpu_custom_call.1
$region0: #{tpu_custom_call.1}
  #allocation0 [shape = 'u32[]', space=smem, size = 0x4, offset = 0x4, fixed_abs, tag = 'smem constant byte address 0x4 - core index']
  #allocation1 [shape = 'u32[144,128]{1,0:T(1,128)}', space=vmem, size = 0x12000, scoped, tag = 'internal scratch']
  #allocation2 [shape = 'f32[1,16,16,128]{3,2,1,0:T(8,128)}', space=vmem, size = 0x20000, scoped, tag = 'scratch operand']
  #allocation3 [shape = 'f32[1,18,24,128]{3,2,1,0:T(8,128)}', space=vmem, size = 0x36000, scoped, tag = 'scratch operand']
  %s0 = inlined_call_operand.hbm [shape: f32[2,2,16,16,128], index: 0, kind: input, shape index: {}]
  %s1 = inlined_call_operand.hbm [shape: bf16[1152,128], index: 1, kind: input, shape index: {}]
  %s2 = inlined_call_operand.vmem [shape: f32[1,128], index: 2, kind: input, shape index: {}]
  %s3 = inlined_call_operand.hbm [shape: bf16[2,2,16,16,128], index: 3, kind: output, shape index: {}]
  %s4 = sld [smem:[#allocation0]]
  $region57: #{tpu_custom_call.1} parent=0
    _
  %s6 = ssub.s32 1, %s4
  %s7 = scalar_select 0, %s6, %s4
  $region1: #{tpu_custom_call.1} parent=0
    #allocation4 [shape = 'u8[262144]{0}', space=vmem, size = 0x40000, scoped, tag = 'input window, operand 0']
    #allocation5 [shape = 's32[2]{0}', space=sflag, size = 0x8, scoped, tag = 'scoped memory for tpu_custom_call.1']
    #allocation6 [shape = 's32[2]{0}', space=sflag, size = 0x8, scoped, tag = 'scoped memory for tpu_custom_call.1']
    #allocation7 [shape = 'u8[294912]{0}', space=vmem, size = 0x48000, scoped, tag = 'input window, operand 1, single buffered']
    #allocation8 [shape = 's32[1]{0}', space=sflag, size = 0x4, scoped, tag = 'scoped memory for tpu_custom_call.1']
    #allocation9 [shape = 'u8[131072]{0}', space=vmem, size = 0x20000, scoped, tag = 'output window, operand 0']
    %8 = vsyncpa [#allocation5], 0
    %s9 = scalar_lea.sflag [#allocation5], 1
    %10 = vsyncpa %s9, 0
    %11 = vsyncpa [#allocation8], 0
    %12 = vsyncpa [#allocation6], 0
    %s13 = scalar_lea.sflag [#allocation6], 1
    %14 = vsyncpa %s13, 0
    loop: start=0, step=1, limit=6
    $region2: #{tpu_custom_call.1} parent=1 // loop_pre_header
      _
    $region3: #{tpu_custom_call.1} parent=1 // loop_header
      %s16 = sphi 0, %s20
      %p17 = scmp.ge.s32.totalorder %s16, 6
      %s23 = sphi 0, %s35
      %s24 = sphi 0, %s31
      %s25 = sphi 0, %s23
      %s26 = sphi 0, %s24
      %s27 = sphi 0, %s25
      %s28 = sphi 0, %s26
      %s40 = sphi 0, %s42
      %s43 = sphi 0, %s40
      %s44 = sphi 0, %s43
      %s60 = sphi 0, %s44
      %s64 = sphi 0, %s64
      %s66 = sphi 0, %s64
      %s67 = sphi 0, %s66
      %s81 = sphi 0, %s67
      %s85 = sphi 0, %s85
      %s87 = sphi 0, %s85
      %s88 = sphi 0, %s87
      %s102 = sphi 0, %s88
      %s110 = sphi 0, %s112
      %s113 = sphi 0, %s110
      %s114 = sphi 0, %s113
      %s130 = sphi 0, %s114
    $region4: #{tpu_custom_call.1} parent=1 // loop_header_branch
      %19 = sbr.rel (%p17) target = $region8
    $region5: #{tpu_custom_call.1} parent=1 // loop_body
      %s21 = ssub.s32 %s16, 1
      %s22 = ssub.s32 %s16, 2
      %s29 = sadd.s32 1, %s24
      %p30 = scmp.ge.s32.totalorder %s29, 2
      %s31 = scalar_select %p30, 0, %s29
      %s32 = sadd.s32 1, %s23
      %s33 = scalar_select %p30, %s32, %s23
      %p34 = scmp.ge.s32.totalorder %s33, 2
      %s35 = scalar_select %p34, 0, %s33
      %s36 = ssub.s32 %s24, %s31
      %s37 = ssub.s32 %s23, %s35
      %s38 = sor.u32 %s36, %s37
      %p39 = scmp.eq.s32.totalorder %s38, 0
      %s41 = sadd.s32 %s40, 1
      %s42 = scalar_select %p39, %s40, %s41
      %p45 = pneg %p39
      %p46 = scmp.eq.s32.totalorder %s16, 3
      %p47 = por %p45, %p46
      %p48 = scmp.ne.s32.totalorder %s40, %s43
      %p49 = scmp.eq.s32.totalorder %s16, 0
      %p50 = por %p48, %p49
      %p51 = scmp.ne.s32.totalorder %s40, %s43
      %p52 = scmp.eq.s32.totalorder %s21, 3
      %p53 = por %p51, %p52
      %p54 = scmp.ne.s32.totalorder %s43, %s44
      %p55 = scmp.eq.s32.totalorder %s21, 0
      %p56 = por %p54, %p55
      %p57 = scmp.ne.s32.totalorder %s43, %s44
      %p58 = scmp.eq.s32.totalorder %s22, 3
      %p59 = por %p57, %p58
      %p61 = scmp.ne.s32.totalorder %s44, %s60
      %p62 = scmp.eq.s32.totalorder %s22, 0
      %p63 = por %p61, %p62
      %s65 = sadd.s32 %s64, 1
      %p68 = scmp.eq.s32.totalorder %s16, 3
      %p69 = scmp.ne.s32.totalorder %s64, %s66
      %p70 = scmp.eq.s32.totalorder %s16, 0
      %p71 = por %p69, %p70
      %p72 = scmp.ne.s32.totalorder %s64, %s66
      %p73 = scmp.eq.s32.totalorder %s21, 3
      %p74 = por %p72, %p73
      %p75 = scmp.ne.s32.totalorder %s66, %s67
      %p76 = scmp.eq.s32.totalorder %s21, 0
      %p77 = por %p75, %p76
      %p78 = scmp.ne.s32.totalorder %s66, %s67
      %p79 = scmp.eq.s32.totalorder %s22, 3
      %p80 = por %p78, %p79
      %p82 = scmp.ne.s32.totalorder %s67, %s81
      %p83 = scmp.eq.s32.totalorder %s22, 0
      %p84 = por %p82, %p83
      %s86 = sadd.s32 %s85, 1
      %p89 = scmp.eq.s32.totalorder %s16, 3
      %p90 = scmp.ne.s32.totalorder %s85, %s87
      %p91 = scmp.eq.s32.totalorder %s16, 0
      %p92 = por %p90, %p91
      %p93 = scmp.ne.s32.totalorder %s85, %s87
      %p94 = scmp.eq.s32.totalorder %s21, 3
      %p95 = por %p93, %p94
      %p96 = scmp.ne.s32.totalorder %s87, %s88
      %p97 = scmp.eq.s32.totalorder %s21, 0
      %p98 = por %p96, %p97
      %p99 = scmp.ne.s32.totalorder %s87, %s88
      %p100 = scmp.eq.s32.totalorder %s22, 3
      %p101 = por %p99, %p100
      %p103 = scmp.ne.s32.totalorder %s88, %s102
      %p104 = scmp.eq.s32.totalorder %s22, 0
      %p105 = por %p103, %p104
      %s106 = ssub.s32 %s24, %s31
      %s107 = ssub.s32 %s23, %s35
      %s108 = sor.u32 %s106, %s107
      %p109 = scmp.eq.s32.totalorder %s108, 0
      %s111 = sadd.s32 %s110, 1
      %s112 = scalar_select %p109, %s110, %s111
      %p115 = pneg %p109
      %p116 = scmp.eq.s32.totalorder %s16, 3
      %p117 = por %p115, %p116
      %p118 = scmp.ne.s32.totalorder %s110, %s113
      %p119 = scmp.eq.s32.totalorder %s16, 0
      %p120 = por %p118, %p119
      %p121 = scmp.ne.s32.totalorder %s110, %s113
      %p122 = scmp.eq.s32.totalorder %s21, 3
      %p123 = por %p121, %p122
      %p124 = scmp.ne.s32.totalorder %s113, %s114
      %p125 = scmp.eq.s32.totalorder %s21, 0
      %p126 = por %p124, %p125
      %p127 = scmp.ne.s32.totalorder %s113, %s114
      %p128 = scmp.eq.s32.totalorder %s22, 3
      %p129 = por %p127, %p128
      %p131 = scmp.ne.s32.totalorder %s114, %s130
      %p132 = scmp.eq.s32.totalorder %s22, 0
      %p133 = por %p131, %p132
      %p134 = scmp.le.s32.totalorder 1, %s16
      %p135 = scmp.lt.s32.totalorder %s16, 5
      %p136 = pnand %p134, %p135
      %p137 = pneg %p136
      // Predicated region
      $region9: #{tpu_custom_call.1} parent=5 // pred_check
        _
      $region10: #{tpu_custom_call.1} parent=5 // pred_check_branch
        %139 = sbr.rel (%p136) target = $region12
      $region11: #{tpu_custom_call.1} parent=5 // pred_region
        %s140 = ssub.s32 %s16, 1
        // Predicated region
        $region13: #{tpu_custom_call.1} parent=11 // pred_check
          %p141 = pneg %p77
        $region14: #{tpu_custom_call.1} parent=11 // pred_check_branch
          %143 = sbr.rel (%p141) target = $region16
        $region15: #{tpu_custom_call.1} parent=11 // pred_region
          %s145 = ssub.s32 9216, 9216
          %146 = vsyncadd [#allocation8], %s145
          %s147 = sshll.u32 [#allocation7], 4
          %s148 = int_to_ptr.vmem [resolvable:$true] %s147
          %153 = dma.hbm_to_vmem [thread:$0]  %s1, 9216, %s148, [#allocation8], 64, 64, 4
        $region16: #{tpu_custom_call.1} parent=11 // pred_fallthru
          _
        // Predicated region
        $region17: #{tpu_custom_call.1} parent=11 // pred_check
          %p154 = pneg %p98
        $region18: #{tpu_custom_call.1} parent=11 // pred_check_branch
          %156 = sbr.rel (%p154) target = $region20
        $region19: #{tpu_custom_call.1} parent=11 // pred_region
          _
        $region20: #{tpu_custom_call.1} parent=11 // pred_fallthru
          _
      $region12: #{tpu_custom_call.1} parent=5 // pred_fallthru
        _
      %p157 = scmp.lt.s32.totalorder %s16, 4
      // Predicated region
      $region21: #{tpu_custom_call.1} parent=5 // pred_check
        %p158 = pneg %p157
      $region22: #{tpu_custom_call.1} parent=5 // pred_check_branch
        %160 = sbr.rel (%p158) target = $region24
      $region23: #{tpu_custom_call.1} parent=5 // pred_region
        // Predicated region
        $region25: #{tpu_custom_call.1} parent=23 // pred_check
          %p161 = pneg %p50
        $region26: #{tpu_custom_call.1} parent=23 // pred_check_branch
          %163 = sbr.rel (%p161) target = $region28
        $region27: #{tpu_custom_call.1} parent=23 // pred_region
          %s164 = sand.u32 %s40, 1
          %s165 = scalar_lea.sflag [#allocation5], %s164
          %s166 = sand.u32 %s40, 1
          %s167 = smul.addr %s166, 256
          %s168 = scalar_lea.vmem [#allocation4], %s167
          %s170 = ssub.s32 4096, 4096
          %171 = vsyncadd %s165, %s170
          %s172 = smul.addr %s23, 32
          %s173 = smul.addr %s24, 64
          %s174 = sadd.s32 %s172, %s173
          %s175 = smul.addr %s174, 128
          %s176 = scalar_lea.hbm %s0, %s175
          %s177 = sshll.u32 %s168, 4
          %s178 = int_to_ptr.vmem [resolvable:$true] %s177
          %183 = dma.hbm_to_vmem [thread:$0]  %s176, 4096, %s178, %s165, 128, 128, 8
        $region28: #{tpu_custom_call.1} parent=23 // pred_fallthru
          _
      $region24: #{tpu_custom_call.1} parent=5 // pred_fallthru
        _
      %p184 = scmp.le.s32.totalorder 1, %s16
      %p185 = scmp.lt.s32.totalorder %s16, 5
      %p186 = pnand %p184, %p185
      %p187 = pneg %p186
      // Predicated region
      $region29: #{tpu_custom_call.1} parent=5 // pred_check
        _
      $region30: #{tpu_custom_call.1} parent=5 // pred_check_branch
        %189 = sbr.rel (%p186) target = $region32
      $region31: #{tpu_custom_call.1} parent=5 // pred_region
        %s190 = ssub.s32 %s16, 1
        %s191 = sand.u32 %s43, 1
        %s192 = scalar_lea.sflag [#allocation5], %s191
        %s193 = sand.u32 %s43, 1
        %s194 = smul.addr %s193, 256
        %s195 = scalar_lea.vmem [#allocation4], %s194
        // Predicated region
        $region33: #{tpu_custom_call.1} parent=31 // pred_check
          %p196 = pneg %p56
        $region34: #{tpu_custom_call.1} parent=31 // pred_check_branch
          %198 = sbr.rel (%p196) target = $region36
        $region35: #{tpu_custom_call.1} parent=31 // pred_region
          %199 = dma.done %s192, 4096
        $region36: #{tpu_custom_call.1} parent=31 // pred_fallthru
          _
        // Predicated region
        $region37: #{tpu_custom_call.1} parent=31 // pred_check
          %p200 = pneg %p77
        $region38: #{tpu_custom_call.1} parent=31 // pred_check_branch
          %202 = sbr.rel (%p200) target = $region40
        $region39: #{tpu_custom_call.1} parent=31 // pred_region
          %203 = dma.done [#allocation8], 9216
        $region40: #{tpu_custom_call.1} parent=31 // pred_fallthru
          _
        %s204 = sand.u32 %s43, 1
        %s205 = scalar_lea.sflag [#allocation5], %s204
        %s206 = sand.u32 %s43, 1
        %s207 = smul.addr %s206, 256
        %s208 = scalar_lea.vmem [#allocation4], %s207
        %p209 = pneg %p56
        %p210 = pneg %p53
        %p211 = pneg %p77
        %p212 = pneg %p74
        %p213 = pneg %p98
        %p214 = pneg %p95
        %p215 = pneg %p126
        %p216 = pneg %p123
        %s217 = sand.u32 %s113, 1
        %s218 = scalar_lea.sflag [#allocation6], %s217
        %s219 = sand.u32 %s113, 1
        %s220 = smul.addr %s219, 128
        %s221 = scalar_lea.vmem [#allocation9], %s220
        %p223 = scmp.eq.s32.totalorder %s26, 0
        // Predicated region
        $region41: #{tpu_custom_call.1} parent=31 // pred_check
          %p224 = pneg %p223
        $region42: #{tpu_custom_call.1} parent=31 // pred_check_branch
          %226 = sbr.rel (%p224) target = $region44
        $region43: #{tpu_custom_call.1} parent=31 // pred_region
          %227 = vst [vmem:[#allocation2] sm:$0xff] 0.0
          %228 = vst [vmem:[#allocation2 + $0x8] sm:$0xff] 0.0
          %229 = vst [vmem:[#allocation2 + $0x10] sm:$0xff] 0.0
          %230 = vst [vmem:[#allocation2 + $0x18] sm:$0xff] 0.0
          %231 = vst [vmem:[#allocation2 + $0x20] sm:$0xff] 0.0
          %232 = vst [vmem:[#allocation2 + $0x28] sm:$0xff] 0.0
          %233 = vst [vmem:[#allocation2 + $0x30] sm:$0xff] 0.0
          %234 = vst [vmem:[#allocation2 + $0x38] sm:$0xff] 0.0
          %235 = vst [vmem:[#allocation2 + $0x40] sm:$0xff] 0.0
          %236 = vst [vmem:[#allocation2 + $0x48] sm:$0xff] 0.0
          %237 = vst [vmem:[#allocation2 + $0x50] sm:$0xff] 0.0
          %238 = vst [vmem:[#allocation2 + $0x58] sm:$0xff] 0.0
          %239 = vst [vmem:[#allocation2 + $0x60] sm:$0xff] 0.0
          %240 = vst [vmem:[#allocation2 + $0x68] sm:$0xff] 0.0
          %241 = vst [vmem:[#allocation2 + $0x70] sm:$0xff] 0.0
          %242 = vst [vmem:[#allocation2 + $0x78] sm:$0xff] 0.0
          %243 = vst [vmem:[#allocation2 + $0x80] sm:$0xff] 0.0
          %244 = vst [vmem:[#allocation2 + $0x88] sm:$0xff] 0.0
          %245 = vst [vmem:[#allocation2 + $0x90] sm:$0xff] 0.0
          %246 = vst [vmem:[#allocation2 + $0x98] sm:$0xff] 0.0
          %247 = vst [vmem:[#allocation2 + $0xa0] sm:$0xff] 0.0
          %248 = vst [vmem:[#allocation2 + $0xa8] sm:$0xff] 0.0
          %249 = vst [vmem:[#allocation2 + $0xb0] sm:$0xff] 0.0
          %250 = vst [vmem:[#allocation2 + $0xb8] sm:$0xff] 0.0
          %251 = vst [vmem:[#allocation2 + $0xc0] sm:$0xff] 0.0
          %252 = vst [vmem:[#allocation2 + $0xc8] sm:$0xff] 0.0
          %253 = vst [vmem:[#allocation2 + $0xd0] sm:$0xff] 0.0
          %254 = vst [vmem:[#allocation2 + $0xd8] sm:$0xff] 0.0
          %255 = vst [vmem:[#allocation2 + $0xe0] sm:$0xff] 0.0
          %256 = vst [vmem:[#allocation2 + $0xe8] sm:$0xff] 0.0
          %257 = vst [vmem:[#allocation2 + $0xf0] sm:$0xff] 0.0
          %258 = vst [vmem:[#allocation2 + $0xf8] sm:$0xff] 0.0
          %259 = vst [vmem:[#allocation3] sm:$0xff] 0.0
          %260 = vst [vmem:[#allocation3 + $0x8] sm:$0xff] 0.0
          %261 = vst [vmem:[#allocation3 + $0x10] sm:$0xff] 0.0
          %262 = vst [vmem:[#allocation3 + $0x18] sm:$0xff] 0.0
          %263 = vst [vmem:[#allocation3 + $0x20] sm:$0xff] 0.0
          %264 = vst [vmem:[#allocation3 + $0x28] sm:$0xff] 0.0
          %265 = vst [vmem:[#allocation3 + $0x30] sm:$0xff] 0.0
          %266 = vst [vmem:[#allocation3 + $0x38] sm:$0xff] 0.0
          %267 = vst [vmem:[#allocation3 + $0x40] sm:$0xff] 0.0
          %268 = vst [vmem:[#allocation3 + $0x48] sm:$0xff] 0.0
          %269 = vst [vmem:[#allocation3 + $0x50] sm:$0xff] 0.0
          %270 = vst [vmem:[#allocation3 + $0x58] sm:$0xff] 0.0
          %271 = vst [vmem:[#allocation3 + $0x60] sm:$0xff] 0.0
          %272 = vst [vmem:[#allocation3 + $0x68] sm:$0xff] 0.0
          %273 = vst [vmem:[#allocation3 + $0x70] sm:$0xff] 0.0
          %274 = vst [vmem:[#allocation3 + $0x78] sm:$0xff] 0.0
          %275 = vst [vmem:[#allocation3 + $0x80] sm:$0xff] 0.0
          %276 = vst [vmem:[#allocation3 + $0x88] sm:$0xff] 0.0
          %277 = vst [vmem:[#allocation3 + $0x90] sm:$0xff] 0.0
          %278 = vst [vmem:[#allocation3 + $0x98] sm:$0xff] 0.0
          %279 = vst [vmem:[#allocation3 + $0xa0] sm:$0xff] 0.0
          %280 = vst [vmem:[#allocation3 + $0xa8] sm:$0xff] 0.0
          %281 = vst [vmem:[#allocation3 + $0xb0] sm:$0xff] 0.0
          %282 = vst [vmem:[#allocation3 + $0xb8] sm:$0xff] 0.0
          %283 = vst [vmem:[#allocation3 + $0xc0] sm:$0xff] 0.0
          %284 = vst [vmem:[#allocation3 + $0xc8] sm:$0xff] 0.0
          %285 = vst [vmem:[#allocation3 + $0xd0] sm:$0xff] 0.0
          %286 = vst [vmem:[#allocation3 + $0xd8] sm:$0xff] 0.0
          %287 = vst [vmem:[#allocation3 + $0xe0] sm:$0xff] 0.0
          %288 = vst [vmem:[#allocation3 + $0xe8] sm:$0xff] 0.0
          %289 = vst [vmem:[#allocation3 + $0xf0] sm:$0xff] 0.0
          %290 = vst [vmem:[#allocation3 + $0xf8] sm:$0xff] 0.0
          %291 = vst [vmem:[#allocation3 + $0x100] sm:$0xff] 0.0
          %292 = vst [vmem:[#allocation3 + $0x108] sm:$0xff] 0.0
          %293 = vst [vmem:[#allocation3 + $0x110] sm:$0xff] 0.0
          %294 = vst [vmem:[#allocation3 + $0x118] sm:$0xff] 0.0
          %295 = vst [vmem:[#allocation3 + $0x120] sm:$0xff] 0.0
          %296 = vst [vmem:[#allocation3 + $0x128] sm:$0xff] 0.0
          %297 = vst [vmem:[#allocation3 + $0x130] sm:$0xff] 0.0
          %298 = vst [vmem:[#allocation3 + $0x138] sm:$0xff] 0.0
          %299 = vst [vmem:[#allocation3 + $0x140] sm:$0xff] 0.0
          %300 = vst [vmem:[#allocation3 + $0x148] sm:$0xff] 0.0
          %301 = vst [vmem:[#allocation3 + $0x150] sm:$0xff] 0.0
          %302 = vst [vmem:[#allocation3 + $0x158] sm:$0xff] 0.0
          %303 = vst [vmem:[#allocation3 + $0x160] sm:$0xff] 0.0
          %304 = vst [vmem:[#allocation3 + $0x168] sm:$0xff] 0.0
          %305 = vst [vmem:[#allocation3 + $0x170] sm:$0xff] 0.0
          %306 = vst [vmem:[#allocation3 + $0x178] sm:$0xff] 0.0
          %307 = vst [vmem:[#allocation3 + $0x180] sm:$0xff] 0.0
          %308 = vst [vmem:[#allocation3 + $0x188] sm:$0xff] 0.0
          %309 = vst [vmem:[#allocation3 + $0x190] sm:$0xff] 0.0
          %310 = vst [vmem:[#allocation3 + $0x198] sm:$0xff] 0.0
          %311 = vst [vmem:[#allocation3 + $0x1a0] sm:$0xff] 0.0
          %312 = vst [vmem:[#allocation3 + $0x1a8] sm:$0xff] 0.0
        $region44: #{tpu_custom_call.1} parent=31 // pred_fallthru
          _
        %v313 = vld [vmem:[%s195] sm:$0xff]
        %v314 = vld [vmem:[%s195 + $0x8] sm:$0xff]
        %v315 = vld [vmem:[%s195 + $0x10] sm:$0xff]
        %v316 = vld [vmem:[%s195 + $0x18] sm:$0xff]
        %v317 = vld [vmem:[%s195 + $0x20] sm:$0xff]
        %v318 = vld [vmem:[%s195 + $0x28] sm:$0xff]
        %v319 = vld [vmem:[%s195 + $0x30] sm:$0xff]
        %v320 = vld [vmem:[%s195 + $0x38] sm:$0xff]
        %v321 = vld [vmem:[%s195 + $0x40] sm:$0xff]
        %v322 = vld [vmem:[%s195 + $0x48] sm:$0xff]
        %v323 = vld [vmem:[%s195 + $0x50] sm:$0xff]
        %v324 = vld [vmem:[%s195 + $0x58] sm:$0xff]
        %v325 = vld [vmem:[%s195 + $0x60] sm:$0xff]
        %v326 = vld [vmem:[%s195 + $0x68] sm:$0xff]
        %v327 = vld [vmem:[%s195 + $0x70] sm:$0xff]
        %v328 = vld [vmem:[%s195 + $0x78] sm:$0xff]
        %v329 = vld [vmem:[%s195 + $0x80] sm:$0xff]
        %v330 = vld [vmem:[%s195 + $0x88] sm:$0xff]
        %v331 = vld [vmem:[%s195 + $0x90] sm:$0xff]
        %v332 = vld [vmem:[%s195 + $0x98] sm:$0xff]
        %v333 = vld [vmem:[%s195 + $0xa0] sm:$0xff]
        %v334 = vld [vmem:[%s195 + $0xa8] sm:$0xff]
        %v335 = vld [vmem:[%s195 + $0xb0] sm:$0xff]
        %v336 = vld [vmem:[%s195 + $0xb8] sm:$0xff]
        %v337 = vld [vmem:[%s195 + $0xc0] sm:$0xff]
        %v338 = vld [vmem:[%s195 + $0xc8] sm:$0xff]
        %v339 = vld [vmem:[%s195 + $0xd0] sm:$0xff]
        %v340 = vld [vmem:[%s195 + $0xd8] sm:$0xff]
        %v341 = vld [vmem:[%s195 + $0xe0] sm:$0xff]
        %v342 = vld [vmem:[%s195 + $0xe8] sm:$0xff]
        %v343 = vld [vmem:[%s195 + $0xf0] sm:$0xff]
        %v344 = vld [vmem:[%s195 + $0xf8] sm:$0xff]
        %v345 = vld [vmem:[#allocation2] sm:$0xff]
        %v346 = vld [vmem:[#allocation2 + $0x8] sm:$0xff]
        %v347 = vld [vmem:[#allocation2 + $0x10] sm:$0xff]
        %v348 = vld [vmem:[#allocation2 + $0x18] sm:$0xff]
        %v349 = vld [vmem:[#allocation2 + $0x20] sm:$0xff]
        %v350 = vld [vmem:[#allocation2 + $0x28] sm:$0xff]
        %v351 = vld [vmem:[#allocation2 + $0x30] sm:$0xff]
        %v352 = vld [vmem:[#allocation2 + $0x38] sm:$0xff]
        %v353 = vld [vmem:[#allocation2 + $0x40] sm:$0xff]
        %v354 = vld [vmem:[#allocation2 + $0x48] sm:$0xff]
        %v355 = vld [vmem:[#allocation2 + $0x50] sm:$0xff]
        %v356 = vld [vmem:[#allocation2 + $0x58] sm:$0xff]
        %v357 = vld [vmem:[#allocation2 + $0x60] sm:$0xff]
        %v358 = vld [vmem:[#allocation2 + $0x68] sm:$0xff]
        %v359 = vld [vmem:[#allocation2 + $0x70] sm:$0xff]
        %v360 = vld [vmem:[#allocation2 + $0x78] sm:$0xff]
        %v361 = vld [vmem:[#allocation2 + $0x80] sm:$0xff]
        %v362 = vld [vmem:[#allocation2 + $0x88] sm:$0xff]
        %v363 = vld [vmem:[#allocation2 + $0x90] sm:$0xff]
        %v364 = vld [vmem:[#allocation2 + $0x98] sm:$0xff]
        %v365 = vld [vmem:[#allocation2 + $0xa0] sm:$0xff]
        %v366 = vld [vmem:[#allocation2 + $0xa8] sm:$0xff]
        %v367 = vld [vmem:[#allocation2 + $0xb0] sm:$0xff]
        %v368 = vld [vmem:[#allocation2 + $0xb8] sm:$0xff]
        %v369 = vld [vmem:[#allocation2 + $0xc0] sm:$0xff]
        %v370 = vld [vmem:[#allocation2 + $0xc8] sm:$0xff]
        %v371 = vld [vmem:[#allocation2 + $0xd0] sm:$0xff]
        %v372 = vld [vmem:[#allocation2 + $0xd8] sm:$0xff]
        %v373 = vld [vmem:[#allocation2 + $0xe0] sm:$0xff]
        %v374 = vld [vmem:[#allocation2 + $0xe8] sm:$0xff]
        %v375 = vld [vmem:[#allocation2 + $0xf0] sm:$0xff]
        %v376 = vld [vmem:[#allocation2 + $0xf8] sm:$0xff]
        %v377 = vsub.f32 %v313, %v345
        %v378 = vsub.f32 %v314, %v346
        %v379 = vsub.f32 %v315, %v347
        %v380 = vsub.f32 %v316, %v348
        %v381 = vsub.f32 %v317, %v349
        %v382 = vsub.f32 %v318, %v350
        %v383 = vsub.f32 %v319, %v351
        %v384 = vsub.f32 %v320, %v352
        %v385 = vsub.f32 %v321, %v353
        %v386 = vsub.f32 %v322, %v354
        %v387 = vsub.f32 %v323, %v355
        %v388 = vsub.f32 %v324, %v356
        %v389 = vsub.f32 %v325, %v357
        %v390 = vsub.f32 %v326, %v358
        %v391 = vsub.f32 %v327, %v359
        %v392 = vsub.f32 %v328, %v360
        %v393 = vsub.f32 %v329, %v361
        %v394 = vsub.f32 %v330, %v362
        %v395 = vsub.f32 %v331, %v363
        %v396 = vsub.f32 %v332, %v364
        %v397 = vsub.f32 %v333, %v365
        %v398 = vsub.f32 %v334, %v366
        %v399 = vsub.f32 %v335, %v367
        %v400 = vsub.f32 %v336, %v368
        %v401 = vsub.f32 %v337, %v369
        %v402 = vsub.f32 %v338, %v370
        %v403 = vsub.f32 %v339, %v371
        %v404 = vsub.f32 %v340, %v372
        %v405 = vsub.f32 %v341, %v373
        %v406 = vsub.f32 %v342, %v374
        %v407 = vsub.f32 %v343, %v375
        %v408 = vsub.f32 %v344, %v376
        %v409 = vmul.f32 %v377, 0.5
        %v410 = vmul.f32 %v378, 0.5
        %v411 = vmul.f32 %v379, 0.5
        %v412 = vmul.f32 %v380, 0.5
        %v413 = vmul.f32 %v381, 0.5
        %v414 = vmul.f32 %v382, 0.5
        %v415 = vmul.f32 %v383, 0.5
        %v416 = vmul.f32 %v384, 0.5
        %v417 = vmul.f32 %v385, 0.5
        %v418 = vmul.f32 %v386, 0.5
        %v419 = vmul.f32 %v387, 0.5
        %v420 = vmul.f32 %v388, 0.5
        %v421 = vmul.f32 %v389, 0.5
        %v422 = vmul.f32 %v390, 0.5
        %v423 = vmul.f32 %v391, 0.5
        %v424 = vmul.f32 %v392, 0.5
        %v425 = vmul.f32 %v393, 0.5
        %v426 = vmul.f32 %v394, 0.5
        %v427 = vmul.f32 %v395, 0.5
        %v428 = vmul.f32 %v396, 0.5
        %v429 = vmul.f32 %v397, 0.5
        %v430 = vmul.f32 %v398, 0.5
        %v431 = vmul.f32 %v399, 0.5
        %v432 = vmul.f32 %v400, 0.5
        %v433 = vmul.f32 %v401, 0.5
        %v434 = vmul.f32 %v402, 0.5
        %v435 = vmul.f32 %v403, 0.5
        %v436 = vmul.f32 %v404, 0.5
        %v437 = vmul.f32 %v405, 0.5
        %v438 = vmul.f32 %v406, 0.5
        %v439 = vmul.f32 %v407, 0.5
        %v440 = vmul.f32 %v408, 0.5
        %v441 = vadd.f32 %v345, %v409
        %v442 = vadd.f32 %v346, %v410
        %v443 = vadd.f32 %v347, %v411
        %v444 = vadd.f32 %v348, %v412
        %v445 = vadd.f32 %v349, %v413
        %v446 = vadd.f32 %v350, %v414
        %v447 = vadd.f32 %v351, %v415
        %v448 = vadd.f32 %v352, %v416
        %v449 = vadd.f32 %v353, %v417
        %v450 = vadd.f32 %v354, %v418
        %v451 = vadd.f32 %v355, %v419
        %v452 = vadd.f32 %v356, %v420
        %v453 = vadd.f32 %v357, %v421
        %v454 = vadd.f32 %v358, %v422
        %v455 = vadd.f32 %v359, %v423
        %v456 = vadd.f32 %v360, %v424
        %v457 = vadd.f32 %v361, %v425
        %v458 = vadd.f32 %v362, %v426
        %v459 = vadd.f32 %v363, %v427
        %v460 = vadd.f32 %v364, %v428
        %v461 = vadd.f32 %v365, %v429
        %v462 = vadd.f32 %v366, %v430
        %v463 = vadd.f32 %v367, %v431
        %v464 = vadd.f32 %v368, %v432
        %v465 = vadd.f32 %v369, %v433
        %v466 = vadd.f32 %v370, %v434
        %v467 = vadd.f32 %v371, %v435
        %v468 = vadd.f32 %v372, %v436
        %v469 = vadd.f32 %v373, %v437
        %v470 = vadd.f32 %v374, %v438
        %v471 = vadd.f32 %v375, %v439
        %v472 = vadd.f32 %v376, %v440
        %vm473 = vcmp.ge.f32.partialorder %v441, 1.0
        %vm474 = vcmp.ge.f32.partialorder %v442, 1.0
        %vm475 = vcmp.ge.f32.partialorder %v443, 1.0
        %vm476 = vcmp.ge.f32.partialorder %v444, 1.0
        %vm477 = vcmp.ge.f32.partialorder %v445, 1.0
        %vm478 = vcmp.ge.f32.partialorder %v446, 1.0
        %vm479 = vcmp.ge.f32.partialorder %v447, 1.0
        %vm480 = vcmp.ge.f32.partialorder %v448, 1.0
        %vm481 = vcmp.ge.f32.partialorder %v449, 1.0
        %vm482 = vcmp.ge.f32.partialorder %v450, 1.0
        %vm483 = vcmp.ge.f32.partialorder %v451, 1.0
        %vm484 = vcmp.ge.f32.partialorder %v452, 1.0
        %vm485 = vcmp.ge.f32.partialorder %v453, 1.0
        %vm486 = vcmp.ge.f32.partialorder %v454, 1.0
        %vm487 = vcmp.ge.f32.partialorder %v455, 1.0
        %vm488 = vcmp.ge.f32.partialorder %v456, 1.0
        %vm489 = vcmp.ge.f32.partialorder %v457, 1.0
        %vm490 = vcmp.ge.f32.partialorder %v458, 1.0
        %vm491 = vcmp.ge.f32.partialorder %v459, 1.0
        %vm492 = vcmp.ge.f32.partialorder %v460, 1.0
        %vm493 = vcmp.ge.f32.partialorder %v461, 1.0
        %vm494 = vcmp.ge.f32.partialorder %v462, 1.0
        %vm495 = vcmp.ge.f32.partialorder %v463, 1.0
        %vm496 = vcmp.ge.f32.partialorder %v464, 1.0
        %vm497 = vcmp.ge.f32.partialorder %v465, 1.0
        %vm498 = vcmp.ge.f32.partialorder %v466, 1.0
        %vm499 = vcmp.ge.f32.partialorder %v467, 1.0
        %vm500 = vcmp.ge.f32.partialorder %v468, 1.0
        %vm501 = vcmp.ge.f32.partialorder %v469, 1.0
        %vm502 = vcmp.ge.f32.partialorder %v470, 1.0
        %vm503 = vcmp.ge.f32.partialorder %v471, 1.0
        %vm504 = vcmp.ge.f32.partialorder %v472, 1.0
        %v505 = vsel %vm473, 0.0, %v441
        %v506 = vsel %vm474, 0.0, %v442
        %v507 = vsel %vm475, 0.0, %v443
        %v508 = vsel %vm476, 0.0, %v444
        %v509 = vsel %vm477, 0.0, %v445
        %v510 = vsel %vm478, 0.0, %v446
        %v511 = vsel %vm479, 0.0, %v447
        %v512 = vsel %vm480, 0.0, %v448
        %v513 = vsel %vm481, 0.0, %v449
        %v514 = vsel %vm482, 0.0, %v450
        %v515 = vsel %vm483, 0.0, %v451
        %v516 = vsel %vm484, 0.0, %v452
        %v517 = vsel %vm485, 0.0, %v453
        %v518 = vsel %vm486, 0.0, %v454
        %v519 = vsel %vm487, 0.0, %v455
        %v520 = vsel %vm488, 0.0, %v456
        %v521 = vsel %vm489, 0.0, %v457
        %v522 = vsel %vm490, 0.0, %v458
        %v523 = vsel %vm491, 0.0, %v459
        %v524 = vsel %vm492, 0.0, %v460
        %v525 = vsel %vm493, 0.0, %v461
        %v526 = vsel %vm494, 0.0, %v462
        %v527 = vsel %vm495, 0.0, %v463
        %v528 = vsel %vm496, 0.0, %v464
        %v529 = vsel %vm497, 0.0, %v465
        %v530 = vsel %vm498, 0.0, %v466
        %v531 = vsel %vm499, 0.0, %v467
        %v532 = vsel %vm500, 0.0, %v468
        %v533 = vsel %vm501, 0.0, %v469
        %v534 = vsel %vm502, 0.0, %v470
        %v535 = vsel %vm503, 0.0, %v471
        %v536 = vsel %vm504, 0.0, %v472
        %537 = vst [vmem:[#allocation2] sm:$0xff] %v505
        %538 = vst [vmem:[#allocation2 + $0x8] sm:$0xff] %v506
        %539 = vst [vmem:[#allocation2 + $0x10] sm:$0xff] %v507
        %540 = vst [vmem:[#allocation2 + $0x18] sm:$0xff] %v508
        %541 = vst [vmem:[#allocation2 + $0x20] sm:$0xff] %v509
        %542 = vst [vmem:[#allocation2 + $0x28] sm:$0xff] %v510
        %543 = vst [vmem:[#allocation2 + $0x30] sm:$0xff] %v511
        %544 = vst [vmem:[#allocation2 + $0x38] sm:$0xff] %v512
        %545 = vst [vmem:[#allocation2 + $0x40] sm:$0xff] %v513
        %546 = vst [vmem:[#allocation2 + $0x48] sm:$0xff] %v514
        %547 = vst [vmem:[#allocation2 + $0x50] sm:$0xff] %v515
        %548 = vst [vmem:[#allocation2 + $0x58] sm:$0xff] %v516
        %549 = vst [vmem:[#allocation2 + $0x60] sm:$0xff] %v517
        %550 = vst [vmem:[#allocation2 + $0x68] sm:$0xff] %v518
        %551 = vst [vmem:[#allocation2 + $0x70] sm:$0xff] %v519
        %552 = vst [vmem:[#allocation2 + $0x78] sm:$0xff] %v520
        %553 = vst [vmem:[#allocation2 + $0x80] sm:$0xff] %v521
        %554 = vst [vmem:[#allocation2 + $0x88] sm:$0xff] %v522
        %555 = vst [vmem:[#allocation2 + $0x90] sm:$0xff] %v523
        %556 = vst [vmem:[#allocation2 + $0x98] sm:$0xff] %v524
        %557 = vst [vmem:[#allocation2 + $0xa0] sm:$0xff] %v525
        %558 = vst [vmem:[#allocation2 + $0xa8] sm:$0xff] %v526
        %559 = vst [vmem:[#allocation2 + $0xb0] sm:$0xff] %v527
        %560 = vst [vmem:[#allocation2 + $0xb8] sm:$0xff] %v528
        %561 = vst [vmem:[#allocation2 + $0xc0] sm:$0xff] %v529
        %562 = vst [vmem:[#allocation2 + $0xc8] sm:$0xff] %v530
        %563 = vst [vmem:[#allocation2 + $0xd0] sm:$0xff] %v531
        %564 = vst [vmem:[#allocation2 + $0xd8] sm:$0xff] %v532
        %565 = vst [vmem:[#allocation2 + $0xe0] sm:$0xff] %v533
        %566 = vst [vmem:[#allocation2 + $0xe8] sm:$0xff] %v534
        %567 = vst [vmem:[#allocation2 + $0xf0] sm:$0xff] %v535
        %568 = vst [vmem:[#allocation2 + $0xf8] sm:$0xff] %v536
        %v569 = vsel %vm473, 1, 0
        %v570 = vsel %vm474, 1, 0
        %v571 = vsel %vm475, 1, 0
        %v572 = vsel %vm476, 1, 0
        %v573 = vsel %vm477, 1, 0
        %v574 = vsel %vm478, 1, 0
        %v575 = vsel %vm479, 1, 0
        %v576 = vsel %vm480, 1, 0
        %v577 = vsel %vm481, 1, 0
        %v578 = vsel %vm482, 1, 0
        %v579 = vsel %vm483, 1, 0
        %v580 = vsel %vm484, 1, 0
        %v581 = vsel %vm485, 1, 0
        %v582 = vsel %vm486, 1, 0
        %v583 = vsel %vm487, 1, 0
        %v584 = vsel %vm488, 1, 0
        %v585 = vsel %vm489, 1, 0
        %v586 = vsel %vm490, 1, 0
        %v587 = vsel %vm491, 1, 0
        %v588 = vsel %vm492, 1, 0
        %v589 = vsel %vm493, 1, 0
        %v590 = vsel %vm494, 1, 0
        %v591 = vsel %vm495, 1, 0
        %v592 = vsel %vm496, 1, 0
        %v593 = vsel %vm497, 1, 0
        %v594 = vsel %vm498, 1, 0
        %v595 = vsel %vm499, 1, 0
        %v596 = vsel %vm500, 1, 0
        %v597 = vsel %vm501, 1, 0
        %v598 = vsel %vm502, 1, 0
        %v599 = vsel %vm503, 1, 0
        %v600 = vsel %vm504, 1, 0
        %v601 = vcvt.s32.f32 %v569
        %v602 = vcvt.s32.f32 %v570
        %v603 = vcvt.s32.f32 %v571
        %v604 = vcvt.s32.f32 %v572
        %v605 = vcvt.s32.f32 %v573
        %v606 = vcvt.s32.f32 %v574
        %v607 = vcvt.s32.f32 %v575
        %v608 = vcvt.s32.f32 %v576
        %v609 = vcvt.s32.f32 %v577
        %v610 = vcvt.s32.f32 %v578
        %v611 = vcvt.s32.f32 %v579
        %v612 = vcvt.s32.f32 %v580
        %v613 = vcvt.s32.f32 %v581
        %v614 = vcvt.s32.f32 %v582
        %v615 = vcvt.s32.f32 %v583
        %v616 = vcvt.s32.f32 %v584
        %v617 = vcvt.s32.f32 %v585
        %v618 = vcvt.s32.f32 %v586
        %v619 = vcvt.s32.f32 %v587
        %v620 = vcvt.s32.f32 %v588
        %v621 = vcvt.s32.f32 %v589
        %v622 = vcvt.s32.f32 %v590
        %v623 = vcvt.s32.f32 %v591
        %v624 = vcvt.s32.f32 %v592
        %v625 = vcvt.s32.f32 %v593
        %v626 = vcvt.s32.f32 %v594
        %v627 = vcvt.s32.f32 %v595
        %v628 = vcvt.s32.f32 %v596
        %v629 = vcvt.s32.f32 %v597
        %v630 = vcvt.s32.f32 %v598
        %v631 = vcvt.s32.f32 %v599
        %v632 = vcvt.s32.f32 %v600
        %s633 = scalar_lea.vmem [#allocation3], 24
        %634 = vst [vmem:[%s633 + $0x1] sm:$0xff] %v601
        %635 = vst [vmem:[%s633 + $0x9] sm:$0xff] %v602
        %636 = vst [vmem:[%s633 + $0x19] sm:$0xff] %v603
        %637 = vst [vmem:[%s633 + $0x21] sm:$0xff] %v604
        %638 = vst [vmem:[%s633 + $0x31] sm:$0xff] %v605
        %639 = vst [vmem:[%s633 + $0x39] sm:$0xff] %v606
        %640 = vst [vmem:[%s633 + $0x49] sm:$0xff] %v607
        %641 = vst [vmem:[%s633 + $0x51] sm:$0xff] %v608
        %642 = vst [vmem:[%s633 + $0x61] sm:$0xff] %v609
        %643 = vst [vmem:[%s633 + $0x69] sm:$0xff] %v610
        %644 = vst [vmem:[%s633 + $0x79] sm:$0xff] %v611
        %645 = vst [vmem:[%s633 + $0x81] sm:$0xff] %v612
        %646 = vst [vmem:[%s633 + $0x91] sm:$0xff] %v613
        %647 = vst [vmem:[%s633 + $0x99] sm:$0xff] %v614
        %648 = vst [vmem:[%s633 + $0xa9] sm:$0xff] %v615
        %649 = vst [vmem:[%s633 + $0xb1] sm:$0xff] %v616
        %650 = vst [vmem:[%s633 + $0xc1] sm:$0xff] %v617
        %651 = vst [vmem:[%s633 + $0xc9] sm:$0xff] %v618
        %652 = vst [vmem:[%s633 + $0xd9] sm:$0xff] %v619
        %653 = vst [vmem:[%s633 + $0xe1] sm:$0xff] %v620
        %654 = vst [vmem:[%s633 + $0xf1] sm:$0xff] %v621
        %655 = vst [vmem:[%s633 + $0xf9] sm:$0xff] %v622
        %656 = vst [vmem:[%s633 + $0x109] sm:$0xff] %v623
        %657 = vst [vmem:[%s633 + $0x111] sm:$0xff] %v624
        %658 = vst [vmem:[%s633 + $0x121] sm:$0xff] %v625
        %659 = vst [vmem:[%s633 + $0x129] sm:$0xff] %v626
        %660 = vst [vmem:[%s633 + $0x139] sm:$0xff] %v627
        %661 = vst [vmem:[%s633 + $0x141] sm:$0xff] %v628
        %662 = vst [vmem:[%s633 + $0x151] sm:$0xff] %v629
        %663 = vst [vmem:[%s633 + $0x159] sm:$0xff] %v630
        %664 = vst [vmem:[%s633 + $0x169] sm:$0xff] %v631
        %665 = vst [vmem:[%s633 + $0x171] sm:$0xff] %v632
        %v666 = vld [vmem:[#allocation3] sm:$0xff]
        %v667 = vld [vmem:[#allocation3 + $0x8] sm:$0xff]
        %v668 = vld [vmem:[#allocation3 + $0x18] sm:$0xff]
        %v669 = vld [vmem:[#allocation3 + $0x20] sm:$0xff]
        %v670 = vld [vmem:[#allocation3 + $0x30] sm:$0xff]
        %v671 = vld [vmem:[#allocation3 + $0x38] sm:$0xff]
        %v672 = vld [vmem:[#allocation3 + $0x48] sm:$0xff]
        %v673 = vld [vmem:[#allocation3 + $0x50] sm:$0xff]
        %v674 = vld [vmem:[#allocation3 + $0x60] sm:$0xff]
        %v675 = vld [vmem:[#allocation3 + $0x68] sm:$0xff]
        %v676 = vld [vmem:[#allocation3 + $0x78] sm:$0xff]
        %v677 = vld [vmem:[#allocation3 + $0x80] sm:$0xff]
        %v678 = vld [vmem:[#allocation3 + $0x90] sm:$0xff]
        %v679 = vld [vmem:[#allocation3 + $0x98] sm:$0xff]
        %v680 = vld [vmem:[#allocation3 + $0xa8] sm:$0xff]
        %v681 = vld [vmem:[#allocation3 + $0xb0] sm:$0xff]
        %v682 = vld [vmem:[#allocation3 + $0xc0] sm:$0xff]
        %v683 = vld [vmem:[#allocation3 + $0xc8] sm:$0xff]
        %v684 = vld [vmem:[#allocation3 + $0xd8] sm:$0xff]
        %v685 = vld [vmem:[#allocation3 + $0xe0] sm:$0xff]
        %v686 = vld [vmem:[#allocation3 + $0xf0] sm:$0xff]
        %v687 = vld [vmem:[#allocation3 + $0xf8] sm:$0xff]
        %v688 = vld [vmem:[#allocation3 + $0x108] sm:$0xff]
        %v689 = vld [vmem:[#allocation3 + $0x110] sm:$0xff]
        %v690 = vld [vmem:[#allocation3 + $0x120] sm:$0xff]
        %v691 = vld [vmem:[#allocation3 + $0x128] sm:$0xff]
        %v692 = vld [vmem:[#allocation3 + $0x138] sm:$0xff]
        %v693 = vld [vmem:[#allocation3 + $0x140] sm:$0xff]
        %v694 = vld [vmem:[#allocation3 + $0x150] sm:$0xff]
        %v695 = vld [vmem:[#allocation3 + $0x158] sm:$0xff]
        %v696 = vld [vmem:[#allocation3 + $0x168] sm:$0xff]
        %v697 = vld [vmem:[#allocation3 + $0x170] sm:$0xff]
        %v698 = vpack.c.bf16 %v667, %v666
        %v699 = vpack.c.bf16 %v669, %v668
        %v700 = vpack.c.bf16 %v671, %v670
        %v701 = vpack.c.bf16 %v673, %v672
        %v702 = vpack.c.bf16 %v675, %v674
        %v703 = vpack.c.bf16 %v677, %v676
        %v704 = vpack.c.bf16 %v679, %v678
        %v705 = vpack.c.bf16 %v681, %v680
        %v706 = vpack.c.bf16 %v683, %v682
        %v707 = vpack.c.bf16 %v685, %v684
        %v708 = vpack.c.bf16 %v687, %v686
        %v709 = vpack.c.bf16 %v689, %v688
        %v710 = vpack.c.bf16 %v691, %v690
        %v711 = vpack.c.bf16 %v693, %v692
        %v712 = vpack.c.bf16 %v695, %v694
        %v713 = vpack.c.bf16 %v697, %v696
        %v714 = vld [vmem:[#allocation7] sm:$0xf]
        %v715 = vld [vmem:[#allocation7 + $0x4] sm:$0xf]
        %v716 = vld [vmem:[#allocation7 + $0x8] sm:$0xf]
        %v717 = vld [vmem:[#allocation7 + $0xc] sm:$0xf]
        %v718 = vld [vmem:[#allocation7 + $0x10] sm:$0xf]
        %v719 = vld [vmem:[#allocation7 + $0x14] sm:$0xf]
        %v720 = vld [vmem:[#allocation7 + $0x18] sm:$0xf]
        %v721 = vld [vmem:[#allocation7 + $0x1c] sm:$0xf]
        %v722 = vld [vmem:[#allocation7 + $0x20] sm:$0xf]
        %v723 = vld [vmem:[#allocation7 + $0x24] sm:$0xf]
        %v724 = vld [vmem:[#allocation7 + $0x28] sm:$0xf]
        %v725 = vld [vmem:[#allocation7 + $0x2c] sm:$0xf]
        %v726 = vld [vmem:[#allocation7 + $0x30] sm:$0xf]
        %v727 = vld [vmem:[#allocation7 + $0x34] sm:$0xf]
        %v728 = vld [vmem:[#allocation7 + $0x38] sm:$0xf]
        %v729 = vld [vmem:[#allocation7 + $0x3c] sm:$0xf]
        %v730 = vld [vmem:[#allocation3 + $0x1] sm:$0xff]
        %v731 = vld [vmem:[#allocation3 + $0x9] sm:$0xff]
        %v732 = vld [vmem:[#allocation3 + $0x19] sm:$0xff]
        %v733 = vld [vmem:[#allocation3 + $0x21] sm:$0xff]
        %v734 = vld [vmem:[#allocation3 + $0x31] sm:$0xff]
        %v735 = vld [vmem:[#allocation3 + $0x39] sm:$0xff]
        %v736 = vld [vmem:[#allocation3 + $0x49] sm:$0xff]
        %v737 = vld [vmem:[#allocation3 + $0x51] sm:$0xff]
        %v738 = vld [vmem:[#allocation3 + $0x61] sm:$0xff]
        %v739 = vld [vmem:[#allocation3 + $0x69] sm:$0xff]
        %v740 = vld [vmem:[#allocation3 + $0x79] sm:$0xff]
        %v741 = vld [vmem:[#allocation3 + $0x81] sm:$0xff]
        %v742 = vld [vmem:[#allocation3 + $0x91] sm:$0xff]
        %v743 = vld [vmem:[#allocation3 + $0x99] sm:$0xff]
        %v744 = vld [vmem:[#allocation3 + $0xa9] sm:$0xff]
        %v745 = vld [vmem:[#allocation3 + $0xb1] sm:$0xff]
        %v746 = vld [vmem:[#allocation3 + $0xc1] sm:$0xff]
        %v747 = vld [vmem:[#allocation3 + $0xc9] sm:$0xff]
        %v748 = vld [vmem:[#allocation3 + $0xd9] sm:$0xff]
        %v749 = vld [vmem:[#allocation3 + $0xe1] sm:$0xff]
        %v750 = vld [vmem:[#allocation3 + $0xf1] sm:$0xff]
        %v751 = vld [vmem:[#allocation3 + $0xf9] sm:$0xff]
        %v752 = vld [vmem:[#allocation3 + $0x109] sm:$0xff]
        %v753 = vld [vmem:[#allocation3 + $0x111] sm:$0xff]
        %v754 = vld [vmem:[#allocation3 + $0x121] sm:$0xff]
        %v755 = vld [vmem:[#allocation3 + $0x129] sm:$0xff]
        %v756 = vld [vmem:[#allocation3 + $0x139] sm:$0xff]
        %v757 = vld [vmem:[#allocation3 + $0x141] sm:$0xff]
        %v758 = vld [vmem:[#allocation3 + $0x151] sm:$0xff]
        %v759 = vld [vmem:[#allocation3 + $0x159] sm:$0xff]
        %v760 = vld [vmem:[#allocation3 + $0x169] sm:$0xff]
        %v761 = vld [vmem:[#allocation3 + $0x171] sm:$0xff]
        %v762 = vpack.c.bf16 %v731, %v730
        %v763 = vpack.c.bf16 %v733, %v732
        %v764 = vpack.c.bf16 %v735, %v734
        %v765 = vpack.c.bf16 %v737, %v736
        %v766 = vpack.c.bf16 %v739, %v738
        %v767 = vpack.c.bf16 %v741, %v740
        %v768 = vpack.c.bf16 %v743, %v742
        %v769 = vpack.c.bf16 %v745, %v744
        %v770 = vpack.c.bf16 %v747, %v746
        %v771 = vpack.c.bf16 %v749, %v748
        %v772 = vpack.c.bf16 %v751, %v750
        %v773 = vpack.c.bf16 %v753, %v752
        %v774 = vpack.c.bf16 %v755, %v754
        %v775 = vpack.c.bf16 %v757, %v756
        %v776 = vpack.c.bf16 %v759, %v758
        %v777 = vpack.c.bf16 %v761, %v760
        %v778 = vld [vmem:[#allocation7 + $0x40] sm:$0xf]
        %v779 = vld [vmem:[#allocation7 + $0x44] sm:$0xf]
        %v780 = vld [vmem:[#allocation7 + $0x48] sm:$0xf]
        %v781 = vld [vmem:[#allocation7 + $0x4c] sm:$0xf]
        %v782 = vld [vmem:[#allocation7 + $0x50] sm:$0xf]
        %v783 = vld [vmem:[#allocation7 + $0x54] sm:$0xf]
        %v784 = vld [vmem:[#allocation7 + $0x58] sm:$0xf]
        %v785 = vld [vmem:[#allocation7 + $0x5c] sm:$0xf]
        %v786 = vld [vmem:[#allocation7 + $0x60] sm:$0xf]
        %v787 = vld [vmem:[#allocation7 + $0x64] sm:$0xf]
        %v788 = vld [vmem:[#allocation7 + $0x68] sm:$0xf]
        %v789 = vld [vmem:[#allocation7 + $0x6c] sm:$0xf]
        %v790 = vld [vmem:[#allocation7 + $0x70] sm:$0xf]
        %v791 = vld [vmem:[#allocation7 + $0x74] sm:$0xf]
        %v792 = vld [vmem:[#allocation7 + $0x78] sm:$0xf]
        %v793 = vld [vmem:[#allocation7 + $0x7c] sm:$0xf]
        %v810 = vunpack.c.l.b16 %v778
        %v811 = vunpack.c.l.b16 %v779
        %v812 = vunpack.c.l.b16 %v780
        %v813 = vunpack.c.l.b16 %v781
        %v814 = vunpack.c.l.b16 %v782
        %v815 = vunpack.c.l.b16 %v783
        %v816 = vunpack.c.l.b16 %v784
        %v817 = vunpack.c.l.b16 %v785
        %v818 = vunpack.c.l.b16 %v786
        %v819 = vunpack.c.l.b16 %v787
        %v820 = vunpack.c.l.b16 %v788
        %v821 = vunpack.c.l.b16 %v789
        %v822 = vunpack.c.l.b16 %v790
        %v823 = vunpack.c.l.b16 %v791
        %v824 = vunpack.c.l.b16 %v792
        %v825 = vunpack.c.l.b16 %v793
        %v826 = vpack.c.b16 %v811, %v810
        %v827 = vpack.c.b16 %v813, %v812
        %v828 = vpack.c.b16 %v815, %v814
        %v829 = vpack.c.b16 %v817, %v816
        %v830 = vpack.c.b16 %v819, %v818
        %v831 = vpack.c.b16 %v821, %v820
        %v832 = vpack.c.b16 %v823, %v822
        %v833 = vpack.c.b16 %v825, %v824
        %842 = vmatprep.subr.bf16.mxu0 0
        %843 = vmatpush1.bf16.msra.mxu0 %v833
        %844 = vmatprep.subr.bf16.mxu0 0
        %845 = vmatpush1.bf16.msra.mxu0 %v832
        %846 = vmatprep.subr.bf16.mxu0 0
        %847 = vmatpush1.bf16.msra.mxu0 %v831
        %848 = vmatprep.subr.bf16.mxu0 0
        %849 = vmatpush1.bf16.msra.mxu0 %v830
        %850 = vmatprep.subr.bf16.mxu0 0
        %851 = vmatpush1.bf16.msra.mxu0 %v829
        %852 = vmatprep.subr.bf16.mxu0 0
        %853 = vmatpush1.bf16.msra.mxu0 %v828
        %854 = vmatprep.subr.bf16.mxu0 0
        %855 = vmatpush1.bf16.msra.mxu0 %v827
        %856 = vmatprep.subr.bf16.mxu0 0
        %857 = vmatpush1.bf16.msra.mxu0 %v826
        %858 = vmatprep.subr.bf16.mxu0 0
        %859 = vmatpush2.bf16.msra.mxu0 0
        %860 = vmatprep.subr.bf16.mxu0 0
        %861 = vmatpush2.bf16.msra.mxu0 0
        %862 = vmatprep.subr.bf16.mxu0 0
        %863 = vmatpush2.bf16.msra.mxu0 0
        %864 = vmatprep.subr.bf16.mxu0 0
        %865 = vmatpush2.bf16.msra.mxu0 0
        %866 = vmatprep.subr.bf16.mxu0 0
        %867 = vmatpush2.bf16.msra.mxu0 0
        %868 = vmatprep.subr.bf16.mxu0 0
        %869 = vmatpush2.bf16.msra.mxu0 0
        %870 = vmatprep.subr.bf16.mxu0 0
        %871 = vmatpush2.bf16.msra.mxu0 0
        %872 = vmatprep.subr.bf16.mxu0 0
        %873 = vmatpush2.bf16.msra.mxu0 0
        %874 = vmatprep.mubr.bf16.mxu0 0
        %875 = vmatmul.mubr.bf16.gmra.mxu0 %v762
        %v876 = vpop.f32.mrf.mxu0
        %v877 = vadd.f32 0.0, %v876
        %v878 = vpop.f32.mrf.mxu0
        %v879 = vpop.f32.mrf.mxu0
        %v880 = vadd.f32 0.0, %v879
        %v881 = vpop.f32.mrf.mxu0
        %882 = vmatprep.mubr.bf16.mxu0 0
        %883 = vmatmul.mubr.bf16.gmra.mxu0 %v763
        %v884 = vpop.f32.mrf.mxu0
        %v885 = vadd.f32 0.0, %v884
        %v886 = vpop.f32.mrf.mxu0
        %v887 = vpop.f32.mrf.mxu0
        %v888 = vadd.f32 0.0, %v887
        %v889 = vpop.f32.mrf.mxu0
        %890 = vmatprep.mubr.bf16.mxu0 0
        %891 = vmatmul.mubr.bf16.gmra.mxu0 %v764
        %v892 = vpop.f32.mrf.mxu0
        %v893 = vadd.f32 0.0, %v892
        %v894 = vpop.f32.mrf.mxu0
        %v895 = vpop.f32.mrf.mxu0
        %v896 = vadd.f32 0.0, %v895
        %v897 = vpop.f32.mrf.mxu0
        %898 = vmatprep.mubr.bf16.mxu0 0
        %899 = vmatmul.mubr.bf16.gmra.mxu0 %v765
        %v900 = vpop.f32.mrf.mxu0
        %v901 = vadd.f32 0.0, %v900
        %v902 = vpop.f32.mrf.mxu0
        %v903 = vpop.f32.mrf.mxu0
        %v904 = vadd.f32 0.0, %v903
        %v905 = vpop.f32.mrf.mxu0
        %906 = vmatprep.mubr.bf16.mxu0 0
        %907 = vmatmul.mubr.bf16.gmra.mxu0 %v766
        %v908 = vpop.f32.mrf.mxu0
        %v909 = vadd.f32 0.0, %v908
        %v910 = vpop.f32.mrf.mxu0
        %v911 = vpop.f32.mrf.mxu0
        %v912 = vadd.f32 0.0, %v911
        %v913 = vpop.f32.mrf.mxu0
        %914 = vmatprep.mubr.bf16.mxu0 0
        %915 = vmatmul.mubr.bf16.gmra.mxu0 %v767
        %v916 = vpop.f32.mrf.mxu0
        %v917 = vadd.f32 0.0, %v916
        %v918 = vpop.f32.mrf.mxu0
        %v919 = vpop.f32.mrf.mxu0
        %v920 = vadd.f32 0.0, %v919
        %v921 = vpop.f32.mrf.mxu0
        %922 = vmatprep.mubr.bf16.mxu0 0
        %923 = vmatmul.mubr.bf16.gmra.mxu0 %v768
        %v924 = vpop.f32.mrf.mxu0
        %v925 = vadd.f32 0.0, %v924
        %v926 = vpop.f32.mrf.mxu0
        %v927 = vpop.f32.mrf.mxu0
        %v928 = vadd.f32 0.0, %v927
        %v929 = vpop.f32.mrf.mxu0
        %930 = vmatprep.mubr.bf16.mxu0 0
        %931 = vmatmul.mubr.bf16.gmra.mxu0 %v769
        %v932 = vpop.f32.mrf.mxu0
        %v933 = vadd.f32 0.0, %v932
        %v934 = vpop.f32.mrf.mxu0
        %v935 = vpop.f32.mrf.mxu0
        %v936 = vadd.f32 0.0, %v935
        %v937 = vpop.f32.mrf.mxu0
        %938 = vmatprep.mubr.bf16.mxu0 0
        %939 = vmatmul.mubr.bf16.gmra.mxu0 %v770
        %v940 = vpop.f32.mrf.mxu0
        %v941 = vadd.f32 0.0, %v940
        %v942 = vpop.f32.mrf.mxu0
        %v943 = vpop.f32.mrf.mxu0
        %v944 = vadd.f32 0.0, %v943
        %v945 = vpop.f32.mrf.mxu0
        %946 = vmatprep.mubr.bf16.mxu0 0
        %947 = vmatmul.mubr.bf16.gmra.mxu0 %v771
        %v948 = vpop.f32.mrf.mxu0
        %v949 = vadd.f32 0.0, %v948
        %v950 = vpop.f32.mrf.mxu0
        %v951 = vpop.f32.mrf.mxu0
        %v952 = vadd.f32 0.0, %v951
        %v953 = vpop.f32.mrf.mxu0
        %954 = vmatprep.mubr.bf16.mxu0 0
        %955 = vmatmul.mubr.bf16.gmra.mxu0 %v772
        %v956 = vpop.f32.mrf.mxu0
        %v957 = vadd.f32 0.0, %v956
        %v958 = vpop.f32.mrf.mxu0
        %v959 = vpop.f32.mrf.mxu0
        %v960 = vadd.f32 0.0, %v959
        %v961 = vpop.f32.mrf.mxu0
        %962 = vmatprep.mubr.bf16.mxu0 0
        %963 = vmatmul.mubr.bf16.gmra.mxu0 %v773
        %v964 = vpop.f32.mrf.mxu0
        %v965 = vadd.f32 0.0, %v964
        %v966 = vpop.f32.mrf.mxu0
        %v967 = vpop.f32.mrf.mxu0
        %v968 = vadd.f32 0.0, %v967
        %v969 = vpop.f32.mrf.mxu0
        %970 = vmatprep.mubr.bf16.mxu0 0
        %971 = vmatmul.mubr.bf16.gmra.mxu0 %v774
        %v972 = vpop.f32.mrf.mxu0
        %v973 = vadd.f32 0.0, %v972
        %v974 = vpop.f32.mrf.mxu0
        %v975 = vpop.f32.mrf.mxu0
        %v976 = vadd.f32 0.0, %v975
        %v977 = vpop.f32.mrf.mxu0
        %978 = vmatprep.mubr.bf16.mxu0 0
        %979 = vmatmul.mubr.bf16.gmra.mxu0 %v775
        %v980 = vpop.f32.mrf.mxu0
        %v981 = vadd.f32 0.0, %v980
        %v982 = vpop.f32.mrf.mxu0
        %v983 = vpop.f32.mrf.mxu0
        %v984 = vadd.f32 0.0, %v983
        %v985 = vpop.f32.mrf.mxu0
        %986 = vmatprep.mubr.bf16.mxu0 0
        %987 = vmatmul.mubr.bf16.gmra.mxu0 %v776
        %v988 = vpop.f32.mrf.mxu0
        %v989 = vadd.f32 0.0, %v988
        %v990 = vpop.f32.mrf.mxu0
        %v991 = vpop.f32.mrf.mxu0
        %v992 = vadd.f32 0.0, %v991
        %v993 = vpop.f32.mrf.mxu0
        %994 = vmatprep.mubr.bf16.mxu0 0
        %995 = vmatmul.mubr.bf16.gmra.mxu0 %v777
        %v996 = vpop.f32.mrf.mxu0
        %v997 = vadd.f32 0.0, %v996
        %v998 = vpop.f32.mrf.mxu0
        %v999 = vpop.f32.mrf.mxu0
        %v1000 = vadd.f32 0.0, %v999
        %v1001 = vpop.f32.mrf.mxu0
        %1002 = vdwg.mxu0
        %v1019 = vunpack.c.l.b16 %v714
        %v1020 = vunpack.c.l.b16 %v715
        %v1021 = vunpack.c.l.b16 %v716
        %v1022 = vunpack.c.l.b16 %v717
        %v1023 = vunpack.c.l.b16 %v718
        %v1024 = vunpack.c.l.b16 %v719
        %v1025 = vunpack.c.l.b16 %v720
        %v1026 = vunpack.c.l.b16 %v721
        %v1027 = vunpack.c.l.b16 %v722
        %v1028 = vunpack.c.l.b16 %v723
        %v1029 = vunpack.c.l.b16 %v724
        %v1030 = vunpack.c.l.b16 %v725
        %v1031 = vunpack.c.l.b16 %v726
        %v1032 = vunpack.c.l.b16 %v727
        %v1033 = vunpack.c.l.b16 %v728
        %v1034 = vunpack.c.l.b16 %v729
        %v1035 = vpack.c.b16 %v1020, %v1019
        %v1036 = vpack.c.b16 %v1022, %v1021
        %v1037 = vpack.c.b16 %v1024, %v1023
        %v1038 = vpack.c.b16 %v1026, %v1025
        %v1039 = vpack.c.b16 %v1028, %v1027
        %v1040 = vpack.c.b16 %v1030, %v1029
        %v1041 = vpack.c.b16 %v1032, %v1031
        %v1042 = vpack.c.b16 %v1034, %v1033
        %1051 = vmatprep.subr.bf16.mxu0 0
        %1052 = vmatpush1.bf16.msra.mxu0 %v1042
        %1053 = vmatprep.subr.bf16.mxu0 0
        %1054 = vmatpush1.bf16.msra.mxu0 %v1041
        %1055 = vmatprep.subr.bf16.mxu0 0
        %1056 = vmatpush1.bf16.msra.mxu0 %v1040
        %1057 = vmatprep.subr.bf16.mxu0 0
        %1058 = vmatpush1.bf16.msra.mxu0 %v1039
        %1059 = vmatprep.subr.bf16.mxu0 0
        %1060 = vmatpush1.bf16.msra.mxu0 %v1038
        %1061 = vmatprep.subr.bf16.mxu0 0
        %1062 = vmatpush1.bf16.msra.mxu0 %v1037
        %1063 = vmatprep.subr.bf16.mxu0 0
        %1064 = vmatpush1.bf16.msra.mxu0 %v1036
        %1065 = vmatprep.subr.bf16.mxu0 0
        %1066 = vmatpush1.bf16.msra.mxu0 %v1035
        %1067 = vmatprep.subr.bf16.mxu0 0
        %1068 = vmatpush2.bf16.msra.mxu0 0
        %1069 = vmatprep.subr.bf16.mxu0 0
        %1070 = vmatpush2.bf16.msra.mxu0 0
        %1071 = vmatprep.subr.bf16.mxu0 0
        %1072 = vmatpush2.bf16.msra.mxu0 0
        %1073 = vmatprep.subr.bf16.mxu0 0
        %1074 = vmatpush2.bf16.msra.mxu0 0
        %1075 = vmatprep.subr.bf16.mxu0 0
        %1076 = vmatpush2.bf16.msra.mxu0 0
        %1077 = vmatprep.subr.bf16.mxu0 0
        %1078 = vmatpush2.bf16.msra.mxu0 0
        %1079 = vmatprep.subr.bf16.mxu0 0
        %1080 = vmatpush2.bf16.msra.mxu0 0
        %1081 = vmatprep.subr.bf16.mxu0 0
        %1082 = vmatpush2.bf16.msra.mxu0 0
        %1083 = vmatprep.mubr.bf16.mxu0 0
        %1084 = vmatmul.mubr.bf16.gmra.mxu0 %v698
        %v1085 = vpop.f32.mrf.mxu0
        %v1086 = vadd.f32 %v877, %v1085
        %v1087 = vpop.f32.mrf.mxu0
        %v1088 = vpop.f32.mrf.mxu0
        %v1089 = vadd.f32 %v880, %v1088
        %v1090 = vpop.f32.mrf.mxu0
        %1091 = vmatprep.mubr.bf16.mxu0 0
        %1092 = vmatmul.mubr.bf16.gmra.mxu0 %v699
        %v1093 = vpop.f32.mrf.mxu0
        %v1094 = vadd.f32 %v885, %v1093
        %v1095 = vpop.f32.mrf.mxu0
        %v1096 = vpop.f32.mrf.mxu0
        %v1097 = vadd.f32 %v888, %v1096
        %v1098 = vpop.f32.mrf.mxu0
        %1099 = vmatprep.mubr.bf16.mxu0 0
        %1100 = vmatmul.mubr.bf16.gmra.mxu0 %v700
        %v1101 = vpop.f32.mrf.mxu0
        %v1102 = vadd.f32 %v893, %v1101
        %v1103 = vpop.f32.mrf.mxu0
        %v1104 = vpop.f32.mrf.mxu0
        %v1105 = vadd.f32 %v896, %v1104
        %v1106 = vpop.f32.mrf.mxu0
        %1107 = vmatprep.mubr.bf16.mxu0 0
        %1108 = vmatmul.mubr.bf16.gmra.mxu0 %v701
        %v1109 = vpop.f32.mrf.mxu0
        %v1110 = vadd.f32 %v901, %v1109
        %v1111 = vpop.f32.mrf.mxu0
        %v1112 = vpop.f32.mrf.mxu0
        %v1113 = vadd.f32 %v904, %v1112
        %v1114 = vpop.f32.mrf.mxu0
        %1115 = vmatprep.mubr.bf16.mxu0 0
        %1116 = vmatmul.mubr.bf16.gmra.mxu0 %v702
        %v1117 = vpop.f32.mrf.mxu0
        %v1118 = vadd.f32 %v909, %v1117
        %v1119 = vpop.f32.mrf.mxu0
        %v1120 = vpop.f32.mrf.mxu0
        %v1121 = vadd.f32 %v912, %v1120
        %v1122 = vpop.f32.mrf.mxu0
        %1123 = vmatprep.mubr.bf16.mxu0 0
        %1124 = vmatmul.mubr.bf16.gmra.mxu0 %v703
        %v1125 = vpop.f32.mrf.mxu0
        %v1126 = vadd.f32 %v917, %v1125
        %v1127 = vpop.f32.mrf.mxu0
        %v1128 = vpop.f32.mrf.mxu0
        %v1129 = vadd.f32 %v920, %v1128
        %v1130 = vpop.f32.mrf.mxu0
        %1131 = vmatprep.mubr.bf16.mxu0 0
        %1132 = vmatmul.mubr.bf16.gmra.mxu0 %v704
        %v1133 = vpop.f32.mrf.mxu0
        %v1134 = vadd.f32 %v925, %v1133
        %v1135 = vpop.f32.mrf.mxu0
        %v1136 = vpop.f32.mrf.mxu0
        %v1137 = vadd.f32 %v928, %v1136
        %v1138 = vpop.f32.mrf.mxu0
        %1139 = vmatprep.mubr.bf16.mxu0 0
        %1140 = vmatmul.mubr.bf16.gmra.mxu0 %v705
        %v1141 = vpop.f32.mrf.mxu0
        %v1142 = vadd.f32 %v933, %v1141
        %v1143 = vpop.f32.mrf.mxu0
        %v1144 = vpop.f32.mrf.mxu0
        %v1145 = vadd.f32 %v936, %v1144
        %v1146 = vpop.f32.mrf.mxu0
        %1147 = vmatprep.mubr.bf16.mxu0 0
        %1148 = vmatmul.mubr.bf16.gmra.mxu0 %v706
        %v1149 = vpop.f32.mrf.mxu0
        %v1150 = vadd.f32 %v941, %v1149
        %v1151 = vpop.f32.mrf.mxu0
        %v1152 = vpop.f32.mrf.mxu0
        %v1153 = vadd.f32 %v944, %v1152
        %v1154 = vpop.f32.mrf.mxu0
        %1155 = vmatprep.mubr.bf16.mxu0 0
        %1156 = vmatmul.mubr.bf16.gmra.mxu0 %v707
        %v1157 = vpop.f32.mrf.mxu0
        %v1158 = vadd.f32 %v949, %v1157
        %v1159 = vpop.f32.mrf.mxu0
        %v1160 = vpop.f32.mrf.mxu0
        %v1161 = vadd.f32 %v952, %v1160
        %v1162 = vpop.f32.mrf.mxu0
        %1163 = vmatprep.mubr.bf16.mxu0 0
        %1164 = vmatmul.mubr.bf16.gmra.mxu0 %v708
        %v1165 = vpop.f32.mrf.mxu0
        %v1166 = vadd.f32 %v957, %v1165
        %v1167 = vpop.f32.mrf.mxu0
        %v1168 = vpop.f32.mrf.mxu0
        %v1169 = vadd.f32 %v960, %v1168
        %v1170 = vpop.f32.mrf.mxu0
        %1171 = vmatprep.mubr.bf16.mxu0 0
        %1172 = vmatmul.mubr.bf16.gmra.mxu0 %v709
        %v1173 = vpop.f32.mrf.mxu0
        %v1174 = vadd.f32 %v965, %v1173
        %v1175 = vpop.f32.mrf.mxu0
        %v1176 = vpop.f32.mrf.mxu0
        %v1177 = vadd.f32 %v968, %v1176
        %v1178 = vpop.f32.mrf.mxu0
        %1179 = vmatprep.mubr.bf16.mxu0 0
        %1180 = vmatmul.mubr.bf16.gmra.mxu0 %v710
        %v1181 = vpop.f32.mrf.mxu0
        %v1182 = vadd.f32 %v973, %v1181
        %v1183 = vpop.f32.mrf.mxu0
        %v1184 = vpop.f32.mrf.mxu0
        %v1185 = vadd.f32 %v976, %v1184
        %v1186 = vpop.f32.mrf.mxu0
        %1187 = vmatprep.mubr.bf16.mxu0 0
        %1188 = vmatmul.mubr.bf16.gmra.mxu0 %v711
        %v1189 = vpop.f32.mrf.mxu0
        %v1190 = vadd.f32 %v981, %v1189
        %v1191 = vpop.f32.mrf.mxu0
        %v1192 = vpop.f32.mrf.mxu0
        %v1193 = vadd.f32 %v984, %v1192
        %v1194 = vpop.f32.mrf.mxu0
        %1195 = vmatprep.mubr.bf16.mxu0 0
        %1196 = vmatmul.mubr.bf16.gmra.mxu0 %v712
        %v1197 = vpop.f32.mrf.mxu0
        %v1198 = vadd.f32 %v989, %v1197
        %v1199 = vpop.f32.mrf.mxu0
        %v1200 = vpop.f32.mrf.mxu0
        %v1201 = vadd.f32 %v992, %v1200
        %v1202 = vpop.f32.mrf.mxu0
        %1203 = vmatprep.mubr.bf16.mxu0 0
        %1204 = vmatmul.mubr.bf16.gmra.mxu0 %v713
        %v1205 = vpop.f32.mrf.mxu0
        %v1206 = vadd.f32 %v997, %v1205
        %v1207 = vpop.f32.mrf.mxu0
        %v1208 = vpop.f32.mrf.mxu0
        %v1209 = vadd.f32 %v1000, %v1208
        %v1210 = vpop.f32.mrf.mxu0
        %1211 = vdwg.mxu0
        %v1212 = vld [vmem:[#allocation3 + $0x2] sm:$0xff]
        %v1213 = vld [vmem:[#allocation3 + $0xa] sm:$0xff]
        %v1214 = vld [vmem:[#allocation3 + $0x1a] sm:$0xff]
        %v1215 = vld [vmem:[#allocation3 + $0x22] sm:$0xff]
        %v1216 = vld [vmem:[#allocation3 + $0x32] sm:$0xff]
        %v1217 = vld [vmem:[#allocation3 + $0x3a] sm:$0xff]
        %v1218 = vld [vmem:[#allocation3 + $0x4a] sm:$0xff]
        %v1219 = vld [vmem:[#allocation3 + $0x52] sm:$0xff]
        %v1220 = vld [vmem:[#allocation3 + $0x62] sm:$0xff]
        %v1221 = vld [vmem:[#allocation3 + $0x6a] sm:$0xff]
        %v1222 = vld [vmem:[#allocation3 + $0x7a] sm:$0xff]
        %v1223 = vld [vmem:[#allocation3 + $0x82] sm:$0xff]
        %v1224 = vld [vmem:[#allocation3 + $0x92] sm:$0xff]
        %v1225 = vld [vmem:[#allocation3 + $0x9a] sm:$0xff]
        %v1226 = vld [vmem:[#allocation3 + $0xaa] sm:$0xff]
        %v1227 = vld [vmem:[#allocation3 + $0xb2] sm:$0xff]
        %v1228 = vld [vmem:[#allocation3 + $0xc2] sm:$0xff]
        %v1229 = vld [vmem:[#allocation3 + $0xca] sm:$0xff]
        %v1230 = vld [vmem:[#allocation3 + $0xda] sm:$0xff]
        %v1231 = vld [vmem:[#allocation3 + $0xe2] sm:$0xff]
        %v1232 = vld [vmem:[#allocation3 + $0xf2] sm:$0xff]
        %v1233 = vld [vmem:[#allocation3 + $0xfa] sm:$0xff]
        %v1234 = vld [vmem:[#allocation3 + $0x10a] sm:$0xff]
        %v1235 = vld [vmem:[#allocation3 + $0x112] sm:$0xff]
        %v1236 = vld [vmem:[#allocation3 + $0x122] sm:$0xff]
        %v1237 = vld [vmem:[#allocation3 + $0x12a] sm:$0xff]
        %v1238 = vld [vmem:[#allocation3 + $0x13a] sm:$0xff]
        %v1239 = vld [vmem:[#allocation3 + $0x142] sm:$0xff]
        %v1240 = vld [vmem:[#allocation3 + $0x152] sm:$0xff]
        %v1241 = vld [vmem:[#allocation3 + $0x15a] sm:$0xff]
        %v1242 = vld [vmem:[#allocation3 + $0x16a] sm:$0xff]
        %v1243 = vld [vmem:[#allocation3 + $0x172] sm:$0xff]
        %v1244 = vpack.c.bf16 %v1213, %v1212
        %v1245 = vpack.c.bf16 %v1215, %v1214
        %v1246 = vpack.c.bf16 %v1217, %v1216
        %v1247 = vpack.c.bf16 %v1219, %v1218
        %v1248 = vpack.c.bf16 %v1221, %v1220
        %v1249 = vpack.c.bf16 %v1223, %v1222
        %v1250 = vpack.c.bf16 %v1225, %v1224
        %v1251 = vpack.c.bf16 %v1227, %v1226
        %v1252 = vpack.c.bf16 %v1229, %v1228
        %v1253 = vpack.c.bf16 %v1231, %v1230
        %v1254 = vpack.c.bf16 %v1233, %v1232
        %v1255 = vpack.c.bf16 %v1235, %v1234
        %v1256 = vpack.c.bf16 %v1237, %v1236
        %v1257 = vpack.c.bf16 %v1239, %v1238
        %v1258 = vpack.c.bf16 %v1241, %v1240
        %v1259 = vpack.c.bf16 %v1243, %v1242
        %v1260 = vld [vmem:[#allocation7 + $0x80] sm:$0xf]
        %v1261 = vld [vmem:[#allocation7 + $0x84] sm:$0xf]
        %v1262 = vld [vmem:[#allocation7 + $0x88] sm:$0xf]
        %v1263 = vld [vmem:[#allocation7 + $0x8c] sm:$0xf]
        %v1264 = vld [vmem:[#allocation7 + $0x90] sm:$0xf]
        %v1265 = vld [vmem:[#allocation7 + $0x94] sm:$0xf]
        %v1266 = vld [vmem:[#allocation7 + $0x98] sm:$0xf]
        %v1267 = vld [vmem:[#allocation7 + $0x9c] sm:$0xf]
        %v1268 = vld [vmem:[#allocation7 + $0xa0] sm:$0xf]
        %v1269 = vld [vmem:[#allocation7 + $0xa4] sm:$0xf]
        %v1270 = vld [vmem:[#allocation7 + $0xa8] sm:$0xf]
        %v1271 = vld [vmem:[#allocation7 + $0xac] sm:$0xf]
        %v1272 = vld [vmem:[#allocation7 + $0xb0] sm:$0xf]
        %v1273 = vld [vmem:[#allocation7 + $0xb4] sm:$0xf]
        %v1274 = vld [vmem:[#allocation7 + $0xb8] sm:$0xf]
        %v1275 = vld [vmem:[#allocation7 + $0xbc] sm:$0xf]
        %v1292 = vunpack.c.l.b16 %v1260
        %v1293 = vunpack.c.l.b16 %v1261
        %v1294 = vunpack.c.l.b16 %v1262
        %v1295 = vunpack.c.l.b16 %v1263
        %v1296 = vunpack.c.l.b16 %v1264
        %v1297 = vunpack.c.l.b16 %v1265
        %v1298 = vunpack.c.l.b16 %v1266
        %v1299 = vunpack.c.l.b16 %v1267
        %v1300 = vunpack.c.l.b16 %v1268
        %v1301 = vunpack.c.l.b16 %v1269
        %v1302 = vunpack.c.l.b16 %v1270
        %v1303 = vunpack.c.l.b16 %v1271
        %v1304 = vunpack.c.l.b16 %v1272
        %v1305 = vunpack.c.l.b16 %v1273
        %v1306 = vunpack.c.l.b16 %v1274
        %v1307 = vunpack.c.l.b16 %v1275
        %v1308 = vpack.c.b16 %v1293, %v1292
        %v1309 = vpack.c.b16 %v1295, %v1294
        %v1310 = vpack.c.b16 %v1297, %v1296
        %v1311 = vpack.c.b16 %v1299, %v1298
        %v1312 = vpack.c.b16 %v1301, %v1300
        %v1313 = vpack.c.b16 %v1303, %v1302
        %v1314 = vpack.c.b16 %v1305, %v1304
        %v1315 = vpack.c.b16 %v1307, %v1306
        %1324 = vmatprep.subr.bf16.mxu0 0
        %1325 = vmatpush1.bf16.msra.mxu0 %v1315
        %1326 = vmatprep.subr.bf16.mxu0 0
        %1327 = vmatpush1.bf16.msra.mxu0 %v1314
        %1328 = vmatprep.subr.bf16.mxu0 0
        %1329 = vmatpush1.bf16.msra.mxu0 %v1313
        %1330 = vmatprep.subr.bf16.mxu0 0
        %1331 = vmatpush1.bf16.msra.mxu0 %v1312
        %1332 = vmatprep.subr.bf16.mxu0 0
        %1333 = vmatpush1.bf16.msra.mxu0 %v1311
        %1334 = vmatprep.subr.bf16.mxu0 0
        %1335 = vmatpush1.bf16.msra.mxu0 %v1310
        %1336 = vmatprep.subr.bf16.mxu0 0
        %1337 = vmatpush1.bf16.msra.mxu0 %v1309
        %1338 = vmatprep.subr.bf16.mxu0 0
        %1339 = vmatpush1.bf16.msra.mxu0 %v1308
        %1340 = vmatprep.subr.bf16.mxu0 0
        %1341 = vmatpush2.bf16.msra.mxu0 0
        %1342 = vmatprep.subr.bf16.mxu0 0
        %1343 = vmatpush2.bf16.msra.mxu0 0
        %1344 = vmatprep.subr.bf16.mxu0 0
        %1345 = vmatpush2.bf16.msra.mxu0 0
        %1346 = vmatprep.subr.bf16.mxu0 0
        %1347 = vmatpush2.bf16.msra.mxu0 0
        %1348 = vmatprep.subr.bf16.mxu0 0
        %1349 = vmatpush2.bf16.msra.mxu0 0
        %1350 = vmatprep.subr.bf16.mxu0 0
        %1351 = vmatpush2.bf16.msra.mxu0 0
        %1352 = vmatprep.subr.bf16.mxu0 0
        %1353 = vmatpush2.bf16.msra.mxu0 0
        %1354 = vmatprep.subr.bf16.mxu0 0
        %1355 = vmatpush2.bf16.msra.mxu0 0
        %1356 = vmatprep.mubr.bf16.mxu0 0
        %1357 = vmatmul.mubr.bf16.gmra.mxu0 %v1244
        %v1358 = vpop.f32.mrf.mxu0
        %v1359 = vadd.f32 0.0, %v1358
        %v1360 = vpop.f32.mrf.mxu0
        %v1361 = vpop.f32.mrf.mxu0
        %v1362 = vadd.f32 0.0, %v1361
        %v1363 = vpop.f32.mrf.mxu0
        %1364 = vmatprep.mubr.bf16.mxu0 0
        %1365 = vmatmul.mubr.bf16.gmra.mxu0 %v1245
        %v1366 = vpop.f32.mrf.mxu0
        %v1367 = vadd.f32 0.0, %v1366
        %v1368 = vpop.f32.mrf.mxu0
        %v1369 = vpop.f32.mrf.mxu0
        %v1370 = vadd.f32 0.0, %v1369
        %v1371 = vpop.f32.mrf.mxu0
        %1372 = vmatprep.mubr.bf16.mxu0 0
        %1373 = vmatmul.mubr.bf16.gmra.mxu0 %v1246
        %v1374 = vpop.f32.mrf.mxu0
        %v1375 = vadd.f32 0.0, %v1374
        %v1376 = vpop.f32.mrf.mxu0
        %v1377 = vpop.f32.mrf.mxu0
        %v1378 = vadd.f32 0.0, %v1377
        %v1379 = vpop.f32.mrf.mxu0
        %1380 = vmatprep.mubr.bf16.mxu0 0
        %1381 = vmatmul.mubr.bf16.gmra.mxu0 %v1247
        %v1382 = vpop.f32.mrf.mxu0
        %v1383 = vadd.f32 0.0, %v1382
        %v1384 = vpop.f32.mrf.mxu0
        %v1385 = vpop.f32.mrf.mxu0
        %v1386 = vadd.f32 0.0, %v1385
        %v1387 = vpop.f32.mrf.mxu0
        %1388 = vmatprep.mubr.bf16.mxu0 0
        %1389 = vmatmul.mubr.bf16.gmra.mxu0 %v1248
        %v1390 = vpop.f32.mrf.mxu0
        %v1391 = vadd.f32 0.0, %v1390
        %v1392 = vpop.f32.mrf.mxu0
        %v1393 = vpop.f32.mrf.mxu0
        %v1394 = vadd.f32 0.0, %v1393
        %v1395 = vpop.f32.mrf.mxu0
        %1396 = vmatprep.mubr.bf16.mxu0 0
        %1397 = vmatmul.mubr.bf16.gmra.mxu0 %v1249
        %v1398 = vpop.f32.mrf.mxu0
        %v1399 = vadd.f32 0.0, %v1398
        %v1400 = vpop.f32.mrf.mxu0
        %v1401 = vpop.f32.mrf.mxu0
        %v1402 = vadd.f32 0.0, %v1401
        %v1403 = vpop.f32.mrf.mxu0
        %1404 = vmatprep.mubr.bf16.mxu0 0
        %1405 = vmatmul.mubr.bf16.gmra.mxu0 %v1250
        %v1406 = vpop.f32.mrf.mxu0
        %v1407 = vadd.f32 0.0, %v1406
        %v1408 = vpop.f32.mrf.mxu0
        %v1409 = vpop.f32.mrf.mxu0
        %v1410 = vadd.f32 0.0, %v1409
        %v1411 = vpop.f32.mrf.mxu0
        %1412 = vmatprep.mubr.bf16.mxu0 0
        %1413 = vmatmul.mubr.bf16.gmra.mxu0 %v1251
        %v1414 = vpop.f32.mrf.mxu0
        %v1415 = vadd.f32 0.0, %v1414
        %v1416 = vpop.f32.mrf.mxu0
        %v1417 = vpop.f32.mrf.mxu0
        %v1418 = vadd.f32 0.0, %v1417
        %v1419 = vpop.f32.mrf.mxu0
        %1420 = vmatprep.mubr.bf16.mxu0 0
        %1421 = vmatmul.mubr.bf16.gmra.mxu0 %v1252
        %v1422 = vpop.f32.mrf.mxu0
        %v1423 = vadd.f32 0.0, %v1422
        %v1424 = vpop.f32.mrf.mxu0
        %v1425 = vpop.f32.mrf.mxu0
        %v1426 = vadd.f32 0.0, %v1425
        %v1427 = vpop.f32.mrf.mxu0
        %1428 = vmatprep.mubr.bf16.mxu0 0
        %1429 = vmatmul.mubr.bf16.gmra.mxu0 %v1253
        %v1430 = vpop.f32.mrf.mxu0
        %v1431 = vadd.f32 0.0, %v1430
        %v1432 = vpop.f32.mrf.mxu0
        %v1433 = vpop.f32.mrf.mxu0
        %v1434 = vadd.f32 0.0, %v1433
        %v1435 = vpop.f32.mrf.mxu0
        %1436 = vmatprep.mubr.bf16.mxu0 0
        %1437 = vmatmul.mubr.bf16.gmra.mxu0 %v1254
        %v1438 = vpop.f32.mrf.mxu0
        %v1439 = vadd.f32 0.0, %v1438
        %v1440 = vpop.f32.mrf.mxu0
        %v1441 = vpop.f32.mrf.mxu0
        %v1442 = vadd.f32 0.0, %v1441
        %v1443 = vpop.f32.mrf.mxu0
        %1444 = vmatprep.mubr.bf16.mxu0 0
        %1445 = vmatmul.mubr.bf16.gmra.mxu0 %v1255
        %v1446 = vpop.f32.mrf.mxu0
        %v1447 = vadd.f32 0.0, %v1446
        %v1448 = vpop.f32.mrf.mxu0
        %v1449 = vpop.f32.mrf.mxu0
        %v1450 = vadd.f32 0.0, %v1449
        %v1451 = vpop.f32.mrf.mxu0
        %1452 = vmatprep.mubr.bf16.mxu0 0
        %1453 = vmatmul.mubr.bf16.gmra.mxu0 %v1256
        %v1454 = vpop.f32.mrf.mxu0
        %v1455 = vadd.f32 0.0, %v1454
        %v1456 = vpop.f32.mrf.mxu0
        %v1457 = vpop.f32.mrf.mxu0
        %v1458 = vadd.f32 0.0, %v1457
        %v1459 = vpop.f32.mrf.mxu0
        %1460 = vmatprep.mubr.bf16.mxu0 0
        %1461 = vmatmul.mubr.bf16.gmra.mxu0 %v1257
        %v1462 = vpop.f32.mrf.mxu0
        %v1463 = vadd.f32 0.0, %v1462
        %v1464 = vpop.f32.mrf.mxu0
        %v1465 = vpop.f32.mrf.mxu0
        %v1466 = vadd.f32 0.0, %v1465
        %v1467 = vpop.f32.mrf.mxu0
        %1468 = vmatprep.mubr.bf16.mxu0 0
        %1469 = vmatmul.mubr.bf16.gmra.mxu0 %v1258
        %v1470 = vpop.f32.mrf.mxu0
        %v1471 = vadd.f32 0.0, %v1470
        %v1472 = vpop.f32.mrf.mxu0
        %v1473 = vpop.f32.mrf.mxu0
        %v1474 = vadd.f32 0.0, %v1473
        %v1475 = vpop.f32.mrf.mxu0
        %1476 = vmatprep.mubr.bf16.mxu0 0
        %1477 = vmatmul.mubr.bf16.gmra.mxu0 %v1259
        %v1478 = vpop.f32.mrf.mxu0
        %v1479 = vadd.f32 0.0, %v1478
        %v1480 = vpop.f32.mrf.mxu0
        %v1481 = vpop.f32.mrf.mxu0
        %v1482 = vadd.f32 0.0, %v1481
        %v1483 = vpop.f32.mrf.mxu0
        %1484 = vdwg.mxu0
        %v1485 = vadd.f32 %v1086, %v1359
        %v1486 = vadd.f32 %v1089, %v1362
        %v1487 = vadd.f32 %v1094, %v1367
        %v1488 = vadd.f32 %v1097, %v1370
        %v1489 = vadd.f32 %v1102, %v1375
        %v1490 = vadd.f32 %v1105, %v1378
        %v1491 = vadd.f32 %v1110, %v1383
        %v1492 = vadd.f32 %v1113, %v1386
        %v1493 = vadd.f32 %v1118, %v1391
        %v1494 = vadd.f32 %v1121, %v1394
        %v1495 = vadd.f32 %v1126, %v1399
        %v1496 = vadd.f32 %v1129, %v1402
        %v1497 = vadd.f32 %v1134, %v1407
        %v1498 = vadd.f32 %v1137, %v1410
        %v1499 = vadd.f32 %v1142, %v1415
        %v1500 = vadd.f32 %v1145, %v1418
        %v1501 = vadd.f32 %v1150, %v1423
        %v1502 = vadd.f32 %v1153, %v1426
        %v1503 = vadd.f32 %v1158, %v1431
        %v1504 = vadd.f32 %v1161, %v1434
        %v1505 = vadd.f32 %v1166, %v1439
        %v1506 = vadd.f32 %v1169, %v1442
        %v1507 = vadd.f32 %v1174, %v1447
        %v1508 = vadd.f32 %v1177, %v1450
        %v1509 = vadd.f32 %v1182, %v1455
        %v1510 = vadd.f32 %v1185, %v1458
        %v1511 = vadd.f32 %v1190, %v1463
        %v1512 = vadd.f32 %v1193, %v1466
        %v1513 = vadd.f32 %v1198, %v1471
        %v1514 = vadd.f32 %v1201, %v1474
        %v1515 = vadd.f32 %v1206, %v1479
        %v1516 = vadd.f32 %v1209, %v1482
        %v1517 = vld [vmem:[%s633] sm:$0xff]
        %v1518 = vld [vmem:[%s633 + $0x8] sm:$0xff]
        %v1519 = vld [vmem:[%s633 + $0x18] sm:$0xff]
        %v1520 = vld [vmem:[%s633 + $0x20] sm:$0xff]
        %v1521 = vld [vmem:[%s633 + $0x30] sm:$0xff]
        %v1522 = vld [vmem:[%s633 + $0x38] sm:$0xff]
        %v1523 = vld [vmem:[%s633 + $0x48] sm:$0xff]
        %v1524 = vld [vmem:[%s633 + $0x50] sm:$0xff]
        %v1525 = vld [vmem:[%s633 + $0x60] sm:$0xff]
        %v1526 = vld [vmem:[%s633 + $0x68] sm:$0xff]
        %v1527 = vld [vmem:[%s633 + $0x78] sm:$0xff]
        %v1528 = vld [vmem:[%s633 + $0x80] sm:$0xff]
        %v1529 = vld [vmem:[%s633 + $0x90] sm:$0xff]
        %v1530 = vld [vmem:[%s633 + $0x98] sm:$0xff]
        %v1531 = vld [vmem:[%s633 + $0xa8] sm:$0xff]
        %v1532 = vld [vmem:[%s633 + $0xb0] sm:$0xff]
        %v1533 = vld [vmem:[%s633 + $0xc0] sm:$0xff]
        %v1534 = vld [vmem:[%s633 + $0xc8] sm:$0xff]
        %v1535 = vld [vmem:[%s633 + $0xd8] sm:$0xff]
        %v1536 = vld [vmem:[%s633 + $0xe0] sm:$0xff]
        %v1537 = vld [vmem:[%s633 + $0xf0] sm:$0xff]
        %v1538 = vld [vmem:[%s633 + $0xf8] sm:$0xff]
        %v1539 = vld [vmem:[%s633 + $0x108] sm:$0xff]
        %v1540 = vld [vmem:[%s633 + $0x110] sm:$0xff]
        %v1541 = vld [vmem:[%s633 + $0x120] sm:$0xff]
        %v1542 = vld [vmem:[%s633 + $0x128] sm:$0xff]
        %v1543 = vld [vmem:[%s633 + $0x138] sm:$0xff]
        %v1544 = vld [vmem:[%s633 + $0x140] sm:$0xff]
        %v1545 = vld [vmem:[%s633 + $0x150] sm:$0xff]
        %v1546 = vld [vmem:[%s633 + $0x158] sm:$0xff]
        %v1547 = vld [vmem:[%s633 + $0x168] sm:$0xff]
        %v1548 = vld [vmem:[%s633 + $0x170] sm:$0xff]
        %v1549 = vpack.c.bf16 %v1518, %v1517
        %v1550 = vpack.c.bf16 %v1520, %v1519
        %v1551 = vpack.c.bf16 %v1522, %v1521
        %v1552 = vpack.c.bf16 %v1524, %v1523
        %v1553 = vpack.c.bf16 %v1526, %v1525
        %v1554 = vpack.c.bf16 %v1528, %v1527
        %v1555 = vpack.c.bf16 %v1530, %v1529
        %v1556 = vpack.c.bf16 %v1532, %v1531
        %v1557 = vpack.c.bf16 %v1534, %v1533
        %v1558 = vpack.c.bf16 %v1536, %v1535
        %v1559 = vpack.c.bf16 %v1538, %v1537
        %v1560 = vpack.c.bf16 %v1540, %v1539
        %v1561 = vpack.c.bf16 %v1542, %v1541
        %v1562 = vpack.c.bf16 %v1544, %v1543
        %v1563 = vpack.c.bf16 %v1546, %v1545
        %v1564 = vpack.c.bf16 %v1548, %v1547
        %v1565 = vld [vmem:[#allocation7 + $0xc0] sm:$0xf]
        %v1566 = vld [vmem:[#allocation7 + $0xc4] sm:$0xf]
        %v1567 = vld [vmem:[#allocation7 + $0xc8] sm:$0xf]
        %v1568 = vld [vmem:[#allocation7 + $0xcc] sm:$0xf]
        %v1569 = vld [vmem:[#allocation7 + $0xd0] sm:$0xf]
        %v1570 = vld [vmem:[#allocation7 + $0xd4] sm:$0xf]
        %v1571 = vld [vmem:[#allocation7 + $0xd8] sm:$0xf]
        %v1572 = vld [vmem:[#allocation7 + $0xdc] sm:$0xf]
        %v1573 = vld [vmem:[#allocation7 + $0xe0] sm:$0xf]
        %v1574 = vld [vmem:[#allocation7 + $0xe4] sm:$0xf]
        %v1575 = vld [vmem:[#allocation7 + $0xe8] sm:$0xf]
        %v1576 = vld [vmem:[#allocation7 + $0xec] sm:$0xf]
        %v1577 = vld [vmem:[#allocation7 + $0xf0] sm:$0xf]
        %v1578 = vld [vmem:[#allocation7 + $0xf4] sm:$0xf]
        %v1579 = vld [vmem:[#allocation7 + $0xf8] sm:$0xf]
        %v1580 = vld [vmem:[#allocation7 + $0xfc] sm:$0xf]
        %v1597 = vunpack.c.l.b16 %v1565
        %v1598 = vunpack.c.l.b16 %v1566
        %v1599 = vunpack.c.l.b16 %v1567
        %v1600 = vunpack.c.l.b16 %v1568
        %v1601 = vunpack.c.l.b16 %v1569
        %v1602 = vunpack.c.l.b16 %v1570
        %v1603 = vunpack.c.l.b16 %v1571
        %v1604 = vunpack.c.l.b16 %v1572
        %v1605 = vunpack.c.l.b16 %v1573
        %v1606 = vunpack.c.l.b16 %v1574
        %v1607 = vunpack.c.l.b16 %v1575
        %v1608 = vunpack.c.l.b16 %v1576
        %v1609 = vunpack.c.l.b16 %v1577
        %v1610 = vunpack.c.l.b16 %v1578
        %v1611 = vunpack.c.l.b16 %v1579
        %v1612 = vunpack.c.l.b16 %v1580
        %v1613 = vpack.c.b16 %v1598, %v1597
        %v1614 = vpack.c.b16 %v1600, %v1599
        %v1615 = vpack.c.b16 %v1602, %v1601
        %v1616 = vpack.c.b16 %v1604, %v1603
        %v1617 = vpack.c.b16 %v1606, %v1605
        %v1618 = vpack.c.b16 %v1608, %v1607
        %v1619 = vpack.c.b16 %v1610, %v1609
        %v1620 = vpack.c.b16 %v1612, %v1611
        %1629 = vmatprep.subr.bf16.mxu0 0
        %1630 = vmatpush1.bf16.msra.mxu0 %v1620
        %1631 = vmatprep.subr.bf16.mxu0 0
        %1632 = vmatpush1.bf16.msra.mxu0 %v1619
        %1633 = vmatprep.subr.bf16.mxu0 0
        %1634 = vmatpush1.bf16.msra.mxu0 %v1618
        %1635 = vmatprep.subr.bf16.mxu0 0
        %1636 = vmatpush1.bf16.msra.mxu0 %v1617
        %1637 = vmatprep.subr.bf16.mxu0 0
        %1638 = vmatpush1.bf16.msra.mxu0 %v1616
        %1639 = vmatprep.subr.bf16.mxu0 0
        %1640 = vmatpush1.bf16.msra.mxu0 %v1615
        %1641 = vmatprep.subr.bf16.mxu0 0
        %1642 = vmatpush1.bf16.msra.mxu0 %v1614
        %1643 = vmatprep.subr.bf16.mxu0 0
        %1644 = vmatpush1.bf16.msra.mxu0 %v1613
        %1645 = vmatprep.subr.bf16.mxu0 0
        %1646 = vmatpush2.bf16.msra.mxu0 0
        %1647 = vmatprep.subr.bf16.mxu0 0
        %1648 = vmatpush2.bf16.msra.mxu0 0
        %1649 = vmatprep.subr.bf16.mxu0 0
        %1650 = vmatpush2.bf16.msra.mxu0 0
        %1651 = vmatprep.subr.bf16.mxu0 0
        %1652 = vmatpush2.bf16.msra.mxu0 0
        %1653 = vmatprep.subr.bf16.mxu0 0
        %1654 = vmatpush2.bf16.msra.mxu0 0
        %1655 = vmatprep.subr.bf16.mxu0 0
        %1656 = vmatpush2.bf16.msra.mxu0 0
        %1657 = vmatprep.subr.bf16.mxu0 0
        %1658 = vmatpush2.bf16.msra.mxu0 0
        %1659 = vmatprep.subr.bf16.mxu0 0
        %1660 = vmatpush2.bf16.msra.mxu0 0
        %1661 = vmatprep.mubr.bf16.mxu0 0
        %1662 = vmatmul.mubr.bf16.gmra.mxu0 %v1549
        %v1663 = vpop.f32.mrf.mxu0
        %v1664 = vadd.f32 0.0, %v1663
        %v1665 = vpop.f32.mrf.mxu0
        %v1666 = vpop.f32.mrf.mxu0
        %v1667 = vadd.f32 0.0, %v1666
        %v1668 = vpop.f32.mrf.mxu0
        %1669 = vmatprep.mubr.bf16.mxu0 0
        %1670 = vmatmul.mubr.bf16.gmra.mxu0 %v1550
        %v1671 = vpop.f32.mrf.mxu0
        %v1672 = vadd.f32 0.0, %v1671
        %v1673 = vpop.f32.mrf.mxu0
        %v1674 = vpop.f32.mrf.mxu0
        %v1675 = vadd.f32 0.0, %v1674
        %v1676 = vpop.f32.mrf.mxu0
        %1677 = vmatprep.mubr.bf16.mxu0 0
        %1678 = vmatmul.mubr.bf16.gmra.mxu0 %v1551
        %v1679 = vpop.f32.mrf.mxu0
        %v1680 = vadd.f32 0.0, %v1679
        %v1681 = vpop.f32.mrf.mxu0
        %v1682 = vpop.f32.mrf.mxu0
        %v1683 = vadd.f32 0.0, %v1682
        %v1684 = vpop.f32.mrf.mxu0
        %1685 = vmatprep.mubr.bf16.mxu0 0
        %1686 = vmatmul.mubr.bf16.gmra.mxu0 %v1552
        %v1687 = vpop.f32.mrf.mxu0
        %v1688 = vadd.f32 0.0, %v1687
        %v1689 = vpop.f32.mrf.mxu0
        %v1690 = vpop.f32.mrf.mxu0
        %v1691 = vadd.f32 0.0, %v1690
        %v1692 = vpop.f32.mrf.mxu0
        %1693 = vmatprep.mubr.bf16.mxu0 0
        %1694 = vmatmul.mubr.bf16.gmra.mxu0 %v1553
        %v1695 = vpop.f32.mrf.mxu0
        %v1696 = vadd.f32 0.0, %v1695
        %v1697 = vpop.f32.mrf.mxu0
        %v1698 = vpop.f32.mrf.mxu0
        %v1699 = vadd.f32 0.0, %v1698
        %v1700 = vpop.f32.mrf.mxu0
        %1701 = vmatprep.mubr.bf16.mxu0 0
        %1702 = vmatmul.mubr.bf16.gmra.mxu0 %v1554
        %v1703 = vpop.f32.mrf.mxu0
        %v1704 = vadd.f32 0.0, %v1703
        %v1705 = vpop.f32.mrf.mxu0
        %v1706 = vpop.f32.mrf.mxu0
        %v1707 = vadd.f32 0.0, %v1706
        %v1708 = vpop.f32.mrf.mxu0
        %1709 = vmatprep.mubr.bf16.mxu0 0
        %1710 = vmatmul.mubr.bf16.gmra.mxu0 %v1555
        %v1711 = vpop.f32.mrf.mxu0
        %v1712 = vadd.f32 0.0, %v1711
        %v1713 = vpop.f32.mrf.mxu0
        %v1714 = vpop.f32.mrf.mxu0
        %v1715 = vadd.f32 0.0, %v1714
        %v1716 = vpop.f32.mrf.mxu0
        %1717 = vmatprep.mubr.bf16.mxu0 0
        %1718 = vmatmul.mubr.bf16.gmra.mxu0 %v1556
        %v1719 = vpop.f32.mrf.mxu0
        %v1720 = vadd.f32 0.0, %v1719
        %v1721 = vpop.f32.mrf.mxu0
        %v1722 = vpop.f32.mrf.mxu0
        %v1723 = vadd.f32 0.0, %v1722
        %v1724 = vpop.f32.mrf.mxu0
        %1725 = vmatprep.mubr.bf16.mxu0 0
        %1726 = vmatmul.mubr.bf16.gmra.mxu0 %v1557
        %v1727 = vpop.f32.mrf.mxu0
        %v1728 = vadd.f32 0.0, %v1727
        %v1729 = vpop.f32.mrf.mxu0
        %v1730 = vpop.f32.mrf.mxu0
        %v1731 = vadd.f32 0.0, %v1730
        %v1732 = vpop.f32.mrf.mxu0
        %1733 = vmatprep.mubr.bf16.mxu0 0
        %1734 = vmatmul.mubr.bf16.gmra.mxu0 %v1558
        %v1735 = vpop.f32.mrf.mxu0
        %v1736 = vadd.f32 0.0, %v1735
        %v1737 = vpop.f32.mrf.mxu0
        %v1738 = vpop.f32.mrf.mxu0
        %v1739 = vadd.f32 0.0, %v1738
        %v1740 = vpop.f32.mrf.mxu0
        %1741 = vmatprep.mubr.bf16.mxu0 0
        %1742 = vmatmul.mubr.bf16.gmra.mxu0 %v1559
        %v1743 = vpop.f32.mrf.mxu0
        %v1744 = vadd.f32 0.0, %v1743
        %v1745 = vpop.f32.mrf.mxu0
        %v1746 = vpop.f32.mrf.mxu0
        %v1747 = vadd.f32 0.0, %v1746
        %v1748 = vpop.f32.mrf.mxu0
        %1749 = vmatprep.mubr.bf16.mxu0 0
        %1750 = vmatmul.mubr.bf16.gmra.mxu0 %v1560
        %v1751 = vpop.f32.mrf.mxu0
        %v1752 = vadd.f32 0.0, %v1751
        %v1753 = vpop.f32.mrf.mxu0
        %v1754 = vpop.f32.mrf.mxu0
        %v1755 = vadd.f32 0.0, %v1754
        %v1756 = vpop.f32.mrf.mxu0
        %1757 = vmatprep.mubr.bf16.mxu0 0
        %1758 = vmatmul.mubr.bf16.gmra.mxu0 %v1561
        %v1759 = vpop.f32.mrf.mxu0
        %v1760 = vadd.f32 0.0, %v1759
        %v1761 = vpop.f32.mrf.mxu0
        %v1762 = vpop.f32.mrf.mxu0
        %v1763 = vadd.f32 0.0, %v1762
        %v1764 = vpop.f32.mrf.mxu0
        %1765 = vmatprep.mubr.bf16.mxu0 0
        %1766 = vmatmul.mubr.bf16.gmra.mxu0 %v1562
        %v1767 = vpop.f32.mrf.mxu0
        %v1768 = vadd.f32 0.0, %v1767
        %v1769 = vpop.f32.mrf.mxu0
        %v1770 = vpop.f32.mrf.mxu0
        %v1771 = vadd.f32 0.0, %v1770
        %v1772 = vpop.f32.mrf.mxu0
        %1773 = vmatprep.mubr.bf16.mxu0 0
        %1774 = vmatmul.mubr.bf16.gmra.mxu0 %v1563
        %v1775 = vpop.f32.mrf.mxu0
        %v1776 = vadd.f32 0.0, %v1775
        %v1777 = vpop.f32.mrf.mxu0
        %v1778 = vpop.f32.mrf.mxu0
        %v1779 = vadd.f32 0.0, %v1778
        %v1780 = vpop.f32.mrf.mxu0
        %1781 = vmatprep.mubr.bf16.mxu0 0
        %1782 = vmatmul.mubr.bf16.gmra.mxu0 %v1564
        %v1783 = vpop.f32.mrf.mxu0
        %v1784 = vadd.f32 0.0, %v1783
        %v1785 = vpop.f32.mrf.mxu0
        %v1786 = vpop.f32.mrf.mxu0
        %v1787 = vadd.f32 0.0, %v1786
        %v1788 = vpop.f32.mrf.mxu0
        %1789 = vdwg.mxu0
        %v1790 = vadd.f32 %v1485, %v1664
        %v1791 = vadd.f32 %v1486, %v1667
        %v1792 = vadd.f32 %v1487, %v1672
        %v1793 = vadd.f32 %v1488, %v1675
        %v1794 = vadd.f32 %v1489, %v1680
        %v1795 = vadd.f32 %v1490, %v1683
        %v1796 = vadd.f32 %v1491, %v1688
        %v1797 = vadd.f32 %v1492, %v1691
        %v1798 = vadd.f32 %v1493, %v1696
        %v1799 = vadd.f32 %v1494, %v1699
        %v1800 = vadd.f32 %v1495, %v1704
        %v1801 = vadd.f32 %v1496, %v1707
        %v1802 = vadd.f32 %v1497, %v1712
        %v1803 = vadd.f32 %v1498, %v1715
        %v1804 = vadd.f32 %v1499, %v1720
        %v1805 = vadd.f32 %v1500, %v1723
        %v1806 = vadd.f32 %v1501, %v1728
        %v1807 = vadd.f32 %v1502, %v1731
        %v1808 = vadd.f32 %v1503, %v1736
        %v1809 = vadd.f32 %v1504, %v1739
        %v1810 = vadd.f32 %v1505, %v1744
        %v1811 = vadd.f32 %v1506, %v1747
        %v1812 = vadd.f32 %v1507, %v1752
        %v1813 = vadd.f32 %v1508, %v1755
        %v1814 = vadd.f32 %v1509, %v1760
        %v1815 = vadd.f32 %v1510, %v1763
        %v1816 = vadd.f32 %v1511, %v1768
        %v1817 = vadd.f32 %v1512, %v1771
        %v1818 = vadd.f32 %v1513, %v1776
        %v1819 = vadd.f32 %v1514, %v1779
        %v1820 = vadd.f32 %v1515, %v1784
        %v1821 = vadd.f32 %v1516, %v1787
        %v1822 = vld [vmem:[%s633 + $0x1] sm:$0xff]
        %v1823 = vld [vmem:[%s633 + $0x9] sm:$0xff]
        %v1824 = vld [vmem:[%s633 + $0x19] sm:$0xff]
        %v1825 = vld [vmem:[%s633 + $0x21] sm:$0xff]
        %v1826 = vld [vmem:[%s633 + $0x31] sm:$0xff]
        %v1827 = vld [vmem:[%s633 + $0x39] sm:$0xff]
        %v1828 = vld [vmem:[%s633 + $0x49] sm:$0xff]
        %v1829 = vld [vmem:[%s633 + $0x51] sm:$0xff]
        %v1830 = vld [vmem:[%s633 + $0x61] sm:$0xff]
        %v1831 = vld [vmem:[%s633 + $0x69] sm:$0xff]
        %v1832 = vld [vmem:[%s633 + $0x79] sm:$0xff]
        %v1833 = vld [vmem:[%s633 + $0x81] sm:$0xff]
        %v1834 = vld [vmem:[%s633 + $0x91] sm:$0xff]
        %v1835 = vld [vmem:[%s633 + $0x99] sm:$0xff]
        %v1836 = vld [vmem:[%s633 + $0xa9] sm:$0xff]
        %v1837 = vld [vmem:[%s633 + $0xb1] sm:$0xff]
        %v1838 = vld [vmem:[%s633 + $0xc1] sm:$0xff]
        %v1839 = vld [vmem:[%s633 + $0xc9] sm:$0xff]
        %v1840 = vld [vmem:[%s633 + $0xd9] sm:$0xff]
        %v1841 = vld [vmem:[%s633 + $0xe1] sm:$0xff]
        %v1842 = vld [vmem:[%s633 + $0xf1] sm:$0xff]
        %v1843 = vld [vmem:[%s633 + $0xf9] sm:$0xff]
        %v1844 = vld [vmem:[%s633 + $0x109] sm:$0xff]
        %v1845 = vld [vmem:[%s633 + $0x111] sm:$0xff]
        %v1846 = vld [vmem:[%s633 + $0x121] sm:$0xff]
        %v1847 = vld [vmem:[%s633 + $0x129] sm:$0xff]
        %v1848 = vld [vmem:[%s633 + $0x139] sm:$0xff]
        %v1849 = vld [vmem:[%s633 + $0x141] sm:$0xff]
        %v1850 = vld [vmem:[%s633 + $0x151] sm:$0xff]
        %v1851 = vld [vmem:[%s633 + $0x159] sm:$0xff]
        %v1852 = vld [vmem:[%s633 + $0x169] sm:$0xff]
        %v1853 = vld [vmem:[%s633 + $0x171] sm:$0xff]
        %v1854 = vpack.c.bf16 %v1823, %v1822
        %v1855 = vpack.c.bf16 %v1825, %v1824
        %v1856 = vpack.c.bf16 %v1827, %v1826
        %v1857 = vpack.c.bf16 %v1829, %v1828
        %v1858 = vpack.c.bf16 %v1831, %v1830
        %v1859 = vpack.c.bf16 %v1833, %v1832
        %v1860 = vpack.c.bf16 %v1835, %v1834
        %v1861 = vpack.c.bf16 %v1837, %v1836
        %v1862 = vpack.c.bf16 %v1839, %v1838
        %v1863 = vpack.c.bf16 %v1841, %v1840
        %v1864 = vpack.c.bf16 %v1843, %v1842
        %v1865 = vpack.c.bf16 %v1845, %v1844
        %v1866 = vpack.c.bf16 %v1847, %v1846
        %v1867 = vpack.c.bf16 %v1849, %v1848
        %v1868 = vpack.c.bf16 %v1851, %v1850
        %v1869 = vpack.c.bf16 %v1853, %v1852
        %v1870 = vld [vmem:[#allocation7 + $0x100] sm:$0xf]
        %v1871 = vld [vmem:[#allocation7 + $0x104] sm:$0xf]
        %v1872 = vld [vmem:[#allocation7 + $0x108] sm:$0xf]
        %v1873 = vld [vmem:[#allocation7 + $0x10c] sm:$0xf]
        %v1874 = vld [vmem:[#allocation7 + $0x110] sm:$0xf]
        %v1875 = vld [vmem:[#allocation7 + $0x114] sm:$0xf]
        %v1876 = vld [vmem:[#allocation7 + $0x118] sm:$0xf]
        %v1877 = vld [vmem:[#allocation7 + $0x11c] sm:$0xf]
        %v1878 = vld [vmem:[#allocation7 + $0x120] sm:$0xf]
        %v1879 = vld [vmem:[#allocation7 + $0x124] sm:$0xf]
        %v1880 = vld [vmem:[#allocation7 + $0x128] sm:$0xf]
        %v1881 = vld [vmem:[#allocation7 + $0x12c] sm:$0xf]
        %v1882 = vld [vmem:[#allocation7 + $0x130] sm:$0xf]
        %v1883 = vld [vmem:[#allocation7 + $0x134] sm:$0xf]
        %v1884 = vld [vmem:[#allocation7 + $0x138] sm:$0xf]
        %v1885 = vld [vmem:[#allocation7 + $0x13c] sm:$0xf]
        %v1902 = vunpack.c.l.b16 %v1870
        %v1903 = vunpack.c.l.b16 %v1871
        %v1904 = vunpack.c.l.b16 %v1872
        %v1905 = vunpack.c.l.b16 %v1873
        %v1906 = vunpack.c.l.b16 %v1874
        %v1907 = vunpack.c.l.b16 %v1875
        %v1908 = vunpack.c.l.b16 %v1876
        %v1909 = vunpack.c.l.b16 %v1877
        %v1910 = vunpack.c.l.b16 %v1878
        %v1911 = vunpack.c.l.b16 %v1879
        %v1912 = vunpack.c.l.b16 %v1880
        %v1913 = vunpack.c.l.b16 %v1881
        %v1914 = vunpack.c.l.b16 %v1882
        %v1915 = vunpack.c.l.b16 %v1883
        %v1916 = vunpack.c.l.b16 %v1884
        %v1917 = vunpack.c.l.b16 %v1885
        %v1918 = vpack.c.b16 %v1903, %v1902
        %v1919 = vpack.c.b16 %v1905, %v1904
        %v1920 = vpack.c.b16 %v1907, %v1906
        %v1921 = vpack.c.b16 %v1909, %v1908
        %v1922 = vpack.c.b16 %v1911, %v1910
        %v1923 = vpack.c.b16 %v1913, %v1912
        %v1924 = vpack.c.b16 %v1915, %v1914
        %v1925 = vpack.c.b16 %v1917, %v1916
        %1934 = vmatprep.subr.bf16.mxu0 0
        %1935 = vmatpush1.bf16.msra.mxu0 %v1925
        %1936 = vmatprep.subr.bf16.mxu0 0
        %1937 = vmatpush1.bf16.msra.mxu0 %v1924
        %1938 = vmatprep.subr.bf16.mxu0 0
        %1939 = vmatpush1.bf16.msra.mxu0 %v1923
        %1940 = vmatprep.subr.bf16.mxu0 0
        %1941 = vmatpush1.bf16.msra.mxu0 %v1922
        %1942 = vmatprep.subr.bf16.mxu0 0
        %1943 = vmatpush1.bf16.msra.mxu0 %v1921
        %1944 = vmatprep.subr.bf16.mxu0 0
        %1945 = vmatpush1.bf16.msra.mxu0 %v1920
        %1946 = vmatprep.subr.bf16.mxu0 0
        %1947 = vmatpush1.bf16.msra.mxu0 %v1919
        %1948 = vmatprep.subr.bf16.mxu0 0
        %1949 = vmatpush1.bf16.msra.mxu0 %v1918
        %1950 = vmatprep.subr.bf16.mxu0 0
        %1951 = vmatpush2.bf16.msra.mxu0 0
        %1952 = vmatprep.subr.bf16.mxu0 0
        %1953 = vmatpush2.bf16.msra.mxu0 0
        %1954 = vmatprep.subr.bf16.mxu0 0
        %1955 = vmatpush2.bf16.msra.mxu0 0
        %1956 = vmatprep.subr.bf16.mxu0 0
        %1957 = vmatpush2.bf16.msra.mxu0 0
        %1958 = vmatprep.subr.bf16.mxu0 0
        %1959 = vmatpush2.bf16.msra.mxu0 0
        %1960 = vmatprep.subr.bf16.mxu0 0
        %1961 = vmatpush2.bf16.msra.mxu0 0
        %1962 = vmatprep.subr.bf16.mxu0 0
        %1963 = vmatpush2.bf16.msra.mxu0 0
        %1964 = vmatprep.subr.bf16.mxu0 0
        %1965 = vmatpush2.bf16.msra.mxu0 0
        %1966 = vmatprep.mubr.bf16.mxu0 0
        %1967 = vmatmul.mubr.bf16.gmra.mxu0 %v1854
        %v1968 = vpop.f32.mrf.mxu0
        %v1969 = vadd.f32 0.0, %v1968
        %v1970 = vpop.f32.mrf.mxu0
        %v1971 = vpop.f32.mrf.mxu0
        %v1972 = vadd.f32 0.0, %v1971
        %v1973 = vpop.f32.mrf.mxu0
        %1974 = vmatprep.mubr.bf16.mxu0 0
        %1975 = vmatmul.mubr.bf16.gmra.mxu0 %v1855
        %v1976 = vpop.f32.mrf.mxu0
        %v1977 = vadd.f32 0.0, %v1976
        %v1978 = vpop.f32.mrf.mxu0
        %v1979 = vpop.f32.mrf.mxu0
        %v1980 = vadd.f32 0.0, %v1979
        %v1981 = vpop.f32.mrf.mxu0
        %1982 = vmatprep.mubr.bf16.mxu0 0
        %1983 = vmatmul.mubr.bf16.gmra.mxu0 %v1856
        %v1984 = vpop.f32.mrf.mxu0
        %v1985 = vadd.f32 0.0, %v1984
        %v1986 = vpop.f32.mrf.mxu0
        %v1987 = vpop.f32.mrf.mxu0
        %v1988 = vadd.f32 0.0, %v1987
        %v1989 = vpop.f32.mrf.mxu0
        %1990 = vmatprep.mubr.bf16.mxu0 0
        %1991 = vmatmul.mubr.bf16.gmra.mxu0 %v1857
        %v1992 = vpop.f32.mrf.mxu0
        %v1993 = vadd.f32 0.0, %v1992
        %v1994 = vpop.f32.mrf.mxu0
        %v1995 = vpop.f32.mrf.mxu0
        %v1996 = vadd.f32 0.0, %v1995
        %v1997 = vpop.f32.mrf.mxu0
        %1998 = vmatprep.mubr.bf16.mxu0 0
        %1999 = vmatmul.mubr.bf16.gmra.mxu0 %v1858
        %v2000 = vpop.f32.mrf.mxu0
        %v2001 = vadd.f32 0.0, %v2000
        %v2002 = vpop.f32.mrf.mxu0
        %v2003 = vpop.f32.mrf.mxu0
        %v2004 = vadd.f32 0.0, %v2003
        %v2005 = vpop.f32.mrf.mxu0
        %2006 = vmatprep.mubr.bf16.mxu0 0
        %2007 = vmatmul.mubr.bf16.gmra.mxu0 %v1859
        %v2008 = vpop.f32.mrf.mxu0
        %v2009 = vadd.f32 0.0, %v2008
        %v2010 = vpop.f32.mrf.mxu0
        %v2011 = vpop.f32.mrf.mxu0
        %v2012 = vadd.f32 0.0, %v2011
        %v2013 = vpop.f32.mrf.mxu0
        %2014 = vmatprep.mubr.bf16.mxu0 0
        %2015 = vmatmul.mubr.bf16.gmra.mxu0 %v1860
        %v2016 = vpop.f32.mrf.mxu0
        %v2017 = vadd.f32 0.0, %v2016
        %v2018 = vpop.f32.mrf.mxu0
        %v2019 = vpop.f32.mrf.mxu0
        %v2020 = vadd.f32 0.0, %v2019
        %v2021 = vpop.f32.mrf.mxu0
        %2022 = vmatprep.mubr.bf16.mxu0 0
        %2023 = vmatmul.mubr.bf16.gmra.mxu0 %v1861
        %v2024 = vpop.f32.mrf.mxu0
        %v2025 = vadd.f32 0.0, %v2024
        %v2026 = vpop.f32.mrf.mxu0
        %v2027 = vpop.f32.mrf.mxu0
        %v2028 = vadd.f32 0.0, %v2027
        %v2029 = vpop.f32.mrf.mxu0
        %2030 = vmatprep.mubr.bf16.mxu0 0
        %2031 = vmatmul.mubr.bf16.gmra.mxu0 %v1862
        %v2032 = vpop.f32.mrf.mxu0
        %v2033 = vadd.f32 0.0, %v2032
        %v2034 = vpop.f32.mrf.mxu0
        %v2035 = vpop.f32.mrf.mxu0
        %v2036 = vadd.f32 0.0, %v2035
        %v2037 = vpop.f32.mrf.mxu0
        %2038 = vmatprep.mubr.bf16.mxu0 0
        %2039 = vmatmul.mubr.bf16.gmra.mxu0 %v1863
        %v2040 = vpop.f32.mrf.mxu0
        %v2041 = vadd.f32 0.0, %v2040
        %v2042 = vpop.f32.mrf.mxu0
        %v2043 = vpop.f32.mrf.mxu0
        %v2044 = vadd.f32 0.0, %v2043
        %v2045 = vpop.f32.mrf.mxu0
        %2046 = vmatprep.mubr.bf16.mxu0 0
        %2047 = vmatmul.mubr.bf16.gmra.mxu0 %v1864
        %v2048 = vpop.f32.mrf.mxu0
        %v2049 = vadd.f32 0.0, %v2048
        %v2050 = vpop.f32.mrf.mxu0
        %v2051 = vpop.f32.mrf.mxu0
        %v2052 = vadd.f32 0.0, %v2051
        %v2053 = vpop.f32.mrf.mxu0
        %2054 = vmatprep.mubr.bf16.mxu0 0
        %2055 = vmatmul.mubr.bf16.gmra.mxu0 %v1865
        %v2056 = vpop.f32.mrf.mxu0
        %v2057 = vadd.f32 0.0, %v2056
        %v2058 = vpop.f32.mrf.mxu0
        %v2059 = vpop.f32.mrf.mxu0
        %v2060 = vadd.f32 0.0, %v2059
        %v2061 = vpop.f32.mrf.mxu0
        %2062 = vmatprep.mubr.bf16.mxu0 0
        %2063 = vmatmul.mubr.bf16.gmra.mxu0 %v1866
        %v2064 = vpop.f32.mrf.mxu0
        %v2065 = vadd.f32 0.0, %v2064
        %v2066 = vpop.f32.mrf.mxu0
        %v2067 = vpop.f32.mrf.mxu0
        %v2068 = vadd.f32 0.0, %v2067
        %v2069 = vpop.f32.mrf.mxu0
        %2070 = vmatprep.mubr.bf16.mxu0 0
        %2071 = vmatmul.mubr.bf16.gmra.mxu0 %v1867
        %v2072 = vpop.f32.mrf.mxu0
        %v2073 = vadd.f32 0.0, %v2072
        %v2074 = vpop.f32.mrf.mxu0
        %v2075 = vpop.f32.mrf.mxu0
        %v2076 = vadd.f32 0.0, %v2075
        %v2077 = vpop.f32.mrf.mxu0
        %2078 = vmatprep.mubr.bf16.mxu0 0
        %2079 = vmatmul.mubr.bf16.gmra.mxu0 %v1868
        %v2080 = vpop.f32.mrf.mxu0
        %v2081 = vadd.f32 0.0, %v2080
        %v2082 = vpop.f32.mrf.mxu0
        %v2083 = vpop.f32.mrf.mxu0
        %v2084 = vadd.f32 0.0, %v2083
        %v2085 = vpop.f32.mrf.mxu0
        %2086 = vmatprep.mubr.bf16.mxu0 0
        %2087 = vmatmul.mubr.bf16.gmra.mxu0 %v1869
        %v2088 = vpop.f32.mrf.mxu0
        %v2089 = vadd.f32 0.0, %v2088
        %v2090 = vpop.f32.mrf.mxu0
        %v2091 = vpop.f32.mrf.mxu0
        %v2092 = vadd.f32 0.0, %v2091
        %v2093 = vpop.f32.mrf.mxu0
        %2094 = vdwg.mxu0
        %v2095 = vadd.f32 %v1790, %v1969
        %v2096 = vadd.f32 %v1791, %v1972
        %v2097 = vadd.f32 %v1792, %v1977
        %v2098 = vadd.f32 %v1793, %v1980
        %v2099 = vadd.f32 %v1794, %v1985
        %v2100 = vadd.f32 %v1795, %v1988
        %v2101 = vadd.f32 %v1796, %v1993
        %v2102 = vadd.f32 %v1797, %v1996
        %v2103 = vadd.f32 %v1798, %v2001
        %v2104 = vadd.f32 %v1799, %v2004
        %v2105 = vadd.f32 %v1800, %v2009
        %v2106 = vadd.f32 %v1801, %v2012
        %v2107 = vadd.f32 %v1802, %v2017
        %v2108 = vadd.f32 %v1803, %v2020
        %v2109 = vadd.f32 %v1804, %v2025
        %v2110 = vadd.f32 %v1805, %v2028
        %v2111 = vadd.f32 %v1806, %v2033
        %v2112 = vadd.f32 %v1807, %v2036
        %v2113 = vadd.f32 %v1808, %v2041
        %v2114 = vadd.f32 %v1809, %v2044
        %v2115 = vadd.f32 %v1810, %v2049
        %v2116 = vadd.f32 %v1811, %v2052
        %v2117 = vadd.f32 %v1812, %v2057
        %v2118 = vadd.f32 %v1813, %v2060
        %v2119 = vadd.f32 %v1814, %v2065
        %v2120 = vadd.f32 %v1815, %v2068
        %v2121 = vadd.f32 %v1816, %v2073
        %v2122 = vadd.f32 %v1817, %v2076
        %v2123 = vadd.f32 %v1818, %v2081
        %v2124 = vadd.f32 %v1819, %v2084
        %v2125 = vadd.f32 %v1820, %v2089
        %v2126 = vadd.f32 %v1821, %v2092
        %v2127 = vld [vmem:[%s633 + $0x2] sm:$0xff]
        %v2128 = vld [vmem:[%s633 + $0xa] sm:$0xff]
        %v2129 = vld [vmem:[%s633 + $0x1a] sm:$0xff]
        %v2130 = vld [vmem:[%s633 + $0x22] sm:$0xff]
        %v2131 = vld [vmem:[%s633 + $0x32] sm:$0xff]
        %v2132 = vld [vmem:[%s633 + $0x3a] sm:$0xff]
        %v2133 = vld [vmem:[%s633 + $0x4a] sm:$0xff]
        %v2134 = vld [vmem:[%s633 + $0x52] sm:$0xff]
        %v2135 = vld [vmem:[%s633 + $0x62] sm:$0xff]
        %v2136 = vld [vmem:[%s633 + $0x6a] sm:$0xff]
        %v2137 = vld [vmem:[%s633 + $0x7a] sm:$0xff]
        %v2138 = vld [vmem:[%s633 + $0x82] sm:$0xff]
        %v2139 = vld [vmem:[%s633 + $0x92] sm:$0xff]
        %v2140 = vld [vmem:[%s633 + $0x9a] sm:$0xff]
        %v2141 = vld [vmem:[%s633 + $0xaa] sm:$0xff]
        %v2142 = vld [vmem:[%s633 + $0xb2] sm:$0xff]
        %v2143 = vld [vmem:[%s633 + $0xc2] sm:$0xff]
        %v2144 = vld [vmem:[%s633 + $0xca] sm:$0xff]
        %v2145 = vld [vmem:[%s633 + $0xda] sm:$0xff]
        %v2146 = vld [vmem:[%s633 + $0xe2] sm:$0xff]
        %v2147 = vld [vmem:[%s633 + $0xf2] sm:$0xff]
        %v2148 = vld [vmem:[%s633 + $0xfa] sm:$0xff]
        %v2149 = vld [vmem:[%s633 + $0x10a] sm:$0xff]
        %v2150 = vld [vmem:[%s633 + $0x112] sm:$0xff]
        %v2151 = vld [vmem:[%s633 + $0x122] sm:$0xff]
        %v2152 = vld [vmem:[%s633 + $0x12a] sm:$0xff]
        %v2153 = vld [vmem:[%s633 + $0x13a] sm:$0xff]
        %v2154 = vld [vmem:[%s633 + $0x142] sm:$0xff]
        %v2155 = vld [vmem:[%s633 + $0x152] sm:$0xff]
        %v2156 = vld [vmem:[%s633 + $0x15a] sm:$0xff]
        %v2157 = vld [vmem:[%s633 + $0x16a] sm:$0xff]
        %v2158 = vld [vmem:[%s633 + $0x172] sm:$0xff]
        %v2159 = vpack.c.bf16 %v2128, %v2127
        %v2160 = vpack.c.bf16 %v2130, %v2129
        %v2161 = vpack.c.bf16 %v2132, %v2131
        %v2162 = vpack.c.bf16 %v2134, %v2133
        %v2163 = vpack.c.bf16 %v2136, %v2135
        %v2164 = vpack.c.bf16 %v2138, %v2137
        %v2165 = vpack.c.bf16 %v2140, %v2139
        %v2166 = vpack.c.bf16 %v2142, %v2141
        %v2167 = vpack.c.bf16 %v2144, %v2143
        %v2168 = vpack.c.bf16 %v2146, %v2145
        %v2169 = vpack.c.bf16 %v2148, %v2147
        %v2170 = vpack.c.bf16 %v2150, %v2149
        %v2171 = vpack.c.bf16 %v2152, %v2151
        %v2172 = vpack.c.bf16 %v2154, %v2153
        %v2173 = vpack.c.bf16 %v2156, %v2155
        %v2174 = vpack.c.bf16 %v2158, %v2157
        %v2175 = vld [vmem:[#allocation7 + $0x140] sm:$0xf]
        %v2176 = vld [vmem:[#allocation7 + $0x144] sm:$0xf]
        %v2177 = vld [vmem:[#allocation7 + $0x148] sm:$0xf]
        %v2178 = vld [vmem:[#allocation7 + $0x14c] sm:$0xf]
        %v2179 = vld [vmem:[#allocation7 + $0x150] sm:$0xf]
        %v2180 = vld [vmem:[#allocation7 + $0x154] sm:$0xf]
        %v2181 = vld [vmem:[#allocation7 + $0x158] sm:$0xf]
        %v2182 = vld [vmem:[#allocation7 + $0x15c] sm:$0xf]
        %v2183 = vld [vmem:[#allocation7 + $0x160] sm:$0xf]
        %v2184 = vld [vmem:[#allocation7 + $0x164] sm:$0xf]
        %v2185 = vld [vmem:[#allocation7 + $0x168] sm:$0xf]
        %v2186 = vld [vmem:[#allocation7 + $0x16c] sm:$0xf]
        %v2187 = vld [vmem:[#allocation7 + $0x170] sm:$0xf]
        %v2188 = vld [vmem:[#allocation7 + $0x174] sm:$0xf]
        %v2189 = vld [vmem:[#allocation7 + $0x178] sm:$0xf]
        %v2190 = vld [vmem:[#allocation7 + $0x17c] sm:$0xf]
        %v2207 = vunpack.c.l.b16 %v2175
        %v2208 = vunpack.c.l.b16 %v2176
        %v2209 = vunpack.c.l.b16 %v2177
        %v2210 = vunpack.c.l.b16 %v2178
        %v2211 = vunpack.c.l.b16 %v2179
        %v2212 = vunpack.c.l.b16 %v2180
        %v2213 = vunpack.c.l.b16 %v2181
        %v2214 = vunpack.c.l.b16 %v2182
        %v2215 = vunpack.c.l.b16 %v2183
        %v2216 = vunpack.c.l.b16 %v2184
        %v2217 = vunpack.c.l.b16 %v2185
        %v2218 = vunpack.c.l.b16 %v2186
        %v2219 = vunpack.c.l.b16 %v2187
        %v2220 = vunpack.c.l.b16 %v2188
        %v2221 = vunpack.c.l.b16 %v2189
        %v2222 = vunpack.c.l.b16 %v2190
        %v2223 = vpack.c.b16 %v2208, %v2207
        %v2224 = vpack.c.b16 %v2210, %v2209
        %v2225 = vpack.c.b16 %v2212, %v2211
        %v2226 = vpack.c.b16 %v2214, %v2213
        %v2227 = vpack.c.b16 %v2216, %v2215
        %v2228 = vpack.c.b16 %v2218, %v2217
        %v2229 = vpack.c.b16 %v2220, %v2219
        %v2230 = vpack.c.b16 %v2222, %v2221
        %2239 = vmatprep.subr.bf16.mxu0 0
        %2240 = vmatpush1.bf16.msra.mxu0 %v2230
        %2241 = vmatprep.subr.bf16.mxu0 0
        %2242 = vmatpush1.bf16.msra.mxu0 %v2229
        %2243 = vmatprep.subr.bf16.mxu0 0
        %2244 = vmatpush1.bf16.msra.mxu0 %v2228
        %2245 = vmatprep.subr.bf16.mxu0 0
        %2246 = vmatpush1.bf16.msra.mxu0 %v2227
        %2247 = vmatprep.subr.bf16.mxu0 0
        %2248 = vmatpush1.bf16.msra.mxu0 %v2226
        %2249 = vmatprep.subr.bf16.mxu0 0
        %2250 = vmatpush1.bf16.msra.mxu0 %v2225
        %2251 = vmatprep.subr.bf16.mxu0 0
        %2252 = vmatpush1.bf16.msra.mxu0 %v2224
        %2253 = vmatprep.subr.bf16.mxu0 0
        %2254 = vmatpush1.bf16.msra.mxu0 %v2223
        %2255 = vmatprep.subr.bf16.mxu0 0
        %2256 = vmatpush2.bf16.msra.mxu0 0
        %2257 = vmatprep.subr.bf16.mxu0 0
        %2258 = vmatpush2.bf16.msra.mxu0 0
        %2259 = vmatprep.subr.bf16.mxu0 0
        %2260 = vmatpush2.bf16.msra.mxu0 0
        %2261 = vmatprep.subr.bf16.mxu0 0
        %2262 = vmatpush2.bf16.msra.mxu0 0
        %2263 = vmatprep.subr.bf16.mxu0 0
        %2264 = vmatpush2.bf16.msra.mxu0 0
        %2265 = vmatprep.subr.bf16.mxu0 0
        %2266 = vmatpush2.bf16.msra.mxu0 0
        %2267 = vmatprep.subr.bf16.mxu0 0
        %2268 = vmatpush2.bf16.msra.mxu0 0
        %2269 = vmatprep.subr.bf16.mxu0 0
        %2270 = vmatpush2.bf16.msra.mxu0 0
        %2271 = vmatprep.mubr.bf16.mxu0 0
        %2272 = vmatmul.mubr.bf16.gmra.mxu0 %v2159
        %v2273 = vpop.f32.mrf.mxu0
        %v2274 = vadd.f32 0.0, %v2273
        %v2275 = vpop.f32.mrf.mxu0
        %v2276 = vpop.f32.mrf.mxu0
        %v2277 = vadd.f32 0.0, %v2276
        %v2278 = vpop.f32.mrf.mxu0
        %2279 = vmatprep.mubr.bf16.mxu0 0
        %2280 = vmatmul.mubr.bf16.gmra.mxu0 %v2160
        %v2281 = vpop.f32.mrf.mxu0
        %v2282 = vadd.f32 0.0, %v2281
        %v2283 = vpop.f32.mrf.mxu0
        %v2284 = vpop.f32.mrf.mxu0
        %v2285 = vadd.f32 0.0, %v2284
        %v2286 = vpop.f32.mrf.mxu0
        %2287 = vmatprep.mubr.bf16.mxu0 0
        %2288 = vmatmul.mubr.bf16.gmra.mxu0 %v2161
        %v2289 = vpop.f32.mrf.mxu0
        %v2290 = vadd.f32 0.0, %v2289
        %v2291 = vpop.f32.mrf.mxu0
        %v2292 = vpop.f32.mrf.mxu0
        %v2293 = vadd.f32 0.0, %v2292
        %v2294 = vpop.f32.mrf.mxu0
        %2295 = vmatprep.mubr.bf16.mxu0 0
        %2296 = vmatmul.mubr.bf16.gmra.mxu0 %v2162
        %v2297 = vpop.f32.mrf.mxu0
        %v2298 = vadd.f32 0.0, %v2297
        %v2299 = vpop.f32.mrf.mxu0
        %v2300 = vpop.f32.mrf.mxu0
        %v2301 = vadd.f32 0.0, %v2300
        %v2302 = vpop.f32.mrf.mxu0
        %2303 = vmatprep.mubr.bf16.mxu0 0
        %2304 = vmatmul.mubr.bf16.gmra.mxu0 %v2163
        %v2305 = vpop.f32.mrf.mxu0
        %v2306 = vadd.f32 0.0, %v2305
        %v2307 = vpop.f32.mrf.mxu0
        %v2308 = vpop.f32.mrf.mxu0
        %v2309 = vadd.f32 0.0, %v2308
        %v2310 = vpop.f32.mrf.mxu0
        %2311 = vmatprep.mubr.bf16.mxu0 0
        %2312 = vmatmul.mubr.bf16.gmra.mxu0 %v2164
        %v2313 = vpop.f32.mrf.mxu0
        %v2314 = vadd.f32 0.0, %v2313
        %v2315 = vpop.f32.mrf.mxu0
        %v2316 = vpop.f32.mrf.mxu0
        %v2317 = vadd.f32 0.0, %v2316
        %v2318 = vpop.f32.mrf.mxu0
        %2319 = vmatprep.mubr.bf16.mxu0 0
        %2320 = vmatmul.mubr.bf16.gmra.mxu0 %v2165
        %v2321 = vpop.f32.mrf.mxu0
        %v2322 = vadd.f32 0.0, %v2321
        %v2323 = vpop.f32.mrf.mxu0
        %v2324 = vpop.f32.mrf.mxu0
        %v2325 = vadd.f32 0.0, %v2324
        %v2326 = vpop.f32.mrf.mxu0
        %2327 = vmatprep.mubr.bf16.mxu0 0
        %2328 = vmatmul.mubr.bf16.gmra.mxu0 %v2166
        %v2329 = vpop.f32.mrf.mxu0
        %v2330 = vadd.f32 0.0, %v2329
        %v2331 = vpop.f32.mrf.mxu0
        %v2332 = vpop.f32.mrf.mxu0
        %v2333 = vadd.f32 0.0, %v2332
        %v2334 = vpop.f32.mrf.mxu0
        %2335 = vmatprep.mubr.bf16.mxu0 0
        %2336 = vmatmul.mubr.bf16.gmra.mxu0 %v2167
        %v2337 = vpop.f32.mrf.mxu0
        %v2338 = vadd.f32 0.0, %v2337
        %v2339 = vpop.f32.mrf.mxu0
        %v2340 = vpop.f32.mrf.mxu0
        %v2341 = vadd.f32 0.0, %v2340
        %v2342 = vpop.f32.mrf.mxu0
        %2343 = vmatprep.mubr.bf16.mxu0 0
        %2344 = vmatmul.mubr.bf16.gmra.mxu0 %v2168
        %v2345 = vpop.f32.mrf.mxu0
        %v2346 = vadd.f32 0.0, %v2345
        %v2347 = vpop.f32.mrf.mxu0
        %v2348 = vpop.f32.mrf.mxu0
        %v2349 = vadd.f32 0.0, %v2348
        %v2350 = vpop.f32.mrf.mxu0
        %2351 = vmatprep.mubr.bf16.mxu0 0
        %2352 = vmatmul.mubr.bf16.gmra.mxu0 %v2169
        %v2353 = vpop.f32.mrf.mxu0
        %v2354 = vadd.f32 0.0, %v2353
        %v2355 = vpop.f32.mrf.mxu0
        %v2356 = vpop.f32.mrf.mxu0
        %v2357 = vadd.f32 0.0, %v2356
        %v2358 = vpop.f32.mrf.mxu0
        %2359 = vmatprep.mubr.bf16.mxu0 0
        %2360 = vmatmul.mubr.bf16.gmra.mxu0 %v2170
        %v2361 = vpop.f32.mrf.mxu0
        %v2362 = vadd.f32 0.0, %v2361
        %v2363 = vpop.f32.mrf.mxu0
        %v2364 = vpop.f32.mrf.mxu0
        %v2365 = vadd.f32 0.0, %v2364
        %v2366 = vpop.f32.mrf.mxu0
        %2367 = vmatprep.mubr.bf16.mxu0 0
        %2368 = vmatmul.mubr.bf16.gmra.mxu0 %v2171
        %v2369 = vpop.f32.mrf.mxu0
        %v2370 = vadd.f32 0.0, %v2369
        %v2371 = vpop.f32.mrf.mxu0
        %v2372 = vpop.f32.mrf.mxu0
        %v2373 = vadd.f32 0.0, %v2372
        %v2374 = vpop.f32.mrf.mxu0
        %2375 = vmatprep.mubr.bf16.mxu0 0
        %2376 = vmatmul.mubr.bf16.gmra.mxu0 %v2172
        %v2377 = vpop.f32.mrf.mxu0
        %v2378 = vadd.f32 0.0, %v2377
        %v2379 = vpop.f32.mrf.mxu0
        %v2380 = vpop.f32.mrf.mxu0
        %v2381 = vadd.f32 0.0, %v2380
        %v2382 = vpop.f32.mrf.mxu0
        %2383 = vmatprep.mubr.bf16.mxu0 0
        %2384 = vmatmul.mubr.bf16.gmra.mxu0 %v2173
        %v2385 = vpop.f32.mrf.mxu0
        %v2386 = vadd.f32 0.0, %v2385
        %v2387 = vpop.f32.mrf.mxu0
        %v2388 = vpop.f32.mrf.mxu0
        %v2389 = vadd.f32 0.0, %v2388
        %v2390 = vpop.f32.mrf.mxu0
        %2391 = vmatprep.mubr.bf16.mxu0 0
        %2392 = vmatmul.mubr.bf16.gmra.mxu0 %v2174
        %v2393 = vpop.f32.mrf.mxu0
        %v2394 = vadd.f32 0.0, %v2393
        %v2395 = vpop.f32.mrf.mxu0
        %v2396 = vpop.f32.mrf.mxu0
        %v2397 = vadd.f32 0.0, %v2396
        %v2398 = vpop.f32.mrf.mxu0
        %2399 = vdwg.mxu0
        %v2400 = vadd.f32 %v2095, %v2274
        %v2401 = vadd.f32 %v2096, %v2277
        %v2402 = vadd.f32 %v2097, %v2282
        %v2403 = vadd.f32 %v2098, %v2285
        %v2404 = vadd.f32 %v2099, %v2290
        %v2405 = vadd.f32 %v2100, %v2293
        %v2406 = vadd.f32 %v2101, %v2298
        %v2407 = vadd.f32 %v2102, %v2301
        %v2408 = vadd.f32 %v2103, %v2306
        %v2409 = vadd.f32 %v2104, %v2309
        %v2410 = vadd.f32 %v2105, %v2314
        %v2411 = vadd.f32 %v2106, %v2317
        %v2412 = vadd.f32 %v2107, %v2322
        %v2413 = vadd.f32 %v2108, %v2325
        %v2414 = vadd.f32 %v2109, %v2330
        %v2415 = vadd.f32 %v2110, %v2333
        %v2416 = vadd.f32 %v2111, %v2338
        %v2417 = vadd.f32 %v2112, %v2341
        %v2418 = vadd.f32 %v2113, %v2346
        %v2419 = vadd.f32 %v2114, %v2349
        %v2420 = vadd.f32 %v2115, %v2354
        %v2421 = vadd.f32 %v2116, %v2357
        %v2422 = vadd.f32 %v2117, %v2362
        %v2423 = vadd.f32 %v2118, %v2365
        %v2424 = vadd.f32 %v2119, %v2370
        %v2425 = vadd.f32 %v2120, %v2373
        %v2426 = vadd.f32 %v2121, %v2378
        %v2427 = vadd.f32 %v2122, %v2381
        %v2428 = vadd.f32 %v2123, %v2386
        %v2429 = vadd.f32 %v2124, %v2389
        %v2430 = vadd.f32 %v2125, %v2394
        %v2431 = vadd.f32 %v2126, %v2397
        %s2432 = scalar_lea.vmem [#allocation3], 48
        %v2433 = vld [vmem:[%s2432] sm:$0xff]
        %v2434 = vld [vmem:[%s2432 + $0x8] sm:$0xff]
        %v2435 = vld [vmem:[%s2432 + $0x18] sm:$0xff]
        %v2436 = vld [vmem:[%s2432 + $0x20] sm:$0xff]
        %v2437 = vld [vmem:[%s2432 + $0x30] sm:$0xff]
        %v2438 = vld [vmem:[%s2432 + $0x38] sm:$0xff]
        %v2439 = vld [vmem:[%s2432 + $0x48] sm:$0xff]
        %v2440 = vld [vmem:[%s2432 + $0x50] sm:$0xff]
        %v2441 = vld [vmem:[%s2432 + $0x60] sm:$0xff]
        %v2442 = vld [vmem:[%s2432 + $0x68] sm:$0xff]
        %v2443 = vld [vmem:[%s2432 + $0x78] sm:$0xff]
        %v2444 = vld [vmem:[%s2432 + $0x80] sm:$0xff]
        %v2445 = vld [vmem:[%s2432 + $0x90] sm:$0xff]
        %v2446 = vld [vmem:[%s2432 + $0x98] sm:$0xff]
        %v2447 = vld [vmem:[%s2432 + $0xa8] sm:$0xff]
        %v2448 = vld [vmem:[%s2432 + $0xb0] sm:$0xff]
        %v2449 = vld [vmem:[%s2432 + $0xc0] sm:$0xff]
        %v2450 = vld [vmem:[%s2432 + $0xc8] sm:$0xff]
        %v2451 = vld [vmem:[%s2432 + $0xd8] sm:$0xff]
        %v2452 = vld [vmem:[%s2432 + $0xe0] sm:$0xff]
        %v2453 = vld [vmem:[%s2432 + $0xf0] sm:$0xff]
        %v2454 = vld [vmem:[%s2432 + $0xf8] sm:$0xff]
        %v2455 = vld [vmem:[%s2432 + $0x108] sm:$0xff]
        %v2456 = vld [vmem:[%s2432 + $0x110] sm:$0xff]
        %v2457 = vld [vmem:[%s2432 + $0x120] sm:$0xff]
        %v2458 = vld [vmem:[%s2432 + $0x128] sm:$0xff]
        %v2459 = vld [vmem:[%s2432 + $0x138] sm:$0xff]
        %v2460 = vld [vmem:[%s2432 + $0x140] sm:$0xff]
        %v2461 = vld [vmem:[%s2432 + $0x150] sm:$0xff]
        %v2462 = vld [vmem:[%s2432 + $0x158] sm:$0xff]
        %v2463 = vld [vmem:[%s2432 + $0x168] sm:$0xff]
        %v2464 = vld [vmem:[%s2432 + $0x170] sm:$0xff]
        %v2465 = vpack.c.bf16 %v2434, %v2433
        %v2466 = vpack.c.bf16 %v2436, %v2435
        %v2467 = vpack.c.bf16 %v2438, %v2437
        %v2468 = vpack.c.bf16 %v2440, %v2439
        %v2469 = vpack.c.bf16 %v2442, %v2441
        %v2470 = vpack.c.bf16 %v2444, %v2443
        %v2471 = vpack.c.bf16 %v2446, %v2445
        %v2472 = vpack.c.bf16 %v2448, %v2447
        %v2473 = vpack.c.bf16 %v2450, %v2449
        %v2474 = vpack.c.bf16 %v2452, %v2451
        %v2475 = vpack.c.bf16 %v2454, %v2453
        %v2476 = vpack.c.bf16 %v2456, %v2455
        %v2477 = vpack.c.bf16 %v2458, %v2457
        %v2478 = vpack.c.bf16 %v2460, %v2459
        %v2479 = vpack.c.bf16 %v2462, %v2461
        %v2480 = vpack.c.bf16 %v2464, %v2463
        %v2481 = vld [vmem:[#allocation7 + $0x180] sm:$0xf]
        %v2482 = vld [vmem:[#allocation7 + $0x184] sm:$0xf]
        %v2483 = vld [vmem:[#allocation7 + $0x188] sm:$0xf]
        %v2484 = vld [vmem:[#allocation7 + $0x18c] sm:$0xf]
        %v2485 = vld [vmem:[#allocation7 + $0x190] sm:$0xf]
        %v2486 = vld [vmem:[#allocation7 + $0x194] sm:$0xf]
        %v2487 = vld [vmem:[#allocation7 + $0x198] sm:$0xf]
        %v2488 = vld [vmem:[#allocation7 + $0x19c] sm:$0xf]
        %v2489 = vld [vmem:[#allocation7 + $0x1a0] sm:$0xf]
        %v2490 = vld [vmem:[#allocation7 + $0x1a4] sm:$0xf]
        %v2491 = vld [vmem:[#allocation7 + $0x1a8] sm:$0xf]
        %v2492 = vld [vmem:[#allocation7 + $0x1ac] sm:$0xf]
        %v2493 = vld [vmem:[#allocation7 + $0x1b0] sm:$0xf]
        %v2494 = vld [vmem:[#allocation7 + $0x1b4] sm:$0xf]
        %v2495 = vld [vmem:[#allocation7 + $0x1b8] sm:$0xf]
        %v2496 = vld [vmem:[#allocation7 + $0x1bc] sm:$0xf]
        %v2513 = vunpack.c.l.b16 %v2481
        %v2514 = vunpack.c.l.b16 %v2482
        %v2515 = vunpack.c.l.b16 %v2483
        %v2516 = vunpack.c.l.b16 %v2484
        %v2517 = vunpack.c.l.b16 %v2485
        %v2518 = vunpack.c.l.b16 %v2486
        %v2519 = vunpack.c.l.b16 %v2487
        %v2520 = vunpack.c.l.b16 %v2488
        %v2521 = vunpack.c.l.b16 %v2489
        %v2522 = vunpack.c.l.b16 %v2490
        %v2523 = vunpack.c.l.b16 %v2491
        %v2524 = vunpack.c.l.b16 %v2492
        %v2525 = vunpack.c.l.b16 %v2493
        %v2526 = vunpack.c.l.b16 %v2494
        %v2527 = vunpack.c.l.b16 %v2495
        %v2528 = vunpack.c.l.b16 %v2496
        %v2529 = vpack.c.b16 %v2514, %v2513
        %v2530 = vpack.c.b16 %v2516, %v2515
        %v2531 = vpack.c.b16 %v2518, %v2517
        %v2532 = vpack.c.b16 %v2520, %v2519
        %v2533 = vpack.c.b16 %v2522, %v2521
        %v2534 = vpack.c.b16 %v2524, %v2523
        %v2535 = vpack.c.b16 %v2526, %v2525
        %v2536 = vpack.c.b16 %v2528, %v2527
        %2545 = vmatprep.subr.bf16.mxu0 0
        %2546 = vmatpush1.bf16.msra.mxu0 %v2536
        %2547 = vmatprep.subr.bf16.mxu0 0
        %2548 = vmatpush1.bf16.msra.mxu0 %v2535
        %2549 = vmatprep.subr.bf16.mxu0 0
        %2550 = vmatpush1.bf16.msra.mxu0 %v2534
        %2551 = vmatprep.subr.bf16.mxu0 0
        %2552 = vmatpush1.bf16.msra.mxu0 %v2533
        %2553 = vmatprep.subr.bf16.mxu0 0
        %2554 = vmatpush1.bf16.msra.mxu0 %v2532
        %2555 = vmatprep.subr.bf16.mxu0 0
        %2556 = vmatpush1.bf16.msra.mxu0 %v2531
        %2557 = vmatprep.subr.bf16.mxu0 0
        %2558 = vmatpush1.bf16.msra.mxu0 %v2530
        %2559 = vmatprep.subr.bf16.mxu0 0
        %2560 = vmatpush1.bf16.msra.mxu0 %v2529
        %2561 = vmatprep.subr.bf16.mxu0 0
        %2562 = vmatpush2.bf16.msra.mxu0 0
        %2563 = vmatprep.subr.bf16.mxu0 0
        %2564 = vmatpush2.bf16.msra.mxu0 0
        %2565 = vmatprep.subr.bf16.mxu0 0
        %2566 = vmatpush2.bf16.msra.mxu0 0
        %2567 = vmatprep.subr.bf16.mxu0 0
        %2568 = vmatpush2.bf16.msra.mxu0 0
        %2569 = vmatprep.subr.bf16.mxu0 0
        %2570 = vmatpush2.bf16.msra.mxu0 0
        %2571 = vmatprep.subr.bf16.mxu0 0
        %2572 = vmatpush2.bf16.msra.mxu0 0
        %2573 = vmatprep.subr.bf16.mxu0 0
        %2574 = vmatpush2.bf16.msra.mxu0 0
        %2575 = vmatprep.subr.bf16.mxu0 0
        %2576 = vmatpush2.bf16.msra.mxu0 0
        %2577 = vmatprep.mubr.bf16.mxu0 0
        %2578 = vmatmul.mubr.bf16.gmra.mxu0 %v2465
        %v2579 = vpop.f32.mrf.mxu0
        %v2580 = vadd.f32 0.0, %v2579
        %v2581 = vpop.f32.mrf.mxu0
        %v2582 = vpop.f32.mrf.mxu0
        %v2583 = vadd.f32 0.0, %v2582
        %v2584 = vpop.f32.mrf.mxu0
        %2585 = vmatprep.mubr.bf16.mxu0 0
        %2586 = vmatmul.mubr.bf16.gmra.mxu0 %v2466
        %v2587 = vpop.f32.mrf.mxu0
        %v2588 = vadd.f32 0.0, %v2587
        %v2589 = vpop.f32.mrf.mxu0
        %v2590 = vpop.f32.mrf.mxu0
        %v2591 = vadd.f32 0.0, %v2590
        %v2592 = vpop.f32.mrf.mxu0
        %2593 = vmatprep.mubr.bf16.mxu0 0
        %2594 = vmatmul.mubr.bf16.gmra.mxu0 %v2467
        %v2595 = vpop.f32.mrf.mxu0
        %v2596 = vadd.f32 0.0, %v2595
        %v2597 = vpop.f32.mrf.mxu0
        %v2598 = vpop.f32.mrf.mxu0
        %v2599 = vadd.f32 0.0, %v2598
        %v2600 = vpop.f32.mrf.mxu0
        %2601 = vmatprep.mubr.bf16.mxu0 0
        %2602 = vmatmul.mubr.bf16.gmra.mxu0 %v2468
        %v2603 = vpop.f32.mrf.mxu0
        %v2604 = vadd.f32 0.0, %v2603
        %v2605 = vpop.f32.mrf.mxu0
        %v2606 = vpop.f32.mrf.mxu0
        %v2607 = vadd.f32 0.0, %v2606
        %v2608 = vpop.f32.mrf.mxu0
        %2609 = vmatprep.mubr.bf16.mxu0 0
        %2610 = vmatmul.mubr.bf16.gmra.mxu0 %v2469
        %v2611 = vpop.f32.mrf.mxu0
        %v2612 = vadd.f32 0.0, %v2611
        %v2613 = vpop.f32.mrf.mxu0
        %v2614 = vpop.f32.mrf.mxu0
        %v2615 = vadd.f32 0.0, %v2614
        %v2616 = vpop.f32.mrf.mxu0
        %2617 = vmatprep.mubr.bf16.mxu0 0
        %2618 = vmatmul.mubr.bf16.gmra.mxu0 %v2470
        %v2619 = vpop.f32.mrf.mxu0
        %v2620 = vadd.f32 0.0, %v2619
        %v2621 = vpop.f32.mrf.mxu0
        %v2622 = vpop.f32.mrf.mxu0
        %v2623 = vadd.f32 0.0, %v2622
        %v2624 = vpop.f32.mrf.mxu0
        %2625 = vmatprep.mubr.bf16.mxu0 0
        %2626 = vmatmul.mubr.bf16.gmra.mxu0 %v2471
        %v2627 = vpop.f32.mrf.mxu0
        %v2628 = vadd.f32 0.0, %v2627
        %v2629 = vpop.f32.mrf.mxu0
        %v2630 = vpop.f32.mrf.mxu0
        %v2631 = vadd.f32 0.0, %v2630
        %v2632 = vpop.f32.mrf.mxu0
        %2633 = vmatprep.mubr.bf16.mxu0 0
        %2634 = vmatmul.mubr.bf16.gmra.mxu0 %v2472
        %v2635 = vpop.f32.mrf.mxu0
        %v2636 = vadd.f32 0.0, %v2635
        %v2637 = vpop.f32.mrf.mxu0
        %v2638 = vpop.f32.mrf.mxu0
        %v2639 = vadd.f32 0.0, %v2638
        %v2640 = vpop.f32.mrf.mxu0
        %2641 = vmatprep.mubr.bf16.mxu0 0
        %2642 = vmatmul.mubr.bf16.gmra.mxu0 %v2473
        %v2643 = vpop.f32.mrf.mxu0
        %v2644 = vadd.f32 0.0, %v2643
        %v2645 = vpop.f32.mrf.mxu0
        %v2646 = vpop.f32.mrf.mxu0
        %v2647 = vadd.f32 0.0, %v2646
        %v2648 = vpop.f32.mrf.mxu0
        %2649 = vmatprep.mubr.bf16.mxu0 0
        %2650 = vmatmul.mubr.bf16.gmra.mxu0 %v2474
        %v2651 = vpop.f32.mrf.mxu0
        %v2652 = vadd.f32 0.0, %v2651
        %v2653 = vpop.f32.mrf.mxu0
        %v2654 = vpop.f32.mrf.mxu0
        %v2655 = vadd.f32 0.0, %v2654
        %v2656 = vpop.f32.mrf.mxu0
        %2657 = vmatprep.mubr.bf16.mxu0 0
        %2658 = vmatmul.mubr.bf16.gmra.mxu0 %v2475
        %v2659 = vpop.f32.mrf.mxu0
        %v2660 = vadd.f32 0.0, %v2659
        %v2661 = vpop.f32.mrf.mxu0
        %v2662 = vpop.f32.mrf.mxu0
        %v2663 = vadd.f32 0.0, %v2662
        %v2664 = vpop.f32.mrf.mxu0
        %2665 = vmatprep.mubr.bf16.mxu0 0
        %2666 = vmatmul.mubr.bf16.gmra.mxu0 %v2476
        %v2667 = vpop.f32.mrf.mxu0
        %v2668 = vadd.f32 0.0, %v2667
        %v2669 = vpop.f32.mrf.mxu0
        %v2670 = vpop.f32.mrf.mxu0
        %v2671 = vadd.f32 0.0, %v2670
        %v2672 = vpop.f32.mrf.mxu0
        %2673 = vmatprep.mubr.bf16.mxu0 0
        %2674 = vmatmul.mubr.bf16.gmra.mxu0 %v2477
        %v2675 = vpop.f32.mrf.mxu0
        %v2676 = vadd.f32 0.0, %v2675
        %v2677 = vpop.f32.mrf.mxu0
        %v2678 = vpop.f32.mrf.mxu0
        %v2679 = vadd.f32 0.0, %v2678
        %v2680 = vpop.f32.mrf.mxu0
        %2681 = vmatprep.mubr.bf16.mxu0 0
        %2682 = vmatmul.mubr.bf16.gmra.mxu0 %v2478
        %v2683 = vpop.f32.mrf.mxu0
        %v2684 = vadd.f32 0.0, %v2683
        %v2685 = vpop.f32.mrf.mxu0
        %v2686 = vpop.f32.mrf.mxu0
        %v2687 = vadd.f32 0.0, %v2686
        %v2688 = vpop.f32.mrf.mxu0
        %2689 = vmatprep.mubr.bf16.mxu0 0
        %2690 = vmatmul.mubr.bf16.gmra.mxu0 %v2479
        %v2691 = vpop.f32.mrf.mxu0
        %v2692 = vadd.f32 0.0, %v2691
        %v2693 = vpop.f32.mrf.mxu0
        %v2694 = vpop.f32.mrf.mxu0
        %v2695 = vadd.f32 0.0, %v2694
        %v2696 = vpop.f32.mrf.mxu0
        %2697 = vmatprep.mubr.bf16.mxu0 0
        %2698 = vmatmul.mubr.bf16.gmra.mxu0 %v2480
        %v2699 = vpop.f32.mrf.mxu0
        %v2700 = vadd.f32 0.0, %v2699
        %v2701 = vpop.f32.mrf.mxu0
        %v2702 = vpop.f32.mrf.mxu0
        %v2703 = vadd.f32 0.0, %v2702
        %v2704 = vpop.f32.mrf.mxu0
        %2705 = vdwg.mxu0
        %v2706 = vadd.f32 %v2400, %v2580
        %v2707 = vadd.f32 %v2401, %v2583
        %v2708 = vadd.f32 %v2402, %v2588
        %v2709 = vadd.f32 %v2403, %v2591
        %v2710 = vadd.f32 %v2404, %v2596
        %v2711 = vadd.f32 %v2405, %v2599
        %v2712 = vadd.f32 %v2406, %v2604
        %v2713 = vadd.f32 %v2407, %v2607
        %v2714 = vadd.f32 %v2408, %v2612
        %v2715 = vadd.f32 %v2409, %v2615
        %v2716 = vadd.f32 %v2410, %v2620
        %v2717 = vadd.f32 %v2411, %v2623
        %v2718 = vadd.f32 %v2412, %v2628
        %v2719 = vadd.f32 %v2413, %v2631
        %v2720 = vadd.f32 %v2414, %v2636
        %v2721 = vadd.f32 %v2415, %v2639
        %v2722 = vadd.f32 %v2416, %v2644
        %v2723 = vadd.f32 %v2417, %v2647
        %v2724 = vadd.f32 %v2418, %v2652
        %v2725 = vadd.f32 %v2419, %v2655
        %v2726 = vadd.f32 %v2420, %v2660
        %v2727 = vadd.f32 %v2421, %v2663
        %v2728 = vadd.f32 %v2422, %v2668
        %v2729 = vadd.f32 %v2423, %v2671
        %v2730 = vadd.f32 %v2424, %v2676
        %v2731 = vadd.f32 %v2425, %v2679
        %v2732 = vadd.f32 %v2426, %v2684
        %v2733 = vadd.f32 %v2427, %v2687
        %v2734 = vadd.f32 %v2428, %v2692
        %v2735 = vadd.f32 %v2429, %v2695
        %v2736 = vadd.f32 %v2430, %v2700
        %v2737 = vadd.f32 %v2431, %v2703
        %v2738 = vld [vmem:[%s2432 + $0x1] sm:$0xff]
        %v2739 = vld [vmem:[%s2432 + $0x9] sm:$0xff]
        %v2740 = vld [vmem:[%s2432 + $0x19] sm:$0xff]
        %v2741 = vld [vmem:[%s2432 + $0x21] sm:$0xff]
        %v2742 = vld [vmem:[%s2432 + $0x31] sm:$0xff]
        %v2743 = vld [vmem:[%s2432 + $0x39] sm:$0xff]
        %v2744 = vld [vmem:[%s2432 + $0x49] sm:$0xff]
        %v2745 = vld [vmem:[%s2432 + $0x51] sm:$0xff]
        %v2746 = vld [vmem:[%s2432 + $0x61] sm:$0xff]
        %v2747 = vld [vmem:[%s2432 + $0x69] sm:$0xff]
        %v2748 = vld [vmem:[%s2432 + $0x79] sm:$0xff]
        %v2749 = vld [vmem:[%s2432 + $0x81] sm:$0xff]
        %v2750 = vld [vmem:[%s2432 + $0x91] sm:$0xff]
        %v2751 = vld [vmem:[%s2432 + $0x99] sm:$0xff]
        %v2752 = vld [vmem:[%s2432 + $0xa9] sm:$0xff]
        %v2753 = vld [vmem:[%s2432 + $0xb1] sm:$0xff]
        %v2754 = vld [vmem:[%s2432 + $0xc1] sm:$0xff]
        %v2755 = vld [vmem:[%s2432 + $0xc9] sm:$0xff]
        %v2756 = vld [vmem:[%s2432 + $0xd9] sm:$0xff]
        %v2757 = vld [vmem:[%s2432 + $0xe1] sm:$0xff]
        %v2758 = vld [vmem:[%s2432 + $0xf1] sm:$0xff]
        %v2759 = vld [vmem:[%s2432 + $0xf9] sm:$0xff]
        %v2760 = vld [vmem:[%s2432 + $0x109] sm:$0xff]
        %v2761 = vld [vmem:[%s2432 + $0x111] sm:$0xff]
        %v2762 = vld [vmem:[%s2432 + $0x121] sm:$0xff]
        %v2763 = vld [vmem:[%s2432 + $0x129] sm:$0xff]
        %v2764 = vld [vmem:[%s2432 + $0x139] sm:$0xff]
        %v2765 = vld [vmem:[%s2432 + $0x141] sm:$0xff]
        %v2766 = vld [vmem:[%s2432 + $0x151] sm:$0xff]
        %v2767 = vld [vmem:[%s2432 + $0x159] sm:$0xff]
        %v2768 = vld [vmem:[%s2432 + $0x169] sm:$0xff]
        %v2769 = vld [vmem:[%s2432 + $0x171] sm:$0xff]
        %v2770 = vpack.c.bf16 %v2739, %v2738
        %v2771 = vpack.c.bf16 %v2741, %v2740
        %v2772 = vpack.c.bf16 %v2743, %v2742
        %v2773 = vpack.c.bf16 %v2745, %v2744
        %v2774 = vpack.c.bf16 %v2747, %v2746
        %v2775 = vpack.c.bf16 %v2749, %v2748
        %v2776 = vpack.c.bf16 %v2751, %v2750
        %v2777 = vpack.c.bf16 %v2753, %v2752
        %v2778 = vpack.c.bf16 %v2755, %v2754
        %v2779 = vpack.c.bf16 %v2757, %v2756
        %v2780 = vpack.c.bf16 %v2759, %v2758
        %v2781 = vpack.c.bf16 %v2761, %v2760
        %v2782 = vpack.c.bf16 %v2763, %v2762
        %v2783 = vpack.c.bf16 %v2765, %v2764
        %v2784 = vpack.c.bf16 %v2767, %v2766
        %v2785 = vpack.c.bf16 %v2769, %v2768
        %v2786 = vld [vmem:[#allocation7 + $0x1c0] sm:$0xf]
        %v2787 = vld [vmem:[#allocation7 + $0x1c4] sm:$0xf]
        %v2788 = vld [vmem:[#allocation7 + $0x1c8] sm:$0xf]
        %v2789 = vld [vmem:[#allocation7 + $0x1cc] sm:$0xf]
        %v2790 = vld [vmem:[#allocation7 + $0x1d0] sm:$0xf]
        %v2791 = vld [vmem:[#allocation7 + $0x1d4] sm:$0xf]
        %v2792 = vld [vmem:[#allocation7 + $0x1d8] sm:$0xf]
        %v2793 = vld [vmem:[#allocation7 + $0x1dc] sm:$0xf]
        %v2794 = vld [vmem:[#allocation7 + $0x1e0] sm:$0xf]
        %v2795 = vld [vmem:[#allocation7 + $0x1e4] sm:$0xf]
        %v2796 = vld [vmem:[#allocation7 + $0x1e8] sm:$0xf]
        %v2797 = vld [vmem:[#allocation7 + $0x1ec] sm:$0xf]
        %v2798 = vld [vmem:[#allocation7 + $0x1f0] sm:$0xf]
        %v2799 = vld [vmem:[#allocation7 + $0x1f4] sm:$0xf]
        %v2800 = vld [vmem:[#allocation7 + $0x1f8] sm:$0xf]
        %v2801 = vld [vmem:[#allocation7 + $0x1fc] sm:$0xf]
        %v2818 = vunpack.c.l.b16 %v2786
        %v2819 = vunpack.c.l.b16 %v2787
        %v2820 = vunpack.c.l.b16 %v2788
        %v2821 = vunpack.c.l.b16 %v2789
        %v2822 = vunpack.c.l.b16 %v2790
        %v2823 = vunpack.c.l.b16 %v2791
        %v2824 = vunpack.c.l.b16 %v2792
        %v2825 = vunpack.c.l.b16 %v2793
        %v2826 = vunpack.c.l.b16 %v2794
        %v2827 = vunpack.c.l.b16 %v2795
        %v2828 = vunpack.c.l.b16 %v2796
        %v2829 = vunpack.c.l.b16 %v2797
        %v2830 = vunpack.c.l.b16 %v2798
        %v2831 = vunpack.c.l.b16 %v2799
        %v2832 = vunpack.c.l.b16 %v2800
        %v2833 = vunpack.c.l.b16 %v2801
        %v2834 = vpack.c.b16 %v2819, %v2818
        %v2835 = vpack.c.b16 %v2821, %v2820
        %v2836 = vpack.c.b16 %v2823, %v2822
        %v2837 = vpack.c.b16 %v2825, %v2824
        %v2838 = vpack.c.b16 %v2827, %v2826
        %v2839 = vpack.c.b16 %v2829, %v2828
        %v2840 = vpack.c.b16 %v2831, %v2830
        %v2841 = vpack.c.b16 %v2833, %v2832
        %2850 = vmatprep.subr.bf16.mxu0 0
        %2851 = vmatpush1.bf16.msra.mxu0 %v2841
        %2852 = vmatprep.subr.bf16.mxu0 0
        %2853 = vmatpush1.bf16.msra.mxu0 %v2840
        %2854 = vmatprep.subr.bf16.mxu0 0
        %2855 = vmatpush1.bf16.msra.mxu0 %v2839
        %2856 = vmatprep.subr.bf16.mxu0 0
        %2857 = vmatpush1.bf16.msra.mxu0 %v2838
        %2858 = vmatprep.subr.bf16.mxu0 0
        %2859 = vmatpush1.bf16.msra.mxu0 %v2837
        %2860 = vmatprep.subr.bf16.mxu0 0
        %2861 = vmatpush1.bf16.msra.mxu0 %v2836
        %2862 = vmatprep.subr.bf16.mxu0 0
        %2863 = vmatpush1.bf16.msra.mxu0 %v2835
        %2864 = vmatprep.subr.bf16.mxu0 0
        %2865 = vmatpush1.bf16.msra.mxu0 %v2834
        %2866 = vmatprep.subr.bf16.mxu0 0
        %2867 = vmatpush2.bf16.msra.mxu0 0
        %2868 = vmatprep.subr.bf16.mxu0 0
        %2869 = vmatpush2.bf16.msra.mxu0 0
        %2870 = vmatprep.subr.bf16.mxu0 0
        %2871 = vmatpush2.bf16.msra.mxu0 0
        %2872 = vmatprep.subr.bf16.mxu0 0
        %2873 = vmatpush2.bf16.msra.mxu0 0
        %2874 = vmatprep.subr.bf16.mxu0 0
        %2875 = vmatpush2.bf16.msra.mxu0 0
        %2876 = vmatprep.subr.bf16.mxu0 0
        %2877 = vmatpush2.bf16.msra.mxu0 0
        %2878 = vmatprep.subr.bf16.mxu0 0
        %2879 = vmatpush2.bf16.msra.mxu0 0
        %2880 = vmatprep.subr.bf16.mxu0 0
        %2881 = vmatpush2.bf16.msra.mxu0 0
        %2882 = vmatprep.mubr.bf16.mxu0 0
        %2883 = vmatmul.mubr.bf16.gmra.mxu0 %v2770
        %v2884 = vpop.f32.mrf.mxu0
        %v2885 = vadd.f32 0.0, %v2884
        %v2886 = vpop.f32.mrf.mxu0
        %v2887 = vpop.f32.mrf.mxu0
        %v2888 = vadd.f32 0.0, %v2887
        %v2889 = vpop.f32.mrf.mxu0
        %2890 = vmatprep.mubr.bf16.mxu0 0
        %2891 = vmatmul.mubr.bf16.gmra.mxu0 %v2771
        %v2892 = vpop.f32.mrf.mxu0
        %v2893 = vadd.f32 0.0, %v2892
        %v2894 = vpop.f32.mrf.mxu0
        %v2895 = vpop.f32.mrf.mxu0
        %v2896 = vadd.f32 0.0, %v2895
        %v2897 = vpop.f32.mrf.mxu0
        %2898 = vmatprep.mubr.bf16.mxu0 0
        %2899 = vmatmul.mubr.bf16.gmra.mxu0 %v2772
        %v2900 = vpop.f32.mrf.mxu0
        %v2901 = vadd.f32 0.0, %v2900
        %v2902 = vpop.f32.mrf.mxu0
        %v2903 = vpop.f32.mrf.mxu0
        %v2904 = vadd.f32 0.0, %v2903
        %v2905 = vpop.f32.mrf.mxu0
        %2906 = vmatprep.mubr.bf16.mxu0 0
        %2907 = vmatmul.mubr.bf16.gmra.mxu0 %v2773
        %v2908 = vpop.f32.mrf.mxu0
        %v2909 = vadd.f32 0.0, %v2908
        %v2910 = vpop.f32.mrf.mxu0
        %v2911 = vpop.f32.mrf.mxu0
        %v2912 = vadd.f32 0.0, %v2911
        %v2913 = vpop.f32.mrf.mxu0
        %2914 = vmatprep.mubr.bf16.mxu0 0
        %2915 = vmatmul.mubr.bf16.gmra.mxu0 %v2774
        %v2916 = vpop.f32.mrf.mxu0
        %v2917 = vadd.f32 0.0, %v2916
        %v2918 = vpop.f32.mrf.mxu0
        %v2919 = vpop.f32.mrf.mxu0
        %v2920 = vadd.f32 0.0, %v2919
        %v2921 = vpop.f32.mrf.mxu0
        %2922 = vmatprep.mubr.bf16.mxu0 0
        %2923 = vmatmul.mubr.bf16.gmra.mxu0 %v2775
        %v2924 = vpop.f32.mrf.mxu0
        %v2925 = vadd.f32 0.0, %v2924
        %v2926 = vpop.f32.mrf.mxu0
        %v2927 = vpop.f32.mrf.mxu0
        %v2928 = vadd.f32 0.0, %v2927
        %v2929 = vpop.f32.mrf.mxu0
        %2930 = vmatprep.mubr.bf16.mxu0 0
        %2931 = vmatmul.mubr.bf16.gmra.mxu0 %v2776
        %v2932 = vpop.f32.mrf.mxu0
        %v2933 = vadd.f32 0.0, %v2932
        %v2934 = vpop.f32.mrf.mxu0
        %v2935 = vpop.f32.mrf.mxu0
        %v2936 = vadd.f32 0.0, %v2935
        %v2937 = vpop.f32.mrf.mxu0
        %2938 = vmatprep.mubr.bf16.mxu0 0
        %2939 = vmatmul.mubr.bf16.gmra.mxu0 %v2777
        %v2940 = vpop.f32.mrf.mxu0
        %v2941 = vadd.f32 0.0, %v2940
        %v2942 = vpop.f32.mrf.mxu0
        %v2943 = vpop.f32.mrf.mxu0
        %v2944 = vadd.f32 0.0, %v2943
        %v2945 = vpop.f32.mrf.mxu0
        %2946 = vmatprep.mubr.bf16.mxu0 0
        %2947 = vmatmul.mubr.bf16.gmra.mxu0 %v2778
        %v2948 = vpop.f32.mrf.mxu0
        %v2949 = vadd.f32 0.0, %v2948
        %v2950 = vpop.f32.mrf.mxu0
        %v2951 = vpop.f32.mrf.mxu0
        %v2952 = vadd.f32 0.0, %v2951
        %v2953 = vpop.f32.mrf.mxu0
        %2954 = vmatprep.mubr.bf16.mxu0 0
        %2955 = vmatmul.mubr.bf16.gmra.mxu0 %v2779
        %v2956 = vpop.f32.mrf.mxu0
        %v2957 = vadd.f32 0.0, %v2956
        %v2958 = vpop.f32.mrf.mxu0
        %v2959 = vpop.f32.mrf.mxu0
        %v2960 = vadd.f32 0.0, %v2959
        %v2961 = vpop.f32.mrf.mxu0
        %2962 = vmatprep.mubr.bf16.mxu0 0
        %2963 = vmatmul.mubr.bf16.gmra.mxu0 %v2780
        %v2964 = vpop.f32.mrf.mxu0
        %v2965 = vadd.f32 0.0, %v2964
        %v2966 = vpop.f32.mrf.mxu0
        %v2967 = vpop.f32.mrf.mxu0
        %v2968 = vadd.f32 0.0, %v2967
        %v2969 = vpop.f32.mrf.mxu0
        %2970 = vmatprep.mubr.bf16.mxu0 0
        %2971 = vmatmul.mubr.bf16.gmra.mxu0 %v2781
        %v2972 = vpop.f32.mrf.mxu0
        %v2973 = vadd.f32 0.0, %v2972
        %v2974 = vpop.f32.mrf.mxu0
        %v2975 = vpop.f32.mrf.mxu0
        %v2976 = vadd.f32 0.0, %v2975
        %v2977 = vpop.f32.mrf.mxu0
        %2978 = vmatprep.mubr.bf16.mxu0 0
        %2979 = vmatmul.mubr.bf16.gmra.mxu0 %v2782
        %v2980 = vpop.f32.mrf.mxu0
        %v2981 = vadd.f32 0.0, %v2980
        %v2982 = vpop.f32.mrf.mxu0
        %v2983 = vpop.f32.mrf.mxu0
        %v2984 = vadd.f32 0.0, %v2983
        %v2985 = vpop.f32.mrf.mxu0
        %2986 = vmatprep.mubr.bf16.mxu0 0
        %2987 = vmatmul.mubr.bf16.gmra.mxu0 %v2783
        %v2988 = vpop.f32.mrf.mxu0
        %v2989 = vadd.f32 0.0, %v2988
        %v2990 = vpop.f32.mrf.mxu0
        %v2991 = vpop.f32.mrf.mxu0
        %v2992 = vadd.f32 0.0, %v2991
        %v2993 = vpop.f32.mrf.mxu0
        %2994 = vmatprep.mubr.bf16.mxu0 0
        %2995 = vmatmul.mubr.bf16.gmra.mxu0 %v2784
        %v2996 = vpop.f32.mrf.mxu0
        %v2997 = vadd.f32 0.0, %v2996
        %v2998 = vpop.f32.mrf.mxu0
        %v2999 = vpop.f32.mrf.mxu0
        %v3000 = vadd.f32 0.0, %v2999
        %v3001 = vpop.f32.mrf.mxu0
        %3002 = vmatprep.mubr.bf16.mxu0 0
        %3003 = vmatmul.mubr.bf16.gmra.mxu0 %v2785
        %v3004 = vpop.f32.mrf.mxu0
        %v3005 = vadd.f32 0.0, %v3004
        %v3006 = vpop.f32.mrf.mxu0
        %v3007 = vpop.f32.mrf.mxu0
        %v3008 = vadd.f32 0.0, %v3007
        %v3009 = vpop.f32.mrf.mxu0
        %3010 = vdwg.mxu0
        %v3011 = vadd.f32 %v2706, %v2885
        %v3012 = vadd.f32 %v2707, %v2888
        %v3013 = vadd.f32 %v2708, %v2893
        %v3014 = vadd.f32 %v2709, %v2896
        %v3015 = vadd.f32 %v2710, %v2901
        %v3016 = vadd.f32 %v2711, %v2904
        %v3017 = vadd.f32 %v2712, %v2909
        %v3018 = vadd.f32 %v2713, %v2912
        %v3019 = vadd.f32 %v2714, %v2917
        %v3020 = vadd.f32 %v2715, %v2920
        %v3021 = vadd.f32 %v2716, %v2925
        %v3022 = vadd.f32 %v2717, %v2928
        %v3023 = vadd.f32 %v2718, %v2933
        %v3024 = vadd.f32 %v2719, %v2936
        %v3025 = vadd.f32 %v2720, %v2941
        %v3026 = vadd.f32 %v2721, %v2944
        %v3027 = vadd.f32 %v2722, %v2949
        %v3028 = vadd.f32 %v2723, %v2952
        %v3029 = vadd.f32 %v2724, %v2957
        %v3030 = vadd.f32 %v2725, %v2960
        %v3031 = vadd.f32 %v2726, %v2965
        %v3032 = vadd.f32 %v2727, %v2968
        %v3033 = vadd.f32 %v2728, %v2973
        %v3034 = vadd.f32 %v2729, %v2976
        %v3035 = vadd.f32 %v2730, %v2981
        %v3036 = vadd.f32 %v2731, %v2984
        %v3037 = vadd.f32 %v2732, %v2989
        %v3038 = vadd.f32 %v2733, %v2992
        %v3039 = vadd.f32 %v2734, %v2997
        %v3040 = vadd.f32 %v2735, %v3000
        %v3041 = vadd.f32 %v2736, %v3005
        %v3042 = vadd.f32 %v2737, %v3008
        %v3043 = vld [vmem:[%s2432 + $0x2] sm:$0xff]
        %v3044 = vld [vmem:[%s2432 + $0xa] sm:$0xff]
        %v3045 = vld [vmem:[%s2432 + $0x1a] sm:$0xff]
        %v3046 = vld [vmem:[%s2432 + $0x22] sm:$0xff]
        %v3047 = vld [vmem:[%s2432 + $0x32] sm:$0xff]
        %v3048 = vld [vmem:[%s2432 + $0x3a] sm:$0xff]
        %v3049 = vld [vmem:[%s2432 + $0x4a] sm:$0xff]
        %v3050 = vld [vmem:[%s2432 + $0x52] sm:$0xff]
        %v3051 = vld [vmem:[%s2432 + $0x62] sm:$0xff]
        %v3052 = vld [vmem:[%s2432 + $0x6a] sm:$0xff]
        %v3053 = vld [vmem:[%s2432 + $0x7a] sm:$0xff]
        %v3054 = vld [vmem:[%s2432 + $0x82] sm:$0xff]
        %v3055 = vld [vmem:[%s2432 + $0x92] sm:$0xff]
        %v3056 = vld [vmem:[%s2432 + $0x9a] sm:$0xff]
        %v3057 = vld [vmem:[%s2432 + $0xaa] sm:$0xff]
        %v3058 = vld [vmem:[%s2432 + $0xb2] sm:$0xff]
        %v3059 = vld [vmem:[%s2432 + $0xc2] sm:$0xff]
        %v3060 = vld [vmem:[%s2432 + $0xca] sm:$0xff]
        %v3061 = vld [vmem:[%s2432 + $0xda] sm:$0xff]
        %v3062 = vld [vmem:[%s2432 + $0xe2] sm:$0xff]
        %v3063 = vld [vmem:[%s2432 + $0xf2] sm:$0xff]
        %v3064 = vld [vmem:[%s2432 + $0xfa] sm:$0xff]
        %v3065 = vld [vmem:[%s2432 + $0x10a] sm:$0xff]
        %v3066 = vld [vmem:[%s2432 + $0x112] sm:$0xff]
        %v3067 = vld [vmem:[%s2432 + $0x122] sm:$0xff]
        %v3068 = vld [vmem:[%s2432 + $0x12a] sm:$0xff]
        %v3069 = vld [vmem:[%s2432 + $0x13a] sm:$0xff]
        %v3070 = vld [vmem:[%s2432 + $0x142] sm:$0xff]
        %v3071 = vld [vmem:[%s2432 + $0x152] sm:$0xff]
        %v3072 = vld [vmem:[%s2432 + $0x15a] sm:$0xff]
        %v3073 = vld [vmem:[%s2432 + $0x16a] sm:$0xff]
        %v3074 = vld [vmem:[%s2432 + $0x172] sm:$0xff]
        %v3075 = vpack.c.bf16 %v3044, %v3043
        %v3076 = vpack.c.bf16 %v3046, %v3045
        %v3077 = vpack.c.bf16 %v3048, %v3047
        %v3078 = vpack.c.bf16 %v3050, %v3049
        %v3079 = vpack.c.bf16 %v3052, %v3051
        %v3080 = vpack.c.bf16 %v3054, %v3053
        %v3081 = vpack.c.bf16 %v3056, %v3055
        %v3082 = vpack.c.bf16 %v3058, %v3057
        %v3083 = vpack.c.bf16 %v3060, %v3059
        %v3084 = vpack.c.bf16 %v3062, %v3061
        %v3085 = vpack.c.bf16 %v3064, %v3063
        %v3086 = vpack.c.bf16 %v3066, %v3065
        %v3087 = vpack.c.bf16 %v3068, %v3067
        %v3088 = vpack.c.bf16 %v3070, %v3069
        %v3089 = vpack.c.bf16 %v3072, %v3071
        %v3090 = vpack.c.bf16 %v3074, %v3073
        %v3091 = vld [vmem:[#allocation7 + $0x200] sm:$0xf]
        %v3092 = vld [vmem:[#allocation7 + $0x204] sm:$0xf]
        %v3093 = vld [vmem:[#allocation7 + $0x208] sm:$0xf]
        %v3094 = vld [vmem:[#allocation7 + $0x20c] sm:$0xf]
        %v3095 = vld [vmem:[#allocation7 + $0x210] sm:$0xf]
        %v3096 = vld [vmem:[#allocation7 + $0x214] sm:$0xf]
        %v3097 = vld [vmem:[#allocation7 + $0x218] sm:$0xf]
        %v3098 = vld [vmem:[#allocation7 + $0x21c] sm:$0xf]
        %v3099 = vld [vmem:[#allocation7 + $0x220] sm:$0xf]
        %v3100 = vld [vmem:[#allocation7 + $0x224] sm:$0xf]
        %v3101 = vld [vmem:[#allocation7 + $0x228] sm:$0xf]
        %v3102 = vld [vmem:[#allocation7 + $0x22c] sm:$0xf]
        %v3103 = vld [vmem:[#allocation7 + $0x230] sm:$0xf]
        %v3104 = vld [vmem:[#allocation7 + $0x234] sm:$0xf]
        %v3105 = vld [vmem:[#allocation7 + $0x238] sm:$0xf]
        %v3106 = vld [vmem:[#allocation7 + $0x23c] sm:$0xf]
        %v3123 = vunpack.c.l.b16 %v3091
        %v3124 = vunpack.c.l.b16 %v3092
        %v3125 = vunpack.c.l.b16 %v3093
        %v3126 = vunpack.c.l.b16 %v3094
        %v3127 = vunpack.c.l.b16 %v3095
        %v3128 = vunpack.c.l.b16 %v3096
        %v3129 = vunpack.c.l.b16 %v3097
        %v3130 = vunpack.c.l.b16 %v3098
        %v3131 = vunpack.c.l.b16 %v3099
        %v3132 = vunpack.c.l.b16 %v3100
        %v3133 = vunpack.c.l.b16 %v3101
        %v3134 = vunpack.c.l.b16 %v3102
        %v3135 = vunpack.c.l.b16 %v3103
        %v3136 = vunpack.c.l.b16 %v3104
        %v3137 = vunpack.c.l.b16 %v3105
        %v3138 = vunpack.c.l.b16 %v3106
        %v3139 = vpack.c.b16 %v3124, %v3123
        %v3140 = vpack.c.b16 %v3126, %v3125
        %v3141 = vpack.c.b16 %v3128, %v3127
        %v3142 = vpack.c.b16 %v3130, %v3129
        %v3143 = vpack.c.b16 %v3132, %v3131
        %v3144 = vpack.c.b16 %v3134, %v3133
        %v3145 = vpack.c.b16 %v3136, %v3135
        %v3146 = vpack.c.b16 %v3138, %v3137
        %3155 = vmatprep.subr.bf16.mxu0 0
        %3156 = vmatpush1.bf16.msra.mxu0 %v3146
        %3157 = vmatprep.subr.bf16.mxu0 0
        %3158 = vmatpush1.bf16.msra.mxu0 %v3145
        %3159 = vmatprep.subr.bf16.mxu0 0
        %3160 = vmatpush1.bf16.msra.mxu0 %v3144
        %3161 = vmatprep.subr.bf16.mxu0 0
        %3162 = vmatpush1.bf16.msra.mxu0 %v3143
        %3163 = vmatprep.subr.bf16.mxu0 0
        %3164 = vmatpush1.bf16.msra.mxu0 %v3142
        %3165 = vmatprep.subr.bf16.mxu0 0
        %3166 = vmatpush1.bf16.msra.mxu0 %v3141
        %3167 = vmatprep.subr.bf16.mxu0 0
        %3168 = vmatpush1.bf16.msra.mxu0 %v3140
        %3169 = vmatprep.subr.bf16.mxu0 0
        %3170 = vmatpush1.bf16.msra.mxu0 %v3139
        %3171 = vmatprep.subr.bf16.mxu0 0
        %3172 = vmatpush2.bf16.msra.mxu0 0
        %3173 = vmatprep.subr.bf16.mxu0 0
        %3174 = vmatpush2.bf16.msra.mxu0 0
        %3175 = vmatprep.subr.bf16.mxu0 0
        %3176 = vmatpush2.bf16.msra.mxu0 0
        %3177 = vmatprep.subr.bf16.mxu0 0
        %3178 = vmatpush2.bf16.msra.mxu0 0
        %3179 = vmatprep.subr.bf16.mxu0 0
        %3180 = vmatpush2.bf16.msra.mxu0 0
        %3181 = vmatprep.subr.bf16.mxu0 0
        %3182 = vmatpush2.bf16.msra.mxu0 0
        %3183 = vmatprep.subr.bf16.mxu0 0
        %3184 = vmatpush2.bf16.msra.mxu0 0
        %3185 = vmatprep.subr.bf16.mxu0 0
        %3186 = vmatpush2.bf16.msra.mxu0 0
        %3187 = vmatprep.mubr.bf16.mxu0 0
        %3188 = vmatmul.mubr.bf16.gmra.mxu0 %v3075
        %v3189 = vpop.f32.mrf.mxu0
        %v3190 = vadd.f32 0.0, %v3189
        %v3191 = vpop.f32.mrf.mxu0
        %v3192 = vpop.f32.mrf.mxu0
        %v3193 = vadd.f32 0.0, %v3192
        %v3194 = vpop.f32.mrf.mxu0
        %3195 = vmatprep.mubr.bf16.mxu0 0
        %3196 = vmatmul.mubr.bf16.gmra.mxu0 %v3076
        %v3197 = vpop.f32.mrf.mxu0
        %v3198 = vadd.f32 0.0, %v3197
        %v3199 = vpop.f32.mrf.mxu0
        %v3200 = vpop.f32.mrf.mxu0
        %v3201 = vadd.f32 0.0, %v3200
        %v3202 = vpop.f32.mrf.mxu0
        %3203 = vmatprep.mubr.bf16.mxu0 0
        %3204 = vmatmul.mubr.bf16.gmra.mxu0 %v3077
        %v3205 = vpop.f32.mrf.mxu0
        %v3206 = vadd.f32 0.0, %v3205
        %v3207 = vpop.f32.mrf.mxu0
        %v3208 = vpop.f32.mrf.mxu0
        %v3209 = vadd.f32 0.0, %v3208
        %v3210 = vpop.f32.mrf.mxu0
        %3211 = vmatprep.mubr.bf16.mxu0 0
        %3212 = vmatmul.mubr.bf16.gmra.mxu0 %v3078
        %v3213 = vpop.f32.mrf.mxu0
        %v3214 = vadd.f32 0.0, %v3213
        %v3215 = vpop.f32.mrf.mxu0
        %v3216 = vpop.f32.mrf.mxu0
        %v3217 = vadd.f32 0.0, %v3216
        %v3218 = vpop.f32.mrf.mxu0
        %3219 = vmatprep.mubr.bf16.mxu0 0
        %3220 = vmatmul.mubr.bf16.gmra.mxu0 %v3079
        %v3221 = vpop.f32.mrf.mxu0
        %v3222 = vadd.f32 0.0, %v3221
        %v3223 = vpop.f32.mrf.mxu0
        %v3224 = vpop.f32.mrf.mxu0
        %v3225 = vadd.f32 0.0, %v3224
        %v3226 = vpop.f32.mrf.mxu0
        %3227 = vmatprep.mubr.bf16.mxu0 0
        %3228 = vmatmul.mubr.bf16.gmra.mxu0 %v3080
        %v3229 = vpop.f32.mrf.mxu0
        %v3230 = vadd.f32 0.0, %v3229
        %v3231 = vpop.f32.mrf.mxu0
        %v3232 = vpop.f32.mrf.mxu0
        %v3233 = vadd.f32 0.0, %v3232
        %v3234 = vpop.f32.mrf.mxu0
        %3235 = vmatprep.mubr.bf16.mxu0 0
        %3236 = vmatmul.mubr.bf16.gmra.mxu0 %v3081
        %v3237 = vpop.f32.mrf.mxu0
        %v3238 = vadd.f32 0.0, %v3237
        %v3239 = vpop.f32.mrf.mxu0
        %v3240 = vpop.f32.mrf.mxu0
        %v3241 = vadd.f32 0.0, %v3240
        %v3242 = vpop.f32.mrf.mxu0
        %3243 = vmatprep.mubr.bf16.mxu0 0
        %3244 = vmatmul.mubr.bf16.gmra.mxu0 %v3082
        %v3245 = vpop.f32.mrf.mxu0
        %v3246 = vadd.f32 0.0, %v3245
        %v3247 = vpop.f32.mrf.mxu0
        %v3248 = vpop.f32.mrf.mxu0
        %v3249 = vadd.f32 0.0, %v3248
        %v3250 = vpop.f32.mrf.mxu0
        %3251 = vmatprep.mubr.bf16.mxu0 0
        %3252 = vmatmul.mubr.bf16.gmra.mxu0 %v3083
        %v3253 = vpop.f32.mrf.mxu0
        %v3254 = vadd.f32 0.0, %v3253
        %v3255 = vpop.f32.mrf.mxu0
        %v3256 = vpop.f32.mrf.mxu0
        %v3257 = vadd.f32 0.0, %v3256
        %v3258 = vpop.f32.mrf.mxu0
        %3259 = vmatprep.mubr.bf16.mxu0 0
        %3260 = vmatmul.mubr.bf16.gmra.mxu0 %v3084
        %v3261 = vpop.f32.mrf.mxu0
        %v3262 = vadd.f32 0.0, %v3261
        %v3263 = vpop.f32.mrf.mxu0
        %v3264 = vpop.f32.mrf.mxu0
        %v3265 = vadd.f32 0.0, %v3264
        %v3266 = vpop.f32.mrf.mxu0
        %3267 = vmatprep.mubr.bf16.mxu0 0
        %3268 = vmatmul.mubr.bf16.gmra.mxu0 %v3085
        %v3269 = vpop.f32.mrf.mxu0
        %v3270 = vadd.f32 0.0, %v3269
        %v3271 = vpop.f32.mrf.mxu0
        %v3272 = vpop.f32.mrf.mxu0
        %v3273 = vadd.f32 0.0, %v3272
        %v3274 = vpop.f32.mrf.mxu0
        %3275 = vmatprep.mubr.bf16.mxu0 0
        %3276 = vmatmul.mubr.bf16.gmra.mxu0 %v3086
        %v3277 = vpop.f32.mrf.mxu0
        %v3278 = vadd.f32 0.0, %v3277
        %v3279 = vpop.f32.mrf.mxu0
        %v3280 = vpop.f32.mrf.mxu0
        %v3281 = vadd.f32 0.0, %v3280
        %v3282 = vpop.f32.mrf.mxu0
        %3283 = vmatprep.mubr.bf16.mxu0 0
        %3284 = vmatmul.mubr.bf16.gmra.mxu0 %v3087
        %v3285 = vpop.f32.mrf.mxu0
        %v3286 = vadd.f32 0.0, %v3285
        %v3287 = vpop.f32.mrf.mxu0
        %v3288 = vpop.f32.mrf.mxu0
        %v3289 = vadd.f32 0.0, %v3288
        %v3290 = vpop.f32.mrf.mxu0
        %3291 = vmatprep.mubr.bf16.mxu0 0
        %3292 = vmatmul.mubr.bf16.gmra.mxu0 %v3088
        %v3293 = vpop.f32.mrf.mxu0
        %v3294 = vadd.f32 0.0, %v3293
        %v3295 = vpop.f32.mrf.mxu0
        %v3296 = vpop.f32.mrf.mxu0
        %v3297 = vadd.f32 0.0, %v3296
        %v3298 = vpop.f32.mrf.mxu0
        %3299 = vmatprep.mubr.bf16.mxu0 0
        %3300 = vmatmul.mubr.bf16.gmra.mxu0 %v3089
        %v3301 = vpop.f32.mrf.mxu0
        %v3302 = vadd.f32 0.0, %v3301
        %v3303 = vpop.f32.mrf.mxu0
        %v3304 = vpop.f32.mrf.mxu0
        %v3305 = vadd.f32 0.0, %v3304
        %v3306 = vpop.f32.mrf.mxu0
        %3307 = vmatprep.mubr.bf16.mxu0 0
        %3308 = vmatmul.mubr.bf16.gmra.mxu0 %v3090
        %v3309 = vpop.f32.mrf.mxu0
        %v3310 = vadd.f32 0.0, %v3309
        %v3311 = vpop.f32.mrf.mxu0
        %v3312 = vpop.f32.mrf.mxu0
        %v3313 = vadd.f32 0.0, %v3312
        %v3314 = vpop.f32.mrf.mxu0
        %3315 = vdwg.mxu0
        %v3316 = vadd.f32 %v3011, %v3190
        %v3317 = vadd.f32 %v3012, %v3193
        %v3318 = vadd.f32 %v3013, %v3198
        %v3319 = vadd.f32 %v3014, %v3201
        %v3320 = vadd.f32 %v3015, %v3206
        %v3321 = vadd.f32 %v3016, %v3209
        %v3322 = vadd.f32 %v3017, %v3214
        %v3323 = vadd.f32 %v3018, %v3217
        %v3324 = vadd.f32 %v3019, %v3222
        %v3325 = vadd.f32 %v3020, %v3225
        %v3326 = vadd.f32 %v3021, %v3230
        %v3327 = vadd.f32 %v3022, %v3233
        %v3328 = vadd.f32 %v3023, %v3238
        %v3329 = vadd.f32 %v3024, %v3241
        %v3330 = vadd.f32 %v3025, %v3246
        %v3331 = vadd.f32 %v3026, %v3249
        %v3332 = vadd.f32 %v3027, %v3254
        %v3333 = vadd.f32 %v3028, %v3257
        %v3334 = vadd.f32 %v3029, %v3262
        %v3335 = vadd.f32 %v3030, %v3265
        %v3336 = vadd.f32 %v3031, %v3270
        %v3337 = vadd.f32 %v3032, %v3273
        %v3338 = vadd.f32 %v3033, %v3278
        %v3339 = vadd.f32 %v3034, %v3281
        %v3340 = vadd.f32 %v3035, %v3286
        %v3341 = vadd.f32 %v3036, %v3289
        %v3342 = vadd.f32 %v3037, %v3294
        %v3343 = vadd.f32 %v3038, %v3297
        %v3344 = vadd.f32 %v3039, %v3302
        %v3345 = vadd.f32 %v3040, %v3305
        %v3346 = vadd.f32 %v3041, %v3310
        %v3347 = vadd.f32 %v3042, %v3313
        %v3348 = vld [vmem:[%s2] sm:$0x1]
        %v3350 = vlaneseq
        %v3351 = vshrl.u32 %v3350, 7
        %v3352 = vsub.s32 0, %v3351
        %v3353 = vrot.slane %v3348, %v3352
        %v3355 = vadd.f32 %v3316, %v3353
        %v3356 = vadd.f32 %v3317, %v3353
        %v3357 = vadd.f32 %v3318, %v3353
        %v3358 = vadd.f32 %v3319, %v3353
        %v3359 = vadd.f32 %v3320, %v3353
        %v3360 = vadd.f32 %v3321, %v3353
        %v3361 = vadd.f32 %v3322, %v3353
        %v3362 = vadd.f32 %v3323, %v3353
        %v3363 = vadd.f32 %v3324, %v3353
        %v3364 = vadd.f32 %v3325, %v3353
        %v3365 = vadd.f32 %v3326, %v3353
        %v3366 = vadd.f32 %v3327, %v3353
        %v3367 = vadd.f32 %v3328, %v3353
        %v3368 = vadd.f32 %v3329, %v3353
        %v3369 = vadd.f32 %v3330, %v3353
        %v3370 = vadd.f32 %v3331, %v3353
        %v3371 = vadd.f32 %v3332, %v3353
        %v3372 = vadd.f32 %v3333, %v3353
        %v3373 = vadd.f32 %v3334, %v3353
        %v3374 = vadd.f32 %v3335, %v3353
        %v3375 = vadd.f32 %v3336, %v3353
        %v3376 = vadd.f32 %v3337, %v3353
        %v3377 = vadd.f32 %v3338, %v3353
        %v3378 = vadd.f32 %v3339, %v3353
        %v3379 = vadd.f32 %v3340, %v3353
        %v3380 = vadd.f32 %v3341, %v3353
        %v3381 = vadd.f32 %v3342, %v3353
        %v3382 = vadd.f32 %v3343, %v3353
        %v3383 = vadd.f32 %v3344, %v3353
        %v3384 = vadd.f32 %v3345, %v3353
        %v3385 = vadd.f32 %v3346, %v3353
        %v3386 = vadd.f32 %v3347, %v3353
        %v3387 = vadd.f32 %v3355, %v313
        %v3388 = vadd.f32 %v3356, %v314
        %v3389 = vadd.f32 %v3357, %v315
        %v3390 = vadd.f32 %v3358, %v316
        %v3391 = vadd.f32 %v3359, %v317
        %v3392 = vadd.f32 %v3360, %v318
        %v3393 = vadd.f32 %v3361, %v319
        %v3394 = vadd.f32 %v3362, %v320
        %v3395 = vadd.f32 %v3363, %v321
        %v3396 = vadd.f32 %v3364, %v322
        %v3397 = vadd.f32 %v3365, %v323
        %v3398 = vadd.f32 %v3366, %v324
        %v3399 = vadd.f32 %v3367, %v325
        %v3400 = vadd.f32 %v3368, %v326
        %v3401 = vadd.f32 %v3369, %v327
        %v3402 = vadd.f32 %v3370, %v328
        %v3403 = vadd.f32 %v3371, %v329
        %v3404 = vadd.f32 %v3372, %v330
        %v3405 = vadd.f32 %v3373, %v331
        %v3406 = vadd.f32 %v3374, %v332
        %v3407 = vadd.f32 %v3375, %v333
        %v3408 = vadd.f32 %v3376, %v334
        %v3409 = vadd.f32 %v3377, %v335
        %v3410 = vadd.f32 %v3378, %v336
        %v3411 = vadd.f32 %v3379, %v337
        %v3412 = vadd.f32 %v3380, %v338
        %v3413 = vadd.f32 %v3381, %v339
        %v3414 = vadd.f32 %v3382, %v340
        %v3415 = vadd.f32 %v3383, %v341
        %v3416 = vadd.f32 %v3384, %v342
        %v3417 = vadd.f32 %v3385, %v343
        %v3418 = vadd.f32 %v3386, %v344
        %v3419 = vpack.c.bf16 %v3388, %v3387
        %v3420 = vpack.c.bf16 %v3390, %v3389
        %v3421 = vpack.c.bf16 %v3392, %v3391
        %v3422 = vpack.c.bf16 %v3394, %v3393
        %v3423 = vpack.c.bf16 %v3396, %v3395
        %v3424 = vpack.c.bf16 %v3398, %v3397
        %v3425 = vpack.c.bf16 %v3400, %v3399
        %v3426 = vpack.c.bf16 %v3402, %v3401
        %v3427 = vpack.c.bf16 %v3404, %v3403
        %v3428 = vpack.c.bf16 %v3406, %v3405
        %v3429 = vpack.c.bf16 %v3408, %v3407
        %v3430 = vpack.c.bf16 %v3410, %v3409
        %v3431 = vpack.c.bf16 %v3412, %v3411
        %v3432 = vpack.c.bf16 %v3414, %v3413
        %v3433 = vpack.c.bf16 %v3416, %v3415
        %v3434 = vpack.c.bf16 %v3418, %v3417
        %v3451 = vunpack.c.l.b16 %v3419
        %v3452 = vunpack.c.h.b16 %v3419
        %v3453 = vunpack.c.l.b16 %v3420
        %v3454 = vunpack.c.h.b16 %v3420
        %v3455 = vunpack.c.l.b16 %v3421
        %v3456 = vunpack.c.h.b16 %v3421
        %v3457 = vunpack.c.l.b16 %v3422
        %v3458 = vunpack.c.h.b16 %v3422
        %v3459 = vunpack.c.l.b16 %v3423
        %v3460 = vunpack.c.h.b16 %v3423
        %v3461 = vunpack.c.l.b16 %v3424
        %v3462 = vunpack.c.h.b16 %v3424
        %v3463 = vunpack.c.l.b16 %v3425
        %v3464 = vunpack.c.h.b16 %v3425
        %v3465 = vunpack.c.l.b16 %v3426
        %v3466 = vunpack.c.h.b16 %v3426
        %v3467 = vunpack.c.l.b16 %v3427
        %v3468 = vunpack.c.h.b16 %v3427
        %v3469 = vunpack.c.l.b16 %v3428
        %v3470 = vunpack.c.h.b16 %v3428
        %v3471 = vunpack.c.l.b16 %v3429
        %v3472 = vunpack.c.h.b16 %v3429
        %v3473 = vunpack.c.l.b16 %v3430
        %v3474 = vunpack.c.h.b16 %v3430
        %v3475 = vunpack.c.l.b16 %v3431
        %v3476 = vunpack.c.h.b16 %v3431
        %v3477 = vunpack.c.l.b16 %v3432
        %v3478 = vunpack.c.h.b16 %v3432
        %v3479 = vunpack.c.l.b16 %v3433
        %v3480 = vunpack.c.h.b16 %v3433
        %v3481 = vunpack.c.l.b16 %v3434
        %v3482 = vunpack.c.h.b16 %v3434
        %v3483 = vpack.c.b16 %v3451, %v3451
        %v3484 = vpack.c.b16 %v3452, %v3452
        %v3485 = vpack.c.b16 %v3453, %v3453
        %v3486 = vpack.c.b16 %v3454, %v3454
        %v3487 = vpack.c.b16 %v3455, %v3455
        %v3488 = vpack.c.b16 %v3456, %v3456
        %v3489 = vpack.c.b16 %v3457, %v3457
        %v3490 = vpack.c.b16 %v3458, %v3458
        %v3491 = vpack.c.b16 %v3459, %v3459
        %v3492 = vpack.c.b16 %v3460, %v3460
        %v3493 = vpack.c.b16 %v3461, %v3461
        %v3494 = vpack.c.b16 %v3462, %v3462
        %v3495 = vpack.c.b16 %v3463, %v3463
        %v3496 = vpack.c.b16 %v3464, %v3464
        %v3497 = vpack.c.b16 %v3465, %v3465
        %v3498 = vpack.c.b16 %v3466, %v3466
        %v3499 = vpack.c.b16 %v3467, %v3467
        %v3500 = vpack.c.b16 %v3468, %v3468
        %v3501 = vpack.c.b16 %v3469, %v3469
        %v3502 = vpack.c.b16 %v3470, %v3470
        %v3503 = vpack.c.b16 %v3471, %v3471
        %v3504 = vpack.c.b16 %v3472, %v3472
        %v3505 = vpack.c.b16 %v3473, %v3473
        %v3506 = vpack.c.b16 %v3474, %v3474
        %v3507 = vpack.c.b16 %v3475, %v3475
        %v3508 = vpack.c.b16 %v3476, %v3476
        %v3509 = vpack.c.b16 %v3477, %v3477
        %v3510 = vpack.c.b16 %v3478, %v3478
        %v3511 = vpack.c.b16 %v3479, %v3479
        %v3512 = vpack.c.b16 %v3480, %v3480
        %v3513 = vpack.c.b16 %v3481, %v3481
        %v3514 = vpack.c.b16 %v3482, %v3482
        %3547 = vst [vmem:[%s221] sm:$0xf] %v3483
        %3548 = vst [vmem:[%s221 + $0x4] sm:$0xf] %v3484
        %3549 = vst [vmem:[%s221 + $0x8] sm:$0xf] %v3485
        %3550 = vst [vmem:[%s221 + $0xc] sm:$0xf] %v3486
        %3551 = vst [vmem:[%s221 + $0x10] sm:$0xf] %v3487
        %3552 = vst [vmem:[%s221 + $0x14] sm:$0xf] %v3488
        %3553 = vst [vmem:[%s221 + $0x18] sm:$0xf] %v3489
        %3554 = vst [vmem:[%s221 + $0x1c] sm:$0xf] %v3490
        %3555 = vst [vmem:[%s221 + $0x20] sm:$0xf] %v3491
        %3556 = vst [vmem:[%s221 + $0x24] sm:$0xf] %v3492
        %3557 = vst [vmem:[%s221 + $0x28] sm:$0xf] %v3493
        %3558 = vst [vmem:[%s221 + $0x2c] sm:$0xf] %v3494
        %3559 = vst [vmem:[%s221 + $0x30] sm:$0xf] %v3495
        %3560 = vst [vmem:[%s221 + $0x34] sm:$0xf] %v3496
        %3561 = vst [vmem:[%s221 + $0x38] sm:$0xf] %v3497
        %3562 = vst [vmem:[%s221 + $0x3c] sm:$0xf] %v3498
        %3563 = vst [vmem:[%s221 + $0x40] sm:$0xf] %v3499
        %3564 = vst [vmem:[%s221 + $0x44] sm:$0xf] %v3500
        %3565 = vst [vmem:[%s221 + $0x48] sm:$0xf] %v3501
        %3566 = vst [vmem:[%s221 + $0x4c] sm:$0xf] %v3502
        %3567 = vst [vmem:[%s221 + $0x50] sm:$0xf] %v3503
        %3568 = vst [vmem:[%s221 + $0x54] sm:$0xf] %v3504
        %3569 = vst [vmem:[%s221 + $0x58] sm:$0xf] %v3505
        %3570 = vst [vmem:[%s221 + $0x5c] sm:$0xf] %v3506
        %3571 = vst [vmem:[%s221 + $0x60] sm:$0xf] %v3507
        %3572 = vst [vmem:[%s221 + $0x64] sm:$0xf] %v3508
        %3573 = vst [vmem:[%s221 + $0x68] sm:$0xf] %v3509
        %3574 = vst [vmem:[%s221 + $0x6c] sm:$0xf] %v3510
        %3575 = vst [vmem:[%s221 + $0x70] sm:$0xf] %v3511
        %3576 = vst [vmem:[%s221 + $0x74] sm:$0xf] %v3512
        %3577 = vst [vmem:[%s221 + $0x78] sm:$0xf] %v3513
        %3578 = vst [vmem:[%s221 + $0x7c] sm:$0xf] %v3514
        %s3579 = sand.u32 %s113, 1
        %s3580 = scalar_lea.sflag [#allocation6], %s3579
        %s3581 = sand.u32 %s113, 1
        %s3582 = smul.addr %s3581, 128
        %s3583 = scalar_lea.vmem [#allocation9], %s3582
        // Predicated region
        $region45: #{tpu_custom_call.1} parent=31 // pred_check
          %p3584 = pneg %p123
        $region46: #{tpu_custom_call.1} parent=31 // pred_check_branch
          %3586 = sbr.rel (%p3584) target = $region48
        $region47: #{tpu_custom_call.1} parent=31 // pred_region
          %s3588 = ssub.s32 2048, 2048
          %3589 = vsyncadd %s3580, %s3588
          %s3590 = smul.addr %s25, 32
          %s3591 = smul.addr %s26, 64
          %s3592 = sadd.s32 %s3590, %s3591
          %s3593 = smul.addr %s3592, 64
          %s3594 = scalar_lea.hbm %s3, %s3593
          %s3595 = sshll.u32 %s3583, 4
          %s3596 = int_to_ptr.vmem [resolvable:$true] %s3595
          %3601 = dma.vmem_to_hbm [thread:$0]  %s3596, 2048, %s3594, %s3580, 64, 64, 4
        $region48: #{tpu_custom_call.1} parent=31 // pred_fallthru
          _
      $region32: #{tpu_custom_call.1} parent=5 // pred_fallthru
        _
      %p3602 = scmp.le.s32.totalorder 2, %s16
      // Predicated region
      $region49: #{tpu_custom_call.1} parent=5 // pred_check
        %p3603 = pneg %p3602
      $region50: #{tpu_custom_call.1} parent=5 // pred_check_branch
        %3605 = sbr.rel (%p3603) target = $region52
      $region51: #{tpu_custom_call.1} parent=5 // pred_region
        %s3606 = ssub.s32 %s16, 2
        // Predicated region
        $region53: #{tpu_custom_call.1} parent=51 // pred_check
          %p3607 = pneg %p129
        $region54: #{tpu_custom_call.1} parent=51 // pred_check_branch
          %3609 = sbr.rel (%p3607) target = $region56
        $region55: #{tpu_custom_call.1} parent=51 // pred_region
          %s3610 = sand.u32 %s114, 1
          %s3611 = scalar_lea.sflag [#allocation6], %s3610
          %s3612 = sand.u32 %s114, 1
          %s3613 = smul.addr %s3612, 128
          %s3614 = scalar_lea.vmem [#allocation9], %s3613
          %3615 = dma.done %s3611, 2048
        $region56: #{tpu_custom_call.1} parent=51 // pred_fallthru
          _
      $region52: #{tpu_custom_call.1} parent=5 // pred_fallthru
        _
    $region6: #{tpu_custom_call.1} parent=1 // loop_footer
      %s20 = sadd.s32 1, %s16
    $region7: #{tpu_custom_call.1} parent=1 // loop_footer_branch
      %15 = sbr.rel target = $region3
    $region8: #{tpu_custom_call.1} parent=1 // loop_exit
      _
    %3616 = vsyncpa [#allocation5], 1
    %s3617 = scalar_lea.sflag [#allocation5], 1
    %3618 = vsyncpa %s3617, 1
    %3619 = vsyncpa [#allocation8], 1
    %3620 = vsyncpa [#allocation6], 1
    %s3621 = scalar_lea.sflag [#allocation6], 1
    %3622 = vsyncpa %s3621, 1

</llo_original>
